<compile_context>
chip_gen: v7x
topology: tpu7x:2x2x1
jax: 0.10.0
libtpu: 0.0.40
codegen_flags: <defaults>
</compile_context>

<pallas_src>
import math

import jax
import jax.numpy as jnp
from jax.experimental import pallas as pl
from jax.experimental.pallas import tpu as pltpu

# --- small config, consistent with the module structure (defaults scaled down) ---
TOKEN_DIM  = 16                      # module default 112
EMBED_DIM  = 32                      # module default 256
NUM_HEADS  = 4                       # module default 8
NUM_LAYERS = 2                       # module default 6
NUM_TOKENS = 8                       # module default 64
FFN_DIM    = 64                      # PyTorch TransformerEncoderLayer default 2048
MOVE_DIM   = NUM_TOKENS * NUM_TOKENS # module hardcodes 64*64; scaled to tokens^2
HEAD_DIM   = EMBED_DIM // NUM_HEADS
LN_EPS     = 1e-5
BATCH      = 2

CHUNK_B    = 1                       # batch elements per grid chunk (rows = CHUNK_B * S)
MOVE_TILE  = min(MOVE_DIM, 512)      # move-head lane tile


# ------------------------------------------------------------------ kernels ---

def _layer_norm(x, w, b):
    mu = jnp.mean(x, axis=-1, keepdims=True)
    xc = x - mu
    var = jnp.mean(xc * xc, axis=-1, keepdims=True)
    return xc * jax.lax.rsqrt(var + LN_EPS) * w + b


def encoder_kernel(
        # layer-independent inputs
        x_ref, emb_w_ref, emb_b_ref, add_ref, mul_ref, pool_ref,
        eval_w_ref, eval_b_ref,
        # per-layer (streamed) inputs, leading dim = layer
        wqkv_ref, bqkv_ref, wo_ref, bo_ref,
        ln1w_ref, ln1b_ref, w1_ref, b1_ref, w2_ref, b2_ref, ln2w_ref, ln2b_ref,
        # outputs
        hid_ref, eval_ref,
        # VMEM scratch: resident activation + per-head context assembly (both f32)
        h_ref, ctx_ref):
    S, E, Dh = NUM_TOKENS, EMBED_DIM, HEAD_DIM
    layer = pl.program_id(1)

    # ---- embedding + offsets (first layer iteration of each chunk) ----
    @pl.when(layer == 0)
    def _embed():
        h0 = jnp.dot(x_ref[...].astype(jnp.bfloat16), emb_w_ref[...],
                     preferred_element_type=jnp.float32) + emb_b_ref[...]
        h_ref[...] = (h0 + add_ref[...]) * mul_ref[...]

    x = h_ref[...]                                           # (R, E) f32
    xb = x.astype(jnp.bfloat16)

    # ---- self-attention: fused QKV matmul, per-(batch, head) softmax, one out-proj ----
    qkv = jnp.dot(xb, wqkv_ref[0],
                  preferred_element_type=jnp.float32) + bqkv_ref[0]   # (R, 3E) f32
    qkv_b = qkv.astype(jnp.bfloat16)

    for g in range(CHUNK_B):                                 # static: batch elems in chunk
        r0 = g * S
        for hd in range(NUM_HEADS):                          # static: heads
            lo = hd * Dh
            qh = qkv_b[r0:r0 + S, lo:lo + Dh]                # 1/sqrt(Dh) folded into Wq/bq
            kh = qkv_b[r0:r0 + S, E + lo:E + lo + Dh]
            vh = qkv_b[r0:r0 + S, 2 * E + lo:2 * E + lo + Dh]
            s = jax.lax.dot_general(qh, kh, (((1,), (1,)), ((), ())),
                                    preferred_element_type=jnp.float32)   # (S, S)
            s = s - jnp.max(s, axis=-1, keepdims=True)
            p = jnp.exp(s)
            p = p * pl.reciprocal(jnp.sum(p, axis=-1, keepdims=True), approx=True)
            ctx_ref[r0:r0 + S, lo:lo + Dh] = jnp.dot(
                p.astype(jnp.bfloat16), vh, preferred_element_type=jnp.float32)

    attn = jnp.dot(ctx_ref[...].astype(jnp.bfloat16), wo_ref[0],
                   preferred_element_type=jnp.float32) + bo_ref[0]

    # ---- post-norm encoder layer: LN1 -> FFN(relu) -> LN2 (all f32 elementwise) ----
    h1 = _layer_norm(x + attn, ln1w_ref[0], ln1b_ref[0])
    ff = jnp.dot(h1.astype(jnp.bfloat16), w1_ref[0],
                 preferred_element_type=jnp.float32) + b1_ref[0]
    ff = jnp.maximum(ff, 0.0)
    ff = jnp.dot(ff.astype(jnp.bfloat16), w2_ref[0],
                 preferred_element_type=jnp.float32) + b2_ref[0]
    h_new = _layer_norm(h1 + ff, ln2w_ref[0], ln2b_ref[0])
    h_ref[...] = h_new

    # ---- last layer: hand off hidden state + tiny eval head (per-batch seq mean) ----
    @pl.when(layer == pl.num_programs(1) - 1)
    def _finish():
        hid_ref[...] = h_new
        hm = jnp.dot(pool_ref[...], h_new,
                     preferred_element_type=jnp.float32)      # (CHUNK_B, E) seq mean
        ev = jnp.dot(hm, eval_w_ref[...],
                     preferred_element_type=jnp.float32) + eval_b_ref[...]
        eval_ref[...] = ev.reshape(CHUNK_B, 1, 1)


def move_head_kernel(h_ref, w_ref, b_ref, o_ref):
    o_ref[...] = jnp.dot(h_ref[...].astype(jnp.bfloat16), w_ref[...],
                         preferred_element_type=jnp.float32) + b_ref[...]


# ---------------------------------------------------------------- wrapper ---

def _const(shape):
    nd = len(shape)
    return pl.BlockSpec(shape, lambda b, l, n=nd: (0,) * n)


def _chunk(shape):
    nz = len(shape) - 1
    return pl.BlockSpec(shape, lambda b, l, n=nz: (b,) + (0,) * n)


def _layerw(shape):
    nz = len(shape)
    return pl.BlockSpec((1,) + shape, lambda b, l, n=nz: (l,) + (0,) * n)


def chess_transformer_forward(x, params):
    B, S, T = x.shape
    E, F, M, L = EMBED_DIM, FFN_DIM, MOVE_DIM, NUM_LAYERS
    Dh = HEAD_DIM
    assert S == NUM_TOKENS and T == TOKEN_DIM and B % CHUNK_B == 0 and M % MOVE_TILE == 0
    BS = B * S
    R = CHUNK_B * S
    n_chunks = B // CHUNK_B
    TM = MOVE_TILE
    scale = 1.0 / math.sqrt(Dh)
    bf16 = jnp.bfloat16

    # ---- one-time layout plumbing (outside the kernel): transposes, bf16 casts ----
    x2d = x.reshape(BS, T)
    emb_w_t = params["emb_w"].T.astype(bf16)                  # (T, E)
    emb_b = params["emb_b"].reshape(1, E)
    add2d = jnp.tile(params["offset_add"], (CHUNK_B, 1))      # (R, E) same for every chunk
    mul2d = jnp.tile(params["offset_mul"], (CHUNK_B, 1))
    # per-chunk mean-pool matrix: 1/S on each batch element's own rows
    row_b = jnp.arange(R) // S
    pool = (jnp.arange(CHUNK_B)[:, None] == row_b[None, :]).astype(jnp.float32) / S
    eval_w_t = params["eval_w"].T                             # (E, 1) f32 (tiny)
    eval_b = params["eval_b"].reshape(1, 1)
    move_w_t = params["move_w"].T.astype(bf16)                # (E, M)
    move_b = params["move_b"].reshape(1, M)

    # ---- stack per-layer weights along a leading layer axis (pre-transposed, q-scaled) ----
    wqkv, bqkv, wo, bo = [], [], [], []
    ln1w, ln1b, w1, b1, w2, b2, ln2w, ln2b = ([] for _ in range(8))
    for lp in params["layers"]:
        wq = lp["in_proj_w"][:E] * scale
        wk = lp["in_proj_w"][E:2 * E]
        wv = lp["in_proj_w"][2 * E:]
        bq = lp["in_proj_b"][:E] * scale
        bk = lp["in_proj_b"][E:2 * E]
        bv = lp["in_proj_b"][2 * E:]
        wqkv.append(jnp.concatenate([wq, wk, wv], axis=0).T.astype(bf16))   # (E, 3E)
        bqkv.append(jnp.concatenate([bq, bk, bv]).reshape(1, 3 * E))
        wo.append(lp["out_proj_w"].T.astype(bf16))                          # (E, E)
        bo.append(lp["out_proj_b"].reshape(1, E))
        ln1w.append(lp["ln1_w"].reshape(1, E)); ln1b.append(lp["ln1_b"].reshape(1, E))
        w1.append(lp["ffn_w1"].T.astype(bf16))                              # (E, F)
        b1.append(lp["ffn_b1"].reshape(1, F))
        w2.append(lp["ffn_w2"].T.astype(bf16))                              # (F, E)
        b2.append(lp["ffn_b2"].reshape(1, E))
        ln2w.append(lp["ln2_w"].reshape(1, E)); ln2b.append(lp["ln2_b"].reshape(1, E))
    stk = lambda xs: jnp.stack(xs, axis=0)
    wqkv_all, bqkv_all = stk(wqkv), stk(bqkv)
    wo_all, bo_all = stk(wo), stk(bo)
    ln1w_all, ln1b_all = stk(ln1w), stk(ln1b)
    w1_all, b1_all, w2_all, b2_all = stk(w1), stk(b1), stk(w2), stk(b2)
    ln2w_all, ln2b_all = stk(ln2w), stk(ln2b)

    # ---- kernel 1: encoder (embedding + all layers + eval head) ----
    hidden, ev3 = pl.pallas_call(
        encoder_kernel,
        out_shape=(jax.ShapeDtypeStruct((BS, E), jnp.float32),
                   jax.ShapeDtypeStruct((B, 1, 1), jnp.float32)),
        grid=(n_chunks, L),
        in_specs=[
            _chunk((R, T)),                     # x (per batch-chunk)
            _const((T, E)), _const((1, E)),     # embed W^T (bf16), b
            _const((R, E)), _const((R, E)),     # offset add / mul
            _const((CHUNK_B, R)),               # mean-pool matrix
            _const((E, 1)), _const((1, 1)),     # eval head W^T, b
            _layerw((E, 3 * E)), _layerw((1, 3 * E)),   # Wqkv^T (bf16), bqkv
            _layerw((E, E)), _layerw((1, E)),           # Wo^T (bf16), bo
            _layerw((1, E)), _layerw((1, E)),           # ln1 w/b
            _layerw((E, F)), _layerw((1, F)),           # ffn W1^T (bf16), b1
            _layerw((F, E)), _layerw((1, E)),           # ffn W2^T (bf16), b2
            _layerw((1, E)), _layerw((1, E)),           # ln2 w/b
        ],
        out_specs=(pl.BlockSpec((R, E), lambda b, l: (b, 0)),
                   pl.BlockSpec((CHUNK_B, 1, 1), lambda b, l: (b, 0, 0))),
        scratch_shapes=[pltpu.VMEM((R, E), jnp.float32),
                        pltpu.VMEM((R, E), jnp.float32)],
        compiler_params=pltpu.CompilerParams(
            dimension_semantics=("parallel", "arbitrary"),
            vmem_limit_bytes=64 * 1024 * 1024),
    )(x2d, emb_w_t, emb_b, add2d, mul2d, pool, eval_w_t, eval_b,
      wqkv_all, bqkv_all, wo_all, bo_all,
      ln1w_all, ln1b_all, w1_all, b1_all, w2_all, b2_all, ln2w_all, ln2b_all)

    # ---- kernel 2: move head, tiled over (batch chunks, move lanes) ----
    move2d = pl.pallas_call(
        move_head_kernel,
        out_shape=jax.ShapeDtypeStruct((BS, M), jnp.float32),
        grid=(n_chunks, M // TM),
        in_specs=[pl.BlockSpec((R, E), lambda b, m: (b, 0)),
                  pl.BlockSpec((E, TM), lambda b, m: (0, m)),
                  pl.BlockSpec((1, TM), lambda b, m: (0, m))],
        out_specs=pl.BlockSpec((R, TM), lambda b, m: (b, m)),
        compiler_params=pltpu.CompilerParams(
            dimension_semantics=("parallel", "parallel"),
            vmem_limit_bytes=64 * 1024 * 1024),
    )(hidden, move_w_t, move_b)

    return move2d.reshape(B, S, M), ev3.reshape(B, 1)


# -------------------------------------------------------------- parameters ---

def _linear_init(key, out_dim, in_dim):
    k1, k2 = jax.random.split(key)
    bound = 1.0 / math.sqrt(in_dim)
    w = jax.random.uniform(k1, (out_dim, in_dim), jnp.float32, -bound, bound)
    b = jax.random.uniform(k2, (out_dim,), jnp.float32, -bound, bound)
    return w, b


def init_params(key):
    keys = jax.random.split(key, 8 + NUM_LAYERS)
    emb_w, emb_b = _linear_init(keys[0], EMBED_DIM, TOKEN_DIM)
    offset_add = jax.random.normal(keys[1], (NUM_TOKENS, EMBED_DIM), jnp.float32)
    offset_mul = jax.random.normal(keys[2], (NUM_TOKENS, EMBED_DIM), jnp.float32)
    move_w, move_b = _linear_init(keys[3], MOVE_DIM, EMBED_DIM)
    eval_w, eval_b = _linear_init(keys[4], 1, EMBED_DIM)

    layers = []
    for li in range(NUM_LAYERS):
        lk = jax.random.split(keys[5 + li], 4)
        in_proj_w, in_proj_b = _linear_init(lk[0], 3 * EMBED_DIM, EMBED_DIM)
        out_proj_w, out_proj_b = _linear_init(lk[1], EMBED_DIM, EMBED_DIM)
        ffn_w1, ffn_b1 = _linear_init(lk[2], FFN_DIM, EMBED_DIM)
        ffn_w2, ffn_b2 = _linear_init(lk[3], EMBED_DIM, FFN_DIM)
        layers.append(dict(
            in_proj_w=in_proj_w, in_proj_b=in_proj_b,
            out_proj_w=out_proj_w, out_proj_b=out_proj_b,
            ln1_w=jnp.ones((EMBED_DIM,), jnp.float32),
            ln1_b=jnp.zeros((EMBED_DIM,), jnp.float32),
            ffn_w1=ffn_w1, ffn_b1=ffn_b1,
            ffn_w2=ffn_w2, ffn_b2=ffn_b2,
            ln2_w=jnp.ones((EMBED_DIM,), jnp.float32),
            ln2_b=jnp.zeros((EMBED_DIM,), jnp.float32),
        ))
    return dict(emb_w=emb_w, emb_b=emb_b, offset_add=offset_add, offset_mul=offset_mul,
                move_w=move_w, move_b=move_b, eval_w=eval_w, eval_b=eval_b, layers=layers)


# ----------------------------------------------------------- pure-JAX ref ---

def _ref_layer(x, lp):
    B, S, E = x.shape
    qkv = x @ lp["in_proj_w"].T + lp["in_proj_b"]
    q, k, v = jnp.split(qkv, 3, axis=-1)
    q = q.reshape(B, S, NUM_HEADS, HEAD_DIM).transpose(0, 2, 1, 3)
    k = k.reshape(B, S, NUM_HEADS, HEAD_DIM).transpose(0, 2, 1, 3)
    v = v.reshape(B, S, NUM_HEADS, HEAD_DIM).transpose(0, 2, 1, 3)
    s = jnp.einsum("bhqd,bhkd->bhqk", q, k) / math.sqrt(HEAD_DIM)
    p = jax.nn.softmax(s, axis=-1)
    o = jnp.einsum("bhqk,bhkd->bhqd", p, v).transpose(0, 2, 1, 3).reshape(B, S, E)
    attn = o @ lp["out_proj_w"].T + lp["out_proj_b"]

    def ln(z, w, b):
        mu = z.mean(-1, keepdims=True)
        var = ((z - mu) ** 2).mean(-1, keepdims=True)
        return (z - mu) * jax.lax.rsqrt(var + LN_EPS) * w + b

    h1 = ln(x + attn, lp["ln1_w"], lp["ln1_b"])
    ff = jax.nn.relu(h1 @ lp["ffn_w1"].T + lp["ffn_b1"]) @ lp["ffn_w2"].T + lp["ffn_b2"]
    return ln(h1 + ff, lp["ln2_w"], lp["ln2_b"])


def reference_forward(x, params):
    h = x @ params["emb_w"].T + params["emb_b"]
    h = (h + params["offset_add"]) * params["offset_mul"]
    for lp in params["layers"]:
        h = _ref_layer(h, lp)
    move = h @ params["move_w"].T + params["move_b"]
    ev = h.mean(axis=1) @ params["eval_w"].T + params["eval_b"]
    return move, ev


# --------------------------------------------------------------------- main ---

if __name__ == "__main__":
    key = jax.random.PRNGKey(0)
    kx, kp = jax.random.split(key)
    x = jax.random.normal(kx, (BATCH, NUM_TOKENS, TOKEN_DIM), jnp.float32)
    params = init_params(kp)

    fwd = jax.jit(chess_transformer_forward)
    move_logits, eval_score = fwd(x, params)
    jax.block_until_ready((move_logits, eval_score))

    assert move_logits.shape == (BATCH, NUM_TOKENS, MOVE_DIM)
    assert eval_score.shape == (BATCH, 1)

    # Tolerance slightly looser than the f32 version because matmul operands are bf16
    # (accumulation stays f32); LN/softmax/residual math is f32.
    move_ref, eval_ref = reference_forward(x, params)
    assert jnp.allclose(move_logits, move_ref, rtol=2e-2, atol=2e-2), "move_logits mismatch"
    assert jnp.allclose(eval_score, eval_ref, rtol=2e-2, atol=2e-2), "eval_score mismatch"

    print("KERNEL_OK")
</pallas_src>

<mosaic_0001>
module attributes {stable_mosaic.version = 11 : i64} {
  func.func @move_head_kernel(%arg0: i32, %arg1: i32, %arg2: memref<8x32xf32, #tpu.memory_space<vmem>>, %arg3: memref<32x64xbf16, #tpu.memory_space<vmem>>, %arg4: memref<1x64xf32, #tpu.memory_space<vmem>>, %arg5: memref<8x64xf32, #tpu.memory_space<vmem>>) attributes {dimension_semantics = [#tpu.dimension_semantics<parallel>, #tpu.dimension_semantics<parallel>], iteration_bounds = array<i64: 2, 1>, scalar_prefetch = 0 : i64, scratch_operands = 0 : i64, tpu.core_type = #tpu.core_type<tc>, window_params = [{transform_indices = @transform_0, window_bounds = array<i64: 8, 32>}, {transform_indices = @transform_1, window_bounds = array<i64: 32, 64>}, {transform_indices = @transform_2, window_bounds = array<i64: 1, 64>}, {transform_indices = @transform_3, window_bounds = array<i64: 8, 64>}]} {
    %c0 = arith.constant 0 : index
    %c0_0 = arith.constant 0 : index
    %0 = vector.load %arg2[%c0, %c0_0] : memref<8x32xf32, #tpu.memory_space<vmem>>, vector<8x32xf32>
    %1 = arith.truncf %0 : vector<8x32xf32> to vector<8x32xbf16>
    %c0_1 = arith.constant 0 : index
    %c0_2 = arith.constant 0 : index
    %2 = vector.load %arg3[%c0_1, %c0_2] : memref<32x64xbf16, #tpu.memory_space<vmem>>, vector<32x64xbf16>
    %cst = arith.constant dense<0.000000e+00> : vector<8x64xf32>
    %3 = tpu.matmul %1, %2, %cst {dimension_numbers = #tpu.dot_dimension_numbers<[1], [0], [0], [1], [0, 0, 1, 1], [], []>} : vector<8x32xbf16>, vector<32x64xbf16>, vector<8x64xf32> -> vector<8x64xf32>
    %c0_3 = arith.constant 0 : index
    %c0_4 = arith.constant 0 : index
    %4 = vector.load %arg4[%c0_3, %c0_4] : memref<1x64xf32, #tpu.memory_space<vmem>>, vector<1x64xf32>
    %5 = vector.broadcast %4 : vector<1x64xf32> to vector<8x64xf32>
    %6 = arith.addf %3, %5 : vector<8x64xf32>
    %c0_5 = arith.constant 0 : index
    %c0_6 = arith.constant 0 : index
    %7 = vector.load %arg5[%c0_5, %c0_6] : memref<8x64xf32, #tpu.memory_space<vmem>>, vector<8x64xf32>
    tpu.vector_store %arg5[%c0_5, %c0_6], %6 {strides = array<i32>} : memref<8x64xf32, #tpu.memory_space<vmem>>, vector<8x64xf32>,
    return
  }
  func.func @transform_0(%arg0: i32, %arg1: i32) -> (i32, i32) {
    %c0_i32 = arith.constant 0 : i32
    %c0_i32_0 = arith.constant 0 : i32
    return %arg0, %c0_i32 : i32, i32
  }
  func.func @transform_1(%arg0: i32, %arg1: i32) -> (i32, i32) {
    %c0_i32 = arith.constant 0 : i32
    %c0_i32_0 = arith.constant 0 : i32
    return %c0_i32, %arg1 : i32, i32
  }
  func.func @transform_2(%arg0: i32, %arg1: i32) -> (i32, i32) {
    %c0_i32 = arith.constant 0 : i32
    %c0_i32_0 = arith.constant 0 : i32
    return %c0_i32, %arg1 : i32, i32
  }
  func.func @transform_3(%arg0: i32, %arg1: i32) -> (i32, i32) {
    %c0_i32 = arith.constant 0 : i32
    return %arg0, %arg1 : i32, i32
  }
}

module attributes {stable_mosaic.version = 11 : i64} {
  func.func @encoder_kernel(%arg0: i32, %arg1: i32, %arg2: memref<8x16xf32, #tpu.memory_space<vmem>>, %arg3: memref<16x32xbf16, #tpu.memory_space<vmem>>, %arg4: memref<1x32xf32, #tpu.memory_space<vmem>>, %arg5: memref<8x32xf32, #tpu.memory_space<vmem>>, %arg6: memref<8x32xf32, #tpu.memory_space<vmem>>, %arg7: memref<1x8xf32, #tpu.memory_space<vmem>>, %arg8: memref<32x1xf32, #tpu.memory_space<vmem>>, %arg9: memref<1x1xf32, #tpu.memory_space<vmem>>, %arg10: memref<1x32x96xbf16, #tpu.memory_space<vmem>>, %arg11: memref<1x1x96xf32, #tpu.memory_space<vmem>>, %arg12: memref<1x32x32xbf16, #tpu.memory_space<vmem>>, %arg13: memref<1x1x32xf32, #tpu.memory_space<vmem>>, %arg14: memref<1x1x32xf32, #tpu.memory_space<vmem>>, %arg15: memref<1x1x32xf32, #tpu.memory_space<vmem>>, %arg16: memref<1x32x64xbf16, #tpu.memory_space<vmem>>, %arg17: memref<1x1x64xf32, #tpu.memory_space<vmem>>, %arg18: memref<1x64x32xbf16, #tpu.memory_space<vmem>>, %arg19: memref<1x1x32xf32, #tpu.memory_space<vmem>>, %arg20: memref<1x1x32xf32, #tpu.memory_space<vmem>>, %arg21: memref<1x1x32xf32, #tpu.memory_space<vmem>>, %arg22: memref<8x32xf32, #tpu.memory_space<vmem>>, %arg23: memref<1x1x1xf32, #tpu.memory_space<vmem>>, %arg24: memref<8x32xf32, #tpu.memory_space<vmem>>, %arg25: memref<8x32xf32, #tpu.memory_space<vmem>>) attributes {dimension_semantics = [#tpu.dimension_semantics<parallel>, #tpu.dimension_semantics<arbitrary>], iteration_bounds = array<i64: 2, 2>, scalar_prefetch = 0 : i64, scratch_operands = 2 : i64, tpu.core_type = #tpu.core_type<tc>, window_params = [{transform_indices = @transform_0, window_bounds = array<i64: 8, 16>}, {pipeline_mode = #tpu.pipeline_mode<synchronous>, transform_indices = @transform_1, window_bounds = array<i64: 16, 32>}, {pipeline_mode = #tpu.pipeline_mode<synchronous>, transform_indices = @transform_2, window_bounds = array<i64: 1, 32>}, {pipeline_mode = #tpu.pipeline_mode<synchronous>, transform_indices = @transform_3, window_bounds = array<i64: 8, 32>}, {pipeline_mode = #tpu.pipeline_mode<synchronous>, transform_indices = @transform_4, window_bounds = array<i64: 8, 32>}, {pipeline_mode = #tpu.pipeline_mode<synchronous>, transform_indices = @transform_5, window_bounds = array<i64: 1, 8>}, {pipeline_mode = #tpu.pipeline_mode<synchronous>, transform_indices = @transform_6, window_bounds = array<i64: 32, 1>}, {pipeline_mode = #tpu.pipeline_mode<synchronous>, transform_indices = @transform_7, window_bounds = array<i64: 1, 1>}, {transform_indices = @transform_8, window_bounds = array<i64: 1, 32, 96>}, {transform_indices = @transform_9, window_bounds = array<i64: 1, 1, 96>}, {transform_indices = @transform_10, window_bounds = array<i64: 1, 32, 32>}, {transform_indices = @transform_11, window_bounds = array<i64: 1, 1, 32>}, {transform_indices = @transform_12, window_bounds = array<i64: 1, 1, 32>}, {transform_indices = @transform_13, window_bounds = array<i64: 1, 1, 32>}, {transform_indices = @transform_14, window_bounds = array<i64: 1, 32, 64>}, {transform_indices = @transform_15, window_bounds = array<i64: 1, 1, 64>}, {transform_indices = @transform_16, window_bounds = array<i64: 1, 64, 32>}, {transform_indices = @transform_17, window_bounds = array<i64: 1, 1, 32>}, {transform_indices = @transform_18, window_bounds = array<i64: 1, 1, 32>}, {transform_indices = @transform_19, window_bounds = array<i64: 1, 1, 32>}, {transform_indices = @transform_20, window_bounds = array<i64: 8, 32>}, {transform_indices = @transform_21, window_bounds = array<i64: 1, 1, 1>}]} {
    %c0_i32 = arith.constant 0 : i32
    %0 = arith.cmpi eq, %arg1, %c0_i32 : i32
    %1 = arith.extui %0 : i1 to i32
    %c0_i32_0 = arith.constant 0 : i32
    %2 = arith.cmpi ne, %1, %c0_i32_0 : i32
    scf.if %2 {
      %c0_78 = arith.constant 0 : index
      %c0_79 = arith.constant 0 : index
      %162 = vector.load %arg2[%c0_78, %c0_79] : memref<8x16xf32, #tpu.memory_space<vmem>>, vector<8x16xf32>
      %163 = arith.truncf %162 : vector<8x16xf32> to vector<8x16xbf16>
      %c0_80 = arith.constant 0 : index
      %c0_81 = arith.constant 0 : index
      %164 = vector.load %arg3[%c0_80, %c0_81] : memref<16x32xbf16, #tpu.memory_space<vmem>>, vector<16x32xbf16>
      %cst_82 = arith.constant dense<0.000000e+00> : vector<8x32xf32>
      %165 = tpu.matmul %163, %164, %cst_82 {dimension_numbers = #tpu.dot_dimension_numbers<[1], [0], [0], [1], [0, 0, 1, 1], [], []>} : vector<8x16xbf16>, vector<16x32xbf16>, vector<8x32xf32> -> vector<8x32xf32>
      %c0_83 = arith.constant 0 : index
      %c0_84 = arith.constant 0 : index
      %166 = vector.load %arg4[%c0_83, %c0_84] : memref<1x32xf32, #tpu.memory_space<vmem>>, vector<1x32xf32>
      %167 = vector.broadcast %166 : vector<1x32xf32> to vector<8x32xf32>
      %168 = arith.addf %165, %167 : vector<8x32xf32>
      %c0_85 = arith.constant 0 : index
      %c0_86 = arith.constant 0 : index
      %169 = vector.load %arg5[%c0_85, %c0_86] : memref<8x32xf32, #tpu.memory_space<vmem>>, vector<8x32xf32>
      %170 = arith.addf %168, %169 : vector<8x32xf32>
      %c0_87 = arith.constant 0 : index
      %c0_88 = arith.constant 0 : index
      %171 = vector.load %arg6[%c0_87, %c0_88] : memref<8x32xf32, #tpu.memory_space<vmem>>, vector<8x32xf32>
      %172 = arith.mulf %170, %171 : vector<8x32xf32>
      %c0_89 = arith.constant 0 : index
      %c0_90 = arith.constant 0 : index
      %173 = vector.load %arg24[%c0_89, %c0_90] : memref<8x32xf32, #tpu.memory_space<vmem>>, vector<8x32xf32>
      tpu.vector_store %arg24[%c0_89, %c0_90], %172 {strides = array<i32>} : memref<8x32xf32, #tpu.memory_space<vmem>>, vector<8x32xf32>,
    } else {
    }
    %c0 = arith.constant 0 : index
    %c0_1 = arith.constant 0 : index
    %3 = vector.load %arg24[%c0, %c0_1] : memref<8x32xf32, #tpu.memory_space<vmem>>, vector<8x32xf32>
    %4 = arith.truncf %3 : vector<8x32xf32> to vector<8x32xbf16>
    %c0_2 = arith.constant 0 : index
    %c0_3 = arith.constant 0 : index
    %c0_4 = arith.constant 0 : index
    %5 = vector.load %arg10[%c0_2, %c0_3, %c0_4] : memref<1x32x96xbf16, #tpu.memory_space<vmem>>, vector<1x32x96xbf16>
    %6 = vector.shape_cast %5 : vector<1x32x96xbf16> to vector<32x96xbf16>
    %cst = arith.constant dense<0.000000e+00> : vector<8x96xf32>
    %7 = tpu.matmul %4, %6, %cst {dimension_numbers = #tpu.dot_dimension_numbers<[1], [0], [0], [1], [0, 0, 1, 1], [], []>} : vector<8x32xbf16>, vector<32x96xbf16>, vector<8x96xf32> -> vector<8x96xf32>
    %c0_5 = arith.constant 0 : index
    %c0_6 = arith.constant 0 : index
    %c0_7 = arith.constant 0 : index
    %8 = vector.load %arg11[%c0_5, %c0_6, %c0_7] : memref<1x1x96xf32, #tpu.memory_space<vmem>>, vector<1x1x96xf32>
    %9 = vector.shape_cast %8 : vector<1x1x96xf32> to vector<1x96xf32>
    %10 = vector.broadcast %9 : vector<1x96xf32> to vector<8x96xf32>
    %11 = arith.addf %7, %10 : vector<8x96xf32>
    %12 = arith.truncf %11 : vector<8x96xf32> to vector<8x96xbf16>
    %13 = vector.extract_strided_slice %12 {offsets = [0, 0], sizes = [8, 8], strides = [1, 1]} : vector<8x96xbf16> to vector<8x8xbf16>
    %14 = vector.extract_strided_slice %12 {offsets = [0, 32], sizes = [8, 8], strides = [1, 1]} : vector<8x96xbf16> to vector<8x8xbf16>
    %15 = vector.extract_strided_slice %12 {offsets = [0, 64], sizes = [8, 8], strides = [1, 1]} : vector<8x96xbf16> to vector<8x8xbf16>
    %cst_8 = arith.constant dense<0.000000e+00> : vector<8x8xf32>
    %16 = tpu.matmul %13, %14, %cst_8 {dimension_numbers = #tpu.dot_dimension_numbers<[1], [1], [0], [0], [0, 0, 1, 0], [], []>} : vector<8x8xbf16>, vector<8x8xbf16>, vector<8x8xf32> -> vector<8x8xf32>
    %cst_9 = arith.constant dense<0xFF800000> : vector<8xf32>
    %17 = vector.multi_reduction <maximumf>, %16, %cst_9 [1] : vector<8x8xf32> to vector<8xf32>
    %18 = vector.shape_cast %17 : vector<8xf32> to vector<8x1xf32>
    %19 = vector.broadcast %18 : vector<8x1xf32> to vector<8x8xf32>
    %20 = arith.subf %16, %19 : vector<8x8xf32>
    %21 = math.exp %20 : vector<8x8xf32>
    %cst_10 = arith.constant dense<0.000000e+00> : vector<8xf32>
    %22 = vector.multi_reduction <add>, %21, %cst_10 [1] : vector<8x8xf32> to vector<8xf32>
    %23 = vector.shape_cast %22 : vector<8xf32> to vector<8x1xf32>
    %24 = tpu.reciprocal %23 {approx = true} : vector<8x1xf32> -> vector<8x1xf32>
    %25 = vector.broadcast %24 : vector<8x1xf32> to vector<8x8xf32>
    %26 = arith.mulf %21, %25 : vector<8x8xf32>
    %27 = arith.truncf %26 : vector<8x8xf32> to vector<8x8xbf16>
    %cst_11 = arith.constant dense<0.000000e+00> : vector<8x8xf32>
    %28 = tpu.matmul %27, %15, %cst_11 {dimension_numbers = #tpu.dot_dimension_numbers<[1], [0], [0], [1], [0, 0, 1, 1], [], []>} : vector<8x8xbf16>, vector<8x8xbf16>, vector<8x8xf32> -> vector<8x8xf32>
    %c0_12 = arith.constant 0 : index
    %c0_13 = arith.constant 0 : index
    %29 = vector.load %arg25[%c0_12, %c0_13] : memref<8x32xf32, #tpu.memory_space<vmem>>, vector<8x8xf32>
    tpu.vector_store %arg25[%c0_12, %c0_13], %28 {strides = array<i32>} : memref<8x32xf32, #tpu.memory_space<vmem>>, vector<8x8xf32>,
    %30 = vector.extract_strided_slice %12 {offsets = [0, 8], sizes = [8, 8], strides = [1, 1]} : vector<8x96xbf16> to vector<8x8xbf16>
    %31 = vector.extract_strided_slice %12 {offsets = [0, 40], sizes = [8, 8], strides = [1, 1]} : vector<8x96xbf16> to vector<8x8xbf16>
    %32 = vector.extract_strided_slice %12 {offsets = [0, 72], sizes = [8, 8], strides = [1, 1]} : vector<8x96xbf16> to vector<8x8xbf16>
    %cst_14 = arith.constant dense<0.000000e+00> : vector<8x8xf32>
    %33 = tpu.matmul %30, %31, %cst_14 {dimension_numbers = #tpu.dot_dimension_numbers<[1], [1], [0], [0], [0, 0, 1, 0], [], []>} : vector<8x8xbf16>, vector<8x8xbf16>, vector<8x8xf32> -> vector<8x8xf32>
    %cst_15 = arith.constant dense<0xFF800000> : vector<8xf32>
    %34 = vector.multi_reduction <maximumf>, %33, %cst_15 [1] : vector<8x8xf32> to vector<8xf32>
    %35 = vector.shape_cast %34 : vector<8xf32> to vector<8x1xf32>
    %36 = vector.broadcast %35 : vector<8x1xf32> to vector<8x8xf32>
    %37 = arith.subf %33, %36 : vector<8x8xf32>
    %38 = math.exp %37 : vector<8x8xf32>
    %cst_16 = arith.constant dense<0.000000e+00> : vector<8xf32>
    %39 = vector.multi_reduction <add>, %38, %cst_16 [1] : vector<8x8xf32> to vector<8xf32>
    %40 = vector.shape_cast %39 : vector<8xf32> to vector<8x1xf32>
    %41 = tpu.reciprocal %40 {approx = true} : vector<8x1xf32> -> vector<8x1xf32>
    %42 = vector.broadcast %41 : vector<8x1xf32> to vector<8x8xf32>
    %43 = arith.mulf %38, %42 : vector<8x8xf32>
    %44 = arith.truncf %43 : vector<8x8xf32> to vector<8x8xbf16>
    %cst_17 = arith.constant dense<0.000000e+00> : vector<8x8xf32>
    %45 = tpu.matmul %44, %32, %cst_17 {dimension_numbers = #tpu.dot_dimension_numbers<[1], [0], [0], [1], [0, 0, 1, 1], [], []>} : vector<8x8xbf16>, vector<8x8xbf16>, vector<8x8xf32> -> vector<8x8xf32>
    %c0_18 = arith.constant 0 : index
    %c8 = arith.constant 8 : index
    %46 = vector.load %arg25[%c0_18, %c8] : memref<8x32xf32, #tpu.memory_space<vmem>>, vector<8x8xf32>
    tpu.vector_store %arg25[%c0_18, %c8], %45 {strides = array<i32>} : memref<8x32xf32, #tpu.memory_space<vmem>>, vector<8x8xf32>,
    %47 = vector.extract_strided_slice %12 {offsets = [0, 16], sizes = [8, 8], strides = [1, 1]} : vector<8x96xbf16> to vector<8x8xbf16>
    %48 = vector.extract_strided_slice %12 {offsets = [0, 48], sizes = [8, 8], strides = [1, 1]} : vector<8x96xbf16> to vector<8x8xbf16>
    %49 = vector.extract_strided_slice %12 {offsets = [0, 80], sizes = [8, 8], strides = [1, 1]} : vector<8x96xbf16> to vector<8x8xbf16>
    %cst_19 = arith.constant dense<0.000000e+00> : vector<8x8xf32>
    %50 = tpu.matmul %47, %48, %cst_19 {dimension_numbers = #tpu.dot_dimension_numbers<[1], [1], [0], [0], [0, 0, 1, 0], [], []>} : vector<8x8xbf16>, vector<8x8xbf16>, vector<8x8xf32> -> vector<8x8xf32>
    %cst_20 = arith.constant dense<0xFF800000> : vector<8xf32>
    %51 = vector.multi_reduction <maximumf>, %50, %cst_20 [1] : vector<8x8xf32> to vector<8xf32>
    %52 = vector.shape_cast %51 : vector<8xf32> to vector<8x1xf32>
    %53 = vector.broadcast %52 : vector<8x1xf32> to vector<8x8xf32>
    %54 = arith.subf %50, %53 : vector<8x8xf32>
    %55 = math.exp %54 : vector<8x8xf32>
    %cst_21 = arith.constant dense<0.000000e+00> : vector<8xf32>
    %56 = vector.multi_reduction <add>, %55, %cst_21 [1] : vector<8x8xf32> to vector<8xf32>
    %57 = vector.shape_cast %56 : vector<8xf32> to vector<8x1xf32>
    %58 = tpu.reciprocal %57 {approx = true} : vector<8x1xf32> -> vector<8x1xf32>
    %59 = vector.broadcast %58 : vector<8x1xf32> to vector<8x8xf32>
    %60 = arith.mulf %55, %59 : vector<8x8xf32>
    %61 = arith.truncf %60 : vector<8x8xf32> to vector<8x8xbf16>
    %cst_22 = arith.constant dense<0.000000e+00> : vector<8x8xf32>
    %62 = tpu.matmul %61, %49, %cst_22 {dimension_numbers = #tpu.dot_dimension_numbers<[1], [0], [0], [1], [0, 0, 1, 1], [], []>} : vector<8x8xbf16>, vector<8x8xbf16>, vector<8x8xf32> -> vector<8x8xf32>
    %c0_23 = arith.constant 0 : index
    %c16 = arith.constant 16 : index
    %63 = vector.load %arg25[%c0_23, %c16] : memref<8x32xf32, #tpu.memory_space<vmem>>, vector<8x8xf32>
    tpu.vector_store %arg25[%c0_23, %c16], %62 {strides = array<i32>} : memref<8x32xf32, #tpu.memory_space<vmem>>, vector<8x8xf32>,
    %64 = vector.extract_strided_slice %12 {offsets = [0, 24], sizes = [8, 8], strides = [1, 1]} : vector<8x96xbf16> to vector<8x8xbf16>
    %65 = vector.extract_strided_slice %12 {offsets = [0, 56], sizes = [8, 8], strides = [1, 1]} : vector<8x96xbf16> to vector<8x8xbf16>
    %66 = vector.extract_strided_slice %12 {offsets = [0, 88], sizes = [8, 8], strides = [1, 1]} : vector<8x96xbf16> to vector<8x8xbf16>
    %cst_24 = arith.constant dense<0.000000e+00> : vector<8x8xf32>
    %67 = tpu.matmul %64, %65, %cst_24 {dimension_numbers = #tpu.dot_dimension_numbers<[1], [1], [0], [0], [0, 0, 1, 0], [], []>} : vector<8x8xbf16>, vector<8x8xbf16>, vector<8x8xf32> -> vector<8x8xf32>
    %cst_25 = arith.constant dense<0xFF800000> : vector<8xf32>
    %68 = vector.multi_reduction <maximumf>, %67, %cst_25 [1] : vector<8x8xf32> to vector<8xf32>
    %69 = vector.shape_cast %68 : vector<8xf32> to vector<8x1xf32>
    %70 = vector.broadcast %69 : vector<8x1xf32> to vector<8x8xf32>
    %71 = arith.subf %67, %70 : vector<8x8xf32>
    %72 = math.exp %71 : vector<8x8xf32>
    %cst_26 = arith.constant dense<0.000000e+00> : vector<8xf32>
    %73 = vector.multi_reduction <add>, %72, %cst_26 [1] : vector<8x8xf32> to vector<8xf32>
    %74 = vector.shape_cast %73 : vector<8xf32> to vector<8x1xf32>
    %75 = tpu.reciprocal %74 {approx = true} : vector<8x1xf32> -> vector<8x1xf32>
    %76 = vector.broadcast %75 : vector<8x1xf32> to vector<8x8xf32>
    %77 = arith.mulf %72, %76 : vector<8x8xf32>
    %78 = arith.truncf %77 : vector<8x8xf32> to vector<8x8xbf16>
    %cst_27 = arith.constant dense<0.000000e+00> : vector<8x8xf32>
    %79 = tpu.matmul %78, %66, %cst_27 {dimension_numbers = #tpu.dot_dimension_numbers<[1], [0], [0], [1], [0, 0, 1, 1], [], []>} : vector<8x8xbf16>, vector<8x8xbf16>, vector<8x8xf32> -> vector<8x8xf32>
    %c0_28 = arith.constant 0 : index
    %c24 = arith.constant 24 : index
    %80 = vector.load %arg25[%c0_28, %c24] : memref<8x32xf32, #tpu.memory_space<vmem>>, vector<8x8xf32>
    tpu.vector_store %arg25[%c0_28, %c24], %79 {strides = array<i32>} : memref<8x32xf32, #tpu.memory_space<vmem>>, vector<8x8xf32>,
    %c0_29 = arith.constant 0 : index
    %c0_30 = arith.constant 0 : index
    %81 = vector.load %arg25[%c0_29, %c0_30] : memref<8x32xf32, #tpu.memory_space<vmem>>, vector<8x32xf32>
    %82 = arith.truncf %81 : vector<8x32xf32> to vector<8x32xbf16>
    %c0_31 = arith.constant 0 : index
    %c0_32 = arith.constant 0 : index
    %c0_33 = arith.constant 0 : index
    %83 = vector.load %arg12[%c0_31, %c0_32, %c0_33] : memref<1x32x32xbf16, #tpu.memory_space<vmem>>, vector<1x32x32xbf16>
    %84 = vector.shape_cast %83 : vector<1x32x32xbf16> to vector<32x32xbf16>
    %cst_34 = arith.constant dense<0.000000e+00> : vector<8x32xf32>
    %85 = tpu.matmul %82, %84, %cst_34 {dimension_numbers = #tpu.dot_dimension_numbers<[1], [0], [0], [1], [0, 0, 1, 1], [], []>} : vector<8x32xbf16>, vector<32x32xbf16>, vector<8x32xf32> -> vector<8x32xf32>
    %c0_35 = arith.constant 0 : index
    %c0_36 = arith.constant 0 : index
    %c0_37 = arith.constant 0 : index
    %86 = vector.load %arg13[%c0_35, %c0_36, %c0_37] : memref<1x1x32xf32, #tpu.memory_space<vmem>>, vector<1x1x32xf32>
    %87 = vector.shape_cast %86 : vector<1x1x32xf32> to vector<1x32xf32>
    %88 = vector.broadcast %87 : vector<1x32xf32> to vector<8x32xf32>
    %89 = arith.addf %85, %88 : vector<8x32xf32>
    %90 = arith.addf %3, %89 : vector<8x32xf32>
    %c0_38 = arith.constant 0 : index
    %c0_39 = arith.constant 0 : index
    %c0_40 = arith.constant 0 : index
    %91 = vector.load %arg14[%c0_38, %c0_39, %c0_40] : memref<1x1x32xf32, #tpu.memory_space<vmem>>, vector<1x1x32xf32>
    %92 = vector.shape_cast %91 : vector<1x1x32xf32> to vector<1x32xf32>
    %c0_41 = arith.constant 0 : index
    %c0_42 = arith.constant 0 : index
    %c0_43 = arith.constant 0 : index
    %93 = vector.load %arg15[%c0_41, %c0_42, %c0_43] : memref<1x1x32xf32, #tpu.memory_space<vmem>>, vector<1x1x32xf32>
    %94 = vector.shape_cast %93 : vector<1x1x32xf32> to vector<1x32xf32>
    %cst_44 = arith.constant dense<0.000000e+00> : vector<8xf32>
    %95 = vector.multi_reduction <add>, %90, %cst_44 [1] : vector<8x32xf32> to vector<8xf32>
    %96 = vector.shape_cast %95 : vector<8xf32> to vector<8x1xf32>
    %cst_45 = arith.constant 3.200000e+01 : f32
    %97 = vector.broadcast %cst_45 : f32 to vector<8x1xf32>
    %98 = arith.divf %96, %97 : vector<8x1xf32>
    %99 = vector.broadcast %98 : vector<8x1xf32> to vector<8x32xf32>
    %100 = arith.subf %90, %99 : vector<8x32xf32>
    %101 = arith.mulf %100, %100 : vector<8x32xf32>
    %cst_46 = arith.constant dense<0.000000e+00> : vector<8xf32>
    %102 = vector.multi_reduction <add>, %101, %cst_46 [1] : vector<8x32xf32> to vector<8xf32>
    %103 = vector.shape_cast %102 : vector<8xf32> to vector<8x1xf32>
    %cst_47 = arith.constant 3.200000e+01 : f32
    %104 = vector.broadcast %cst_47 : f32 to vector<8x1xf32>
    %105 = arith.divf %103, %104 : vector<8x1xf32>
    %cst_48 = arith.constant 9.99999974E-6 : f32
    %106 = vector.broadcast %cst_48 : f32 to vector<8x1xf32>
    %107 = arith.addf %105, %106 : vector<8x1xf32>
    %108 = math.rsqrt %107 : vector<8x1xf32>
    %109 = vector.broadcast %108 : vector<8x1xf32> to vector<8x32xf32>
    %110 = arith.mulf %100, %109 : vector<8x32xf32>
    %111 = vector.broadcast %92 : vector<1x32xf32> to vector<8x32xf32>
    %112 = arith.mulf %110, %111 : vector<8x32xf32>
    %113 = vector.broadcast %94 : vector<1x32xf32> to vector<8x32xf32>
    %114 = arith.addf %112, %113 : vector<8x32xf32>
    %115 = arith.truncf %114 : vector<8x32xf32> to vector<8x32xbf16>
    %c0_49 = arith.constant 0 : index
    %c0_50 = arith.constant 0 : index
    %c0_51 = arith.constant 0 : index
    %116 = vector.load %arg16[%c0_49, %c0_50, %c0_51] : memref<1x32x64xbf16, #tpu.memory_space<vmem>>, vector<1x32x64xbf16>
    %117 = vector.shape_cast %116 : vector<1x32x64xbf16> to vector<32x64xbf16>
    %cst_52 = arith.constant dense<0.000000e+00> : vector<8x64xf32>
    %118 = tpu.matmul %115, %117, %cst_52 {dimension_numbers = #tpu.dot_dimension_numbers<[1], [0], [0], [1], [0, 0, 1, 1], [], []>} : vector<8x32xbf16>, vector<32x64xbf16>, vector<8x64xf32> -> vector<8x64xf32>
    %c0_53 = arith.constant 0 : index
    %c0_54 = arith.constant 0 : index
    %c0_55 = arith.constant 0 : index
    %119 = vector.load %arg17[%c0_53, %c0_54, %c0_55] : memref<1x1x64xf32, #tpu.memory_space<vmem>>, vector<1x1x64xf32>
    %120 = vector.shape_cast %119 : vector<1x1x64xf32> to vector<1x64xf32>
    %121 = vector.broadcast %120 : vector<1x64xf32> to vector<8x64xf32>
    %122 = arith.addf %118, %121 : vector<8x64xf32>
    %cst_56 = arith.constant 0.000000e+00 : f32
    %123 = vector.broadcast %cst_56 : f32 to vector<8x64xf32>
    %124 = arith.maximumf %122, %123 : vector<8x64xf32>
    %125 = arith.truncf %124 : vector<8x64xf32> to vector<8x64xbf16>
    %c0_57 = arith.constant 0 : index
    %c0_58 = arith.constant 0 : index
    %c0_59 = arith.constant 0 : index
    %126 = vector.load %arg18[%c0_57, %c0_58, %c0_59] : memref<1x64x32xbf16, #tpu.memory_space<vmem>>, vector<1x64x32xbf16>
    %127 = vector.shape_cast %126 : vector<1x64x32xbf16> to vector<64x32xbf16>
    %cst_60 = arith.constant dense<0.000000e+00> : vector<8x32xf32>
    %128 = tpu.matmul %125, %127, %cst_60 {dimension_numbers = #tpu.dot_dimension_numbers<[1], [0], [0], [1], [0, 0, 1, 1], [], []>} : vector<8x64xbf16>, vector<64x32xbf16>, vector<8x32xf32> -> vector<8x32xf32>
    %c0_61 = arith.constant 0 : index
    %c0_62 = arith.constant 0 : index
    %c0_63 = arith.constant 0 : index
    %129 = vector.load %arg19[%c0_61, %c0_62, %c0_63] : memref<1x1x32xf32, #tpu.memory_space<vmem>>, vector<1x1x32xf32>
    %130 = vector.shape_cast %129 : vector<1x1x32xf32> to vector<1x32xf32>
    %131 = vector.broadcast %130 : vector<1x32xf32> to vector<8x32xf32>
    %132 = arith.addf %128, %131 : vector<8x32xf32>
    %133 = arith.addf %114, %132 : vector<8x32xf32>
    %c0_64 = arith.constant 0 : index
    %c0_65 = arith.constant 0 : index
    %c0_66 = arith.constant 0 : index
    %134 = vector.load %arg20[%c0_64, %c0_65, %c0_66] : memref<1x1x32xf32, #tpu.memory_space<vmem>>, vector<1x1x32xf32>
    %135 = vector.shape_cast %134 : vector<1x1x32xf32> to vector<1x32xf32>
    %c0_67 = arith.constant 0 : index
    %c0_68 = arith.constant 0 : index
    %c0_69 = arith.constant 0 : index
    %136 = vector.load %arg21[%c0_67, %c0_68, %c0_69] : memref<1x1x32xf32, #tpu.memory_space<vmem>>, vector<1x1x32xf32>
    %137 = vector.shape_cast %136 : vector<1x1x32xf32> to vector<1x32xf32>
    %cst_70 = arith.constant dense<0.000000e+00> : vector<8xf32>
    %138 = vector.multi_reduction <add>, %133, %cst_70 [1] : vector<8x32xf32> to vector<8xf32>
    %139 = vector.shape_cast %138 : vector<8xf32> to vector<8x1xf32>
    %cst_71 = arith.constant 3.200000e+01 : f32
    %140 = vector.broadcast %cst_71 : f32 to vector<8x1xf32>
    %141 = arith.divf %139, %140 : vector<8x1xf32>
    %142 = vector.broadcast %141 : vector<8x1xf32> to vector<8x32xf32>
    %143 = arith.subf %133, %142 : vector<8x32xf32>
    %144 = arith.mulf %143, %143 : vector<8x32xf32>
    %cst_72 = arith.constant dense<0.000000e+00> : vector<8xf32>
    %145 = vector.multi_reduction <add>, %144, %cst_72 [1] : vector<8x32xf32> to vector<8xf32>
    %146 = vector.shape_cast %145 : vector<8xf32> to vector<8x1xf32>
    %cst_73 = arith.constant 3.200000e+01 : f32
    %147 = vector.broadcast %cst_73 : f32 to vector<8x1xf32>
    %148 = arith.divf %146, %147 : vector<8x1xf32>
    %cst_74 = arith.constant 9.99999974E-6 : f32
    %149 = vector.broadcast %cst_74 : f32 to vector<8x1xf32>
    %150 = arith.addf %148, %149 : vector<8x1xf32>
    %151 = math.rsqrt %150 : vector<8x1xf32>
    %152 = vector.broadcast %151 : vector<8x1xf32> to vector<8x32xf32>
    %153 = arith.mulf %143, %152 : vector<8x32xf32>
    %154 = vector.broadcast %135 : vector<1x32xf32> to vector<8x32xf32>
    %155 = arith.mulf %153, %154 : vector<8x32xf32>
    %156 = vector.broadcast %137 : vector<1x32xf32> to vector<8x32xf32>
    %157 = arith.addf %155, %156 : vector<8x32xf32>
    %c0_75 = arith.constant 0 : index
    %c0_76 = arith.constant 0 : index
    %158 = vector.load %arg24[%c0_75, %c0_76] : memref<8x32xf32, #tpu.memory_space<vmem>>, vector<8x32xf32>
    tpu.vector_store %arg24[%c0_75, %c0_76], %157 {strides = array<i32>} : memref<8x32xf32, #tpu.memory_space<vmem>>, vector<8x32xf32>,
    %c1_i32 = arith.constant 1 : i32
    %159 = arith.cmpi eq, %arg1, %c1_i32 : i32
    %160 = arith.extui %159 : i1 to i32
    %c0_i32_77 = arith.constant 0 : i32
    %161 = arith.cmpi ne, %160, %c0_i32_77 : i32
    scf.if %161 {
      %c0_78 = arith.constant 0 : index
      %c0_79 = arith.constant 0 : index
      %162 = vector.load %arg22[%c0_78, %c0_79] : memref<8x32xf32, #tpu.memory_space<vmem>>, vector<8x32xf32>
      tpu.vector_store %arg22[%c0_78, %c0_79], %157 {strides = array<i32>} : memref<8x32xf32, #tpu.memory_space<vmem>>, vector<8x32xf32>,
      %c0_80 = arith.constant 0 : index
      %c0_81 = arith.constant 0 : index
      %163 = vector.load %arg7[%c0_80, %c0_81] : memref<1x8xf32, #tpu.memory_space<vmem>>, vector<1x8xf32>
      %cst_82 = arith.constant dense<0.000000e+00> : vector<1x32xf32>
      %164 = tpu.matmul %163, %157, %cst_82 {dimension_numbers = #tpu.dot_dimension_numbers<[1], [0], [0], [1], [0, 0, 1, 1], [], []>} : vector<1x8xf32>, vector<8x32xf32>, vector<1x32xf32> -> vector<1x32xf32>
      %c0_83 = arith.constant 0 : index
      %c0_84 = arith.constant 0 : index
      %165 = vector.load %arg8[%c0_83, %c0_84] : memref<32x1xf32, #tpu.memory_space<vmem>>, vector<32x1xf32>
      %cst_85 = arith.constant dense<0.000000e+00> : vector<1x1xf32>
      %166 = tpu.matmul %164, %165, %cst_85 {dimension_numbers = #tpu.dot_dimension_numbers<[1], [0], [0], [1], [0, 0, 1, 1], [], []>} : vector<1x32xf32>, vector<32x1xf32>, vector<1x1xf32> -> vector<1x1xf32>
      %c0_86 = arith.constant 0 : index
      %c0_87 = arith.constant 0 : index
      %167 = vector.load %arg9[%c0_86, %c0_87] : memref<1x1xf32, #tpu.memory_space<vmem>>, vector<1x1xf32>
      %168 = arith.addf %166, %167 : vector<1x1xf32>
      %169 = vector.shape_cast %168 : vector<1x1xf32> to vector<1x1x1xf32>
      %c0_88 = arith.constant 0 : index
      %c0_89 = arith.constant 0 : index
      %c0_90 = arith.constant 0 : index
      %170 = vector.load %arg23[%c0_88, %c0_89, %c0_90] : memref<1x1x1xf32, #tpu.memory_space<vmem>>, vector<1x1x1xf32>
      tpu.vector_store %arg23[%c0_88, %c0_89, %c0_90], %169 {strides = array<i32>} : memref<1x1x1xf32, #tpu.memory_space<vmem>>, vector<1x1x1xf32>,
    } else {
    }
    return
  }
  func.func @transform_0(%arg0: i32, %arg1: i32) -> (i32, i32) {
    %c0_i32 = arith.constant 0 : i32
    %c0_i32_0 = arith.constant 0 : i32
    return %arg0, %c0_i32 : i32, i32
  }
  func.func @transform_1(%arg0: i32, %arg1: i32) -> (i32, i32) {
    %c0_i32 = arith.constant 0 : i32
    %c0_i32_0 = arith.constant 0 : i32
    %c0_i32_1 = arith.constant 0 : i32
    return %c0_i32, %c0_i32_0 : i32, i32
  }
  func.func @transform_2(%arg0: i32, %arg1: i32) -> (i32, i32) {
    %c0_i32 = arith.constant 0 : i32
    %c0_i32_0 = arith.constant 0 : i32
    %c0_i32_1 = arith.constant 0 : i32
    return %c0_i32, %c0_i32_0 : i32, i32
  }
  func.func @transform_3(%arg0: i32, %arg1: i32) -> (i32, i32) {
    %c0_i32 = arith.constant 0 : i32
    %c0_i32_0 = arith.constant 0 : i32
    %c0_i32_1 = arith.constant 0 : i32
    return %c0_i32, %c0_i32_0 : i32, i32
  }
  func.func @transform_4(%arg0: i32, %arg1: i32) -> (i32, i32) {
    %c0_i32 = arith.constant 0 : i32
    %c0_i32_0 = arith.constant 0 : i32
    %c0_i32_1 = arith.constant 0 : i32
    return %c0_i32, %c0_i32_0 : i32, i32
  }
  func.func @transform_5(%arg0: i32, %arg1: i32) -> (i32, i32) {
    %c0_i32 = arith.constant 0 : i32
    %c0_i32_0 = arith.constant 0 : i32
    %c0_i32_1 = arith.constant 0 : i32
    return %c0_i32, %c0_i32_0 : i32, i32
  }
  func.func @transform_6(%arg0: i32, %arg1: i32) -> (i32, i32) {
    %c0_i32 = arith.constant 0 : i32
    %c0_i32_0 = arith.constant 0 : i32
    %c0_i32_1 = arith.constant 0 : i32
    return %c0_i32, %c0_i32_0 : i32, i32
  }
  func.func @transform_7(%arg0: i32, %arg1: i32) -> (i32, i32) {
    %c0_i32 = arith.constant 0 : i32
    %c0_i32_0 = arith.constant 0 : i32
    %c0_i32_1 = arith.constant 0 : i32
    return %c0_i32, %c0_i32_0 : i32, i32
  }
  func.func @transform_8(%arg0: i32, %arg1: i32) -> (i32, i32, i32) {
    %c0_i32 = arith.constant 0 : i32
    %c0_i32_0 = arith.constant 0 : i32
    %c0_i32_1 = arith.constant 0 : i32
    return %arg1, %c0_i32, %c0_i32_0 : i32, i32, i32
  }
  func.func @transform_9(%arg0: i32, %arg1: i32) -> (i32, i32, i32) {
    %c0_i32 = arith.constant 0 : i32
    %c0_i32_0 = arith.constant 0 : i32
    %c0_i32_1 = arith.constant 0 : i32
    return %arg1, %c0_i32, %c0_i32_0 : i32, i32, i32
  }
  func.func @transform_10(%arg0: i32, %arg1: i32) -> (i32, i32, i32) {
    %c0_i32 = arith.constant 0 : i32
    %c0_i32_0 = arith.constant 0 : i32
    %c0_i32_1 = arith.constant 0 : i32
    return %arg1, %c0_i32, %c0_i32_0 : i32, i32, i32
  }
  func.func @transform_11(%arg0: i32, %arg1: i32) -> (i32, i32, i32) {
    %c0_i32 = arith.constant 0 : i32
    %c0_i32_0 = arith.constant 0 : i32
    %c0_i32_1 = arith.constant 0 : i32
    return %arg1, %c0_i32, %c0_i32_0 : i32, i32, i32
  }
  func.func @transform_12(%arg0: i32, %arg1: i32) -> (i32, i32, i32) {
    %c0_i32 = arith.constant 0 : i32
    %c0_i32_0 = arith.constant 0 : i32
    %c0_i32_1 = arith.constant 0 : i32
    return %arg1, %c0_i32, %c0_i32_0 : i32, i32, i32
  }
  func.func @transform_13(%arg0: i32, %arg1: i32) -> (i32, i32, i32) {
    %c0_i32 = arith.constant 0 : i32
    %c0_i32_0 = arith.constant 0 : i32
    %c0_i32_1 = arith.constant 0 : i32
    return %arg1, %c0_i32, %c0_i32_0 : i32, i32, i32
  }
  func.func @transform_14(%arg0: i32, %arg1: i32) -> (i32, i32, i32) {
    %c0_i32 = arith.constant 0 : i32
    %c0_i32_0 = arith.constant 0 : i32
    %c0_i32_1 = arith.constant 0 : i32
    return %arg1, %c0_i32, %c0_i32_0 : i32, i32, i32
  }
  func.func @transform_15(%arg0: i32, %arg1: i32) -> (i32, i32, i32) {
    %c0_i32 = arith.constant 0 : i32
    %c0_i32_0 = arith.constant 0 : i32
    %c0_i32_1 = arith.constant 0 : i32
    return %arg1, %c0_i32, %c0_i32_0 : i32, i32, i32
  }
  func.func @transform_16(%arg0: i32, %arg1: i32) -> (i32, i32, i32) {
    %c0_i32 = arith.constant 0 : i32
    %c0_i32_0 = arith.constant 0 : i32
    %c0_i32_1 = arith.constant 0 : i32
    return %arg1, %c0_i32, %c0_i32_0 : i32, i32, i32
  }
  func.func @transform_17(%arg0: i32, %arg1: i32) -> (i32, i32, i32) {
    %c0_i32 = arith.constant 0 : i32
    %c0_i32_0 = arith.constant 0 : i32
    %c0_i32_1 = arith.constant 0 : i32
    return %arg1, %c0_i32, %c0_i32_0 : i32, i32, i32
  }
  func.func @transform_18(%arg0: i32, %arg1: i32) -> (i32, i32, i32) {
    %c0_i32 = arith.constant 0 : i32
    %c0_i32_0 = arith.constant 0 : i32
    %c0_i32_1 = arith.constant 0 : i32
    return %arg1, %c0_i32, %c0_i32_0 : i32, i32, i32
  }
  func.func @transform_19(%arg0: i32, %arg1: i32) -> (i32, i32, i32) {
    %c0_i32 = arith.constant 0 : i32
    %c0_i32_0 = arith.constant 0 : i32
    %c0_i32_1 = arith.constant 0 : i32
    return %arg1, %c0_i32, %c0_i32_0 : i32, i32, i32
  }
  func.func @transform_20(%arg0: i32, %arg1: i32) -> (i32, i32) {
    %c0_i32 = arith.constant 0 : i32
    %c0_i32_0 = arith.constant 0 : i32
    return %arg0, %c0_i32 : i32, i32
  }
  func.func @transform_21(%arg0: i32, %arg1: i32) -> (i32, i32, i32) {
    %c0_i32 = arith.constant 0 : i32
    %c0_i32_0 = arith.constant 0 : i32
    %c0_i32_1 = arith.constant 0 : i32
    return %arg0, %c0_i32, %c0_i32_0 : i32, i32, i32
  }
}

</mosaic_0001>

<llo_original>
// kernel: chess_transformer_forward.3
$region0: #{chess_transformer_forward.3}
  #allocation0 [shape = 'u32[]', space=smem, size = 0x4, offset = 0x4, fixed_abs, tag = 'smem constant byte address 0x4 - core index']
  #allocation1 [shape = 'u32[144,128]{1,0:T(1,128)}', space=vmem, size = 0x12000, scoped, tag = 'internal scratch']
  %s0 = inlined_call_operand.hbm [shape: f32[16,32], index: 0, kind: input, shape index: {}]
  %s1 = inlined_call_operand.hbm [shape: bf16[32,64], index: 1, kind: input, shape index: {}]
  %s2 = inlined_call_operand.hbm [shape: f32[1,64], index: 2, kind: input, shape index: {}]
  %s3 = inlined_call_operand.hbm [shape: f32[16,64], index: 3, kind: output, shape index: {}]
  %s4 = sld [smem:[#allocation0]]
  $region57: #{chess_transformer_forward.3} parent=0
    _
  %s6 = ssub.s32 1, %s4
  %s7 = scalar_select 0, %s6, %s4
  $region1: #{chess_transformer_forward.3} parent=0
    #allocation2 [shape = 'u8[8192]{0}', space=vmem, size = 0x2000, scoped, tag = 'input window, operand 0']
    #allocation3 [shape = 's32[2]{0}', space=sflag, size = 0x8, scoped, tag = 'scoped memory for chess_transformer_forward.3']
    #allocation4 [shape = 's32[2]{0}', space=sflag, size = 0x8, scoped, tag = 'scoped memory for chess_transformer_forward.3']
    #allocation5 [shape = 'u8[8192]{0}', space=vmem, size = 0x2000, scoped, tag = 'input window, operand 1, single buffered']
    #allocation6 [shape = 's32[1]{0}', space=sflag, size = 0x4, scoped, tag = 'scoped memory for chess_transformer_forward.3']
    #allocation7 [shape = 'u8[512]{0}', space=vmem, size = 0x400, scoped, tag = 'input window, operand 2, single buffered']
    #allocation8 [shape = 'u8[8192]{0}', space=vmem, size = 0x2000, scoped, tag = 'output window, operand 0']
    %8 = vsyncpa [#allocation3], 0
    %s9 = scalar_lea.sflag [#allocation3], 1
    %10 = vsyncpa %s9, 0
    %11 = vsyncpa [#allocation6], 0
    %12 = vsyncpa [#allocation4], 0
    %s13 = scalar_lea.sflag [#allocation4], 1
    %14 = vsyncpa %s13, 0
    loop: start=0, step=1, limit=4
    $region2: #{chess_transformer_forward.3} parent=1 // loop_pre_header
      _
    $region3: #{chess_transformer_forward.3} parent=1 // loop_header
      %s16 = sphi 0, %s20
      %p17 = scmp.ge.s32.totalorder %s16, 4
      %s23 = sphi 0, %s35
      %s24 = sphi 0, %s31
      %s25 = sphi 0, %s23
      %s26 = sphi 0, %s24
      %s27 = sphi 0, %s25
      %s28 = sphi 0, %s26
      %s38 = sphi 0, %s40
      %s41 = sphi 0, %s38
      %s42 = sphi 0, %s41
      %s58 = sphi 0, %s42
      %s64 = sphi 0, %s66
      %s67 = sphi 0, %s64
      %s68 = sphi 0, %s67
      %s84 = sphi 0, %s68
      %s90 = sphi 0, %s92
      %s93 = sphi 0, %s90
      %s94 = sphi 0, %s93
      %s110 = sphi 0, %s94
      %s118 = sphi 0, %s120
      %s121 = sphi 0, %s118
      %s122 = sphi 0, %s121
      %s138 = sphi 0, %s122
    $region4: #{chess_transformer_forward.3} parent=1 // loop_header_branch
      %19 = sbr.rel (%p17) target = $region8
    $region5: #{chess_transformer_forward.3} parent=1 // loop_body
      %s21 = ssub.s32 %s16, 1
      %s22 = ssub.s32 %s16, 2
      %s29 = sadd.s32 1, %s24
      %p30 = scmp.ge.s32.totalorder %s29, 1
      %s31 = scalar_select %p30, 0, %s29
      %s32 = sadd.s32 1, %s23
      %s33 = scalar_select %p30, %s32, %s23
      %p34 = scmp.ge.s32.totalorder %s33, 2
      %s35 = scalar_select %p34, 0, %s33
      %s36 = ssub.s32 %s23, %s35
      %p37 = scmp.eq.s32.totalorder %s36, 0
      %s39 = sadd.s32 %s38, 1
      %s40 = scalar_select %p37, %s38, %s39
      %p43 = pneg %p37
      %p44 = scmp.eq.s32.totalorder %s16, 1
      %p45 = por %p43, %p44
      %p46 = scmp.ne.s32.totalorder %s38, %s41
      %p47 = scmp.eq.s32.totalorder %s16, 0
      %p48 = por %p46, %p47
      %p49 = scmp.ne.s32.totalorder %s38, %s41
      %p50 = scmp.eq.s32.totalorder %s21, 1
      %p51 = por %p49, %p50
      %p52 = scmp.ne.s32.totalorder %s41, %s42
      %p53 = scmp.eq.s32.totalorder %s21, 0
      %p54 = por %p52, %p53
      %p55 = scmp.ne.s32.totalorder %s41, %s42
      %p56 = scmp.eq.s32.totalorder %s22, 1
      %p57 = por %p55, %p56
      %p59 = scmp.ne.s32.totalorder %s42, %s58
      %p60 = scmp.eq.s32.totalorder %s22, 0
      %p61 = por %p59, %p60
      %s62 = ssub.s32 %s24, %s31
      %p63 = scmp.eq.s32.totalorder %s62, 0
      %s65 = sadd.s32 %s64, 1
      %s66 = scalar_select %p63, %s64, %s65
      %p69 = pneg %p63
      %p70 = scmp.eq.s32.totalorder %s16, 1
      %p71 = por %p69, %p70
      %p72 = scmp.ne.s32.totalorder %s64, %s67
      %p73 = scmp.eq.s32.totalorder %s16, 0
      %p74 = por %p72, %p73
      %p75 = scmp.ne.s32.totalorder %s64, %s67
      %p76 = scmp.eq.s32.totalorder %s21, 1
      %p77 = por %p75, %p76
      %p78 = scmp.ne.s32.totalorder %s67, %s68
      %p79 = scmp.eq.s32.totalorder %s21, 0
      %p80 = por %p78, %p79
      %p81 = scmp.ne.s32.totalorder %s67, %s68
      %p82 = scmp.eq.s32.totalorder %s22, 1
      %p83 = por %p81, %p82
      %p85 = scmp.ne.s32.totalorder %s68, %s84
      %p86 = scmp.eq.s32.totalorder %s22, 0
      %p87 = por %p85, %p86
      %s88 = ssub.s32 %s24, %s31
      %p89 = scmp.eq.s32.totalorder %s88, 0
      %s91 = sadd.s32 %s90, 1
      %s92 = scalar_select %p89, %s90, %s91
      %p95 = pneg %p89
      %p96 = scmp.eq.s32.totalorder %s16, 1
      %p97 = por %p95, %p96
      %p98 = scmp.ne.s32.totalorder %s90, %s93
      %p99 = scmp.eq.s32.totalorder %s16, 0
      %p100 = por %p98, %p99
      %p101 = scmp.ne.s32.totalorder %s90, %s93
      %p102 = scmp.eq.s32.totalorder %s21, 1
      %p103 = por %p101, %p102
      %p104 = scmp.ne.s32.totalorder %s93, %s94
      %p105 = scmp.eq.s32.totalorder %s21, 0
      %p106 = por %p104, %p105
      %p107 = scmp.ne.s32.totalorder %s93, %s94
      %p108 = scmp.eq.s32.totalorder %s22, 1
      %p109 = por %p107, %p108
      %p111 = scmp.ne.s32.totalorder %s94, %s110
      %p112 = scmp.eq.s32.totalorder %s22, 0
      %p113 = por %p111, %p112
      %s114 = ssub.s32 %s23, %s35
      %s115 = ssub.s32 %s24, %s31
      %s116 = sor.u32 %s114, %s115
      %p117 = scmp.eq.s32.totalorder %s116, 0
      %s119 = sadd.s32 %s118, 1
      %s120 = scalar_select %p117, %s118, %s119
      %p123 = pneg %p117
      %p124 = scmp.eq.s32.totalorder %s16, 1
      %p125 = por %p123, %p124
      %p126 = scmp.ne.s32.totalorder %s118, %s121
      %p127 = scmp.eq.s32.totalorder %s16, 0
      %p128 = por %p126, %p127
      %p129 = scmp.ne.s32.totalorder %s118, %s121
      %p130 = scmp.eq.s32.totalorder %s21, 1
      %p131 = por %p129, %p130
      %p132 = scmp.ne.s32.totalorder %s121, %s122
      %p133 = scmp.eq.s32.totalorder %s21, 0
      %p134 = por %p132, %p133
      %p135 = scmp.ne.s32.totalorder %s121, %s122
      %p136 = scmp.eq.s32.totalorder %s22, 1
      %p137 = por %p135, %p136
      %p139 = scmp.ne.s32.totalorder %s122, %s138
      %p140 = scmp.eq.s32.totalorder %s22, 0
      %p141 = por %p139, %p140
      %p142 = scmp.le.s32.totalorder 1, %s16
      %p143 = scmp.lt.s32.totalorder %s16, 3
      %p144 = pnand %p142, %p143
      %p145 = pneg %p144
      // Predicated region
      $region9: #{chess_transformer_forward.3} parent=5 // pred_check
        _
      $region10: #{chess_transformer_forward.3} parent=5 // pred_check_branch
        %147 = sbr.rel (%p144) target = $region12
      $region11: #{chess_transformer_forward.3} parent=5 // pred_region
        %s148 = ssub.s32 %s16, 1
        // Predicated region
        $region13: #{chess_transformer_forward.3} parent=11 // pred_check
          %p149 = pneg %p80
        $region14: #{chess_transformer_forward.3} parent=11 // pred_check_branch
          %151 = sbr.rel (%p149) target = $region16
        $region15: #{chess_transformer_forward.3} parent=11 // pred_region
          %s153 = ssub.s32 256, 256
          %154 = vsyncadd [#allocation6], %s153
          %s155 = smul.addr %s26, 64
          %s156 = scalar_lea.hbm %s1, %s155
          %s157 = sshll.u32 [#allocation5], 4
          %s158 = int_to_ptr.vmem [resolvable:$true] %s157
          %163 = dma.hbm_to_vmem [thread:$0]  %s156, 256, %s158, [#allocation6], 64, 64, 4
        $region16: #{chess_transformer_forward.3} parent=11 // pred_fallthru
          _
        // Predicated region
        $region17: #{chess_transformer_forward.3} parent=11 // pred_check
          %p164 = pneg %p106
        $region18: #{chess_transformer_forward.3} parent=11 // pred_check_branch
          %166 = sbr.rel (%p164) target = $region20
        $region19: #{chess_transformer_forward.3} parent=11 // pred_region
          %s168 = ssub.s32 16, 16
          %169 = vsyncadd [#allocation6], %s168
          %s170 = smul.addr %s26, 16
          %s171 = scalar_lea.hbm %s2, %s170
          %s173 = sshll.u32 [#allocation7], 4
          %s174 = int_to_ptr.vmem [resolvable:$true] %s173
          %176 = dma.hbm_to_vmem [thread:$0]  %s171, 16, %s174, [#allocation6]
        $region20: #{chess_transformer_forward.3} parent=11 // pred_fallthru
          _
      $region12: #{chess_transformer_forward.3} parent=5 // pred_fallthru
        _
      %p177 = scmp.lt.s32.totalorder %s16, 2
      // Predicated region
      $region21: #{chess_transformer_forward.3} parent=5 // pred_check
        %p178 = pneg %p177
      $region22: #{chess_transformer_forward.3} parent=5 // pred_check_branch
        %180 = sbr.rel (%p178) target = $region24
      $region23: #{chess_transformer_forward.3} parent=5 // pred_region
        // Predicated region
        $region25: #{chess_transformer_forward.3} parent=23 // pred_check
          %p181 = pneg %p48
        $region26: #{chess_transformer_forward.3} parent=23 // pred_check_branch
          %183 = sbr.rel (%p181) target = $region28
        $region27: #{chess_transformer_forward.3} parent=23 // pred_region
          %s184 = sand.u32 %s38, 1
          %s185 = scalar_lea.sflag [#allocation3], %s184
          %s186 = sand.u32 %s38, 1
          %s187 = smul.addr %s186, 8
          %s188 = scalar_lea.vmem [#allocation2], %s187
          %s190 = ssub.s32 128, 128
          %191 = vsyncadd %s185, %s190
          %s192 = smul.addr %s23, 128
          %s193 = scalar_lea.hbm %s0, %s192
          %s195 = sshll.u32 %s188, 4
          %s196 = int_to_ptr.vmem [resolvable:$true] %s195
          %198 = dma.hbm_to_vmem [thread:$0]  %s193, 128, %s196, %s185
        $region28: #{chess_transformer_forward.3} parent=23 // pred_fallthru
          _
      $region24: #{chess_transformer_forward.3} parent=5 // pred_fallthru
        _
      %p199 = scmp.le.s32.totalorder 1, %s16
      %p200 = scmp.lt.s32.totalorder %s16, 3
      %p201 = pnand %p199, %p200
      %p202 = pneg %p201
      // Predicated region
      $region29: #{chess_transformer_forward.3} parent=5 // pred_check
        _
      $region30: #{chess_transformer_forward.3} parent=5 // pred_check_branch
        %204 = sbr.rel (%p201) target = $region32
      $region31: #{chess_transformer_forward.3} parent=5 // pred_region
        %s205 = ssub.s32 %s16, 1
        %s206 = sand.u32 %s41, 1
        %s207 = scalar_lea.sflag [#allocation3], %s206
        %s208 = sand.u32 %s41, 1
        %s209 = smul.addr %s208, 8
        %s210 = scalar_lea.vmem [#allocation2], %s209
        // Predicated region
        $region33: #{chess_transformer_forward.3} parent=31 // pred_check
          %p211 = pneg %p54
        $region34: #{chess_transformer_forward.3} parent=31 // pred_check_branch
          %213 = sbr.rel (%p211) target = $region36
        $region35: #{chess_transformer_forward.3} parent=31 // pred_region
          %214 = dma.done %s207, 128
        $region36: #{chess_transformer_forward.3} parent=31 // pred_fallthru
          _
        // Predicated region
        $region37: #{chess_transformer_forward.3} parent=31 // pred_check
          %p215 = pneg %p80
        $region38: #{chess_transformer_forward.3} parent=31 // pred_check_branch
          %217 = sbr.rel (%p215) target = $region40
        $region39: #{chess_transformer_forward.3} parent=31 // pred_region
          %218 = dma.done [#allocation6], 256
        $region40: #{chess_transformer_forward.3} parent=31 // pred_fallthru
          _
        // Predicated region
        $region41: #{chess_transformer_forward.3} parent=31 // pred_check
          %p219 = pneg %p106
        $region42: #{chess_transformer_forward.3} parent=31 // pred_check_branch
          %221 = sbr.rel (%p219) target = $region44
        $region43: #{chess_transformer_forward.3} parent=31 // pred_region
          %222 = dma.done [#allocation6], 16
        $region44: #{chess_transformer_forward.3} parent=31 // pred_fallthru
          _
        %s223 = sand.u32 %s41, 1
        %s224 = scalar_lea.sflag [#allocation3], %s223
        %s225 = sand.u32 %s41, 1
        %s226 = smul.addr %s225, 8
        %s227 = scalar_lea.vmem [#allocation2], %s226
        %p228 = pneg %p54
        %p229 = pneg %p51
        %p230 = pneg %p80
        %p231 = pneg %p77
        %p232 = pneg %p106
        %p233 = pneg %p103
        %p234 = pneg %p134
        %p235 = pneg %p131
        %s236 = sand.u32 %s121, 1
        %s237 = scalar_lea.sflag [#allocation4], %s236
        %s238 = sand.u32 %s121, 1
        %s239 = smul.addr %s238, 8
        %s240 = scalar_lea.vmem [#allocation8], %s239
        %v242 = vld [vmem:[%s210] sm:$0xff]
        %v243 = vpack.c.bf16 %v242, %v242
        %v244 = vld [vmem:[#allocation5] sm:$0xf]
        %v245 = vld [vmem:[#allocation5 + $0x4] sm:$0xf]
        %v246 = vld [vmem:[#allocation5 + $0x8] sm:$0xf]
        %v247 = vld [vmem:[#allocation5 + $0xc] sm:$0xf]
        %v248 = vld [vmem:[#allocation7] sm:$0x1]
        %v250 = vlaneseq
        %v251 = vshrl.u32 %v250, 7
        %v252 = vsub.s32 0, %v251
        %v253 = vrot.slane %v248, %v252
        %v259 = vunpack.c.l.b16 %v244
        %v260 = vunpack.c.l.b16 %v245
        %v261 = vunpack.c.l.b16 %v246
        %v262 = vunpack.c.l.b16 %v247
        %v263 = vpack.c.b16 %v260, %v259
        %v264 = vpack.c.b16 %v262, %v261
        %vm267 = vcmask 261120
        %v269 = vsel %vm267, %v243, 0
        %271 = vmatprep.subr.bf16.mxu0 0
        %272 = vmatpush1.bf16.msra.mxu0 %v263
        %273 = vmatprep.subr.bf16.mxu0 0
        %274 = vmatpush1.bf16.msra.mxu0 %v264
        %275 = vmatprep.subr.bf16.mxu0 0
        %276 = vmatpush1.bf16.msra.mxu0 0
        %277 = vmatprep.subr.bf16.mxu0 0
        %278 = vmatpush1.bf16.msra.mxu0 0
        %279 = vmatprep.subr.bf16.mxu0 0
        %280 = vmatpush1.bf16.msra.mxu0 0
        %281 = vmatprep.subr.bf16.mxu0 0
        %282 = vmatpush1.bf16.msra.mxu0 0
        %283 = vmatprep.subr.bf16.mxu0 0
        %284 = vmatpush1.bf16.msra.mxu0 0
        %285 = vmatprep.subr.bf16.mxu0 0
        %286 = vmatpush1.bf16.msra.mxu0 0
        %287 = vmatprep.subr.bf16.mxu0 0
        %288 = vmatpush1.bf16.msra.mxu0 0
        %289 = vmatprep.subr.bf16.mxu0 0
        %290 = vmatpush1.bf16.msra.mxu0 0
        %291 = vmatprep.subr.bf16.mxu0 0
        %292 = vmatpush1.bf16.msra.mxu0 0
        %293 = vmatprep.subr.bf16.mxu0 0
        %294 = vmatpush1.bf16.msra.mxu0 0
        %295 = vmatprep.subr.bf16.mxu0 0
        %296 = vmatpush1.bf16.msra.mxu0 0
        %297 = vmatprep.subr.bf16.mxu0 0
        %298 = vmatpush1.bf16.msra.mxu0 0
        %299 = vmatprep.subr.bf16.mxu0 0
        %300 = vmatpush1.bf16.msra.mxu0 0
        %301 = vmatprep.subr.bf16.mxu0 0
        %302 = vmatpush1.bf16.msra.mxu0 0
        %303 = vmatprep.mubr.bf16.mxu0 0
        %304 = vmatmul.mubr.bf16.gmra.mrb[0].mxu0 %v269
        %v305 = vpop.f32.mrb[0].mxu0
        %v306 = vadd.f32 %v253, %v305
        %v307 = vpop.f32.mrb[0].mxu0
        %v308 = vpop.f32.mrb[0].mxu0
        %v309 = vpop.f32.mrb[0].mxu0
        %310 = vdwg.mxu0
        %vm311 = vcmask 523264
        %312 = vst.msk [vmem:[%s240] sm:$0xff] %vm311, %v306
        %s313 = sand.u32 %s121, 1
        %s314 = scalar_lea.sflag [#allocation4], %s313
        %s315 = sand.u32 %s121, 1
        %s316 = smul.addr %s315, 8
        %s317 = scalar_lea.vmem [#allocation8], %s316
        // Predicated region
        $region45: #{chess_transformer_forward.3} parent=31 // pred_check
          %p318 = pneg %p131
        $region46: #{chess_transformer_forward.3} parent=31 // pred_check_branch
          %320 = sbr.rel (%p318) target = $region48
        $region47: #{chess_transformer_forward.3} parent=31 // pred_region
          %s322 = ssub.s32 128, 128
          %323 = vsyncadd %s314, %s322
          %s324 = sadd.s32 %s26, %s25
          %s325 = smul.addr %s324, 128
          %s326 = scalar_lea.hbm %s3, %s325
          %s328 = sshll.u32 %s317, 4
          %s329 = int_to_ptr.vmem [resolvable:$true] %s328
          %331 = dma.vmem_to_hbm [thread:$0]  %s329, 128, %s326, %s314
        $region48: #{chess_transformer_forward.3} parent=31 // pred_fallthru
          _
      $region32: #{chess_transformer_forward.3} parent=5 // pred_fallthru
        _
      %p332 = scmp.le.s32.totalorder 2, %s16
      // Predicated region
      $region49: #{chess_transformer_forward.3} parent=5 // pred_check
        %p333 = pneg %p332
      $region50: #{chess_transformer_forward.3} parent=5 // pred_check_branch
        %335 = sbr.rel (%p333) target = $region52
      $region51: #{chess_transformer_forward.3} parent=5 // pred_region
        %s336 = ssub.s32 %s16, 2
        // Predicated region
        $region53: #{chess_transformer_forward.3} parent=51 // pred_check
          %p337 = pneg %p137
        $region54: #{chess_transformer_forward.3} parent=51 // pred_check_branch
          %339 = sbr.rel (%p337) target = $region56
        $region55: #{chess_transformer_forward.3} parent=51 // pred_region
          %s340 = sand.u32 %s122, 1
          %s341 = scalar_lea.sflag [#allocation4], %s340
          %s342 = sand.u32 %s122, 1
          %s343 = smul.addr %s342, 8
          %s344 = scalar_lea.vmem [#allocation8], %s343
          %345 = dma.done %s341, 128
        $region56: #{chess_transformer_forward.3} parent=51 // pred_fallthru
          _
      $region52: #{chess_transformer_forward.3} parent=5 // pred_fallthru
        _
    $region6: #{chess_transformer_forward.3} parent=1 // loop_footer
      %s20 = sadd.s32 1, %s16
    $region7: #{chess_transformer_forward.3} parent=1 // loop_footer_branch
      %15 = sbr.rel target = $region3
    $region8: #{chess_transformer_forward.3} parent=1 // loop_exit
      _
    %346 = vsyncpa [#allocation3], 1
    %s347 = scalar_lea.sflag [#allocation3], 1
    %348 = vsyncpa %s347, 1
    %349 = vsyncpa [#allocation6], 1
    %350 = vsyncpa [#allocation4], 1
    %s351 = scalar_lea.sflag [#allocation4], 1
    %352 = vsyncpa %s351, 1

// kernel: chess_transformer_forward.2
$region0: #{chess_transformer_forward.2}
  #allocation0 [shape = 'u32[]', space=smem, size = 0x4, offset = 0x4, fixed_abs, tag = 'smem constant byte address 0x4 - core index']
  #allocation1 [shape = 'u32[144,128]{1,0:T(1,128)}', space=vmem, size = 0x12000, scoped, tag = 'internal scratch']
  #allocation2 [shape = 'f32[8,32]{1,0:T(8,128)}', space=vmem, size = 0x1000, scoped, tag = 'scratch operand']
  #allocation3 [shape = 'f32[8,32]{1,0:T(8,128)}', space=vmem, size = 0x1000, scoped, tag = 'scratch operand']
  #allocation4 [shape = 'f32[1,1]{1,0:T(1,128)S(1)}', space=vmem, size = 0x200, scoped, tag = 'scoped memory for chess_transformer_forward.2']
  %s0 = inlined_call_operand.hbm [shape: f32[16,16], index: 0, kind: input, shape index: {}]
  %s1 = inlined_call_operand.hbm [shape: bf16[16,32], index: 1, kind: input, shape index: {}]
  %s2 = inlined_call_operand.hbm [shape: f32[1,32], index: 2, kind: input, shape index: {}]
  %s3 = inlined_call_operand.hbm [shape: f32[8,32], index: 3, kind: input, shape index: {}]
  %s4 = inlined_call_operand.hbm [shape: f32[8,32], index: 4, kind: input, shape index: {}]
  %s5 = inlined_call_operand.hbm [shape: f32[1,8], index: 5, kind: input, shape index: {}]
  %s6 = inlined_call_operand.hbm [shape: f32[32,1], index: 6, kind: input, shape index: {}]
  %s7 = inlined_call_operand.<no memory space> [shape: f32[1,1], index: 7, kind: input, shape index: {}]
  %s8 = inlined_call_operand.hbm [shape: bf16[2,32,96], index: 8, kind: input, shape index: {}]
  %s9 = inlined_call_operand.hbm [shape: f32[2,1,96], index: 9, kind: input, shape index: {}]
  %s10 = inlined_call_operand.hbm [shape: bf16[2,32,32], index: 10, kind: input, shape index: {}]
  %s11 = inlined_call_operand.hbm [shape: f32[2,1,32], index: 11, kind: input, shape index: {}]
  %s12 = inlined_call_operand.hbm [shape: f32[2,1,32], index: 12, kind: input, shape index: {}]
  %s13 = inlined_call_operand.hbm [shape: f32[2,1,32], index: 13, kind: input, shape index: {}]
  %s14 = inlined_call_operand.hbm [shape: bf16[2,32,64], index: 14, kind: input, shape index: {}]
  %s15 = inlined_call_operand.hbm [shape: f32[2,1,64], index: 15, kind: input, shape index: {}]
  %s16 = inlined_call_operand.hbm [shape: bf16[2,64,32], index: 16, kind: input, shape index: {}]
  %s17 = inlined_call_operand.hbm [shape: f32[2,1,32], index: 17, kind: input, shape index: {}]
  %s18 = inlined_call_operand.hbm [shape: f32[2,1,32], index: 18, kind: input, shape index: {}]
  %s19 = inlined_call_operand.hbm [shape: f32[2,1,32], index: 19, kind: input, shape index: {}]
  %s20 = inlined_call_operand.hbm [shape: f32[16,32], index: 20, kind: output, shape index: {0}]
  %s21 = inlined_call_operand.hbm [shape: f32[2,1,1], index: 21, kind: output, shape index: {1}]
  %22 = xla_tuple %s20, %s21
  %s23 = sld [smem:[#allocation0]]
  $region205: #{chess_transformer_forward.2} parent=0
    _
  %s25 = ssub.s32 1, %s23
  %s26 = scalar_select 0, %s25, %s23
  %v27 = vstv %s7
  %28 = vst [vmem:[#allocation4] sm:$0x1] %v27
  $region1: #{chess_transformer_forward.2} parent=0
    #allocation5 [shape = 'u8[8192]{0}', space=vmem, size = 0x2000, scoped, tag = 'input window, operand 0']
    #allocation6 [shape = 's32[2]{0}', space=sflag, size = 0x8, scoped, tag = 'scoped memory for chess_transformer_forward.2']
    #allocation7 [shape = 's32[2]{0}', space=sflag, size = 0x8, scoped, tag = 'scoped memory for chess_transformer_forward.2']
    #allocation8 [shape = 'u8[4096]{0}', space=vmem, size = 0x1000, scoped, tag = 'input window, operand 1, single buffered']
    #allocation9 [shape = 's32[1]{0}', space=sflag, size = 0x4, scoped, tag = 'scoped memory for chess_transformer_forward.2']
    #allocation10 [shape = 'u8[512]{0}', space=vmem, size = 0x400, scoped, tag = 'input window, operand 2, single buffered']
    #allocation11 [shape = 'u8[4096]{0}', space=vmem, size = 0x1000, scoped, tag = 'input window, operand 3, single buffered']
    #allocation12 [shape = 's32[1]{0}', space=sflag, size = 0x4, scoped, tag = 'scoped memory for chess_transformer_forward.2']
    #allocation13 [shape = 'u8[4096]{0}', space=vmem, size = 0x1000, scoped, tag = 'input window, operand 4, single buffered']
    #allocation14 [shape = 'u8[512]{0}', space=vmem, size = 0x400, scoped, tag = 'input window, operand 5, single buffered']
    #allocation15 [shape = 's32[1]{0}', space=sflag, size = 0x4, scoped, tag = 'scoped memory for chess_transformer_forward.2']
    #allocation16 [shape = 'u8[16384]{0}', space=vmem, size = 0x4000, scoped, tag = 'input window, operand 6, single buffered']
    #allocation17 [shape = 'u8[16384]{0}', space=vmem, size = 0x4000, scoped, tag = 'input window, operand 8']
    #allocation18 [shape = 's32[2]{0}', space=sflag, size = 0x8, scoped, tag = 'scoped memory for chess_transformer_forward.2']
    #allocation19 [shape = 'u8[1024]{0}', space=vmem, size = 0x400, scoped, tag = 'input window, operand 9']
    #allocation20 [shape = 'u8[16384]{0}', space=vmem, size = 0x4000, scoped, tag = 'input window, operand 10']
    #allocation21 [shape = 's32[2]{0}', space=sflag, size = 0x8, scoped, tag = 'scoped memory for chess_transformer_forward.2']
    #allocation22 [shape = 'u8[1024]{0}', space=vmem, size = 0x400, scoped, tag = 'input window, operand 11']
    #allocation23 [shape = 'u8[1024]{0}', space=vmem, size = 0x400, scoped, tag = 'input window, operand 12']
    #allocation24 [shape = 's32[2]{0}', space=sflag, size = 0x8, scoped, tag = 'scoped memory for chess_transformer_forward.2']
    #allocation25 [shape = 'u8[1024]{0}', space=vmem, size = 0x400, scoped, tag = 'input window, operand 13']
    #allocation26 [shape = 'u8[16384]{0}', space=vmem, size = 0x4000, scoped, tag = 'input window, operand 14']
    #allocation27 [shape = 's32[2]{0}', space=sflag, size = 0x8, scoped, tag = 'scoped memory for chess_transformer_forward.2']
    #allocation28 [shape = 'u8[1024]{0}', space=vmem, size = 0x400, scoped, tag = 'input window, operand 15']
    #allocation29 [shape = 'u8[32768]{0}', space=vmem, size = 0x8000, scoped, tag = 'input window, operand 16']
    #allocation30 [shape = 's32[2]{0}', space=sflag, size = 0x8, scoped, tag = 'scoped memory for chess_transformer_forward.2']
    #allocation31 [shape = 'u8[1024]{0}', space=vmem, size = 0x400, scoped, tag = 'input window, operand 17']
    #allocation32 [shape = 'u8[1024]{0}', space=vmem, size = 0x400, scoped, tag = 'input window, operand 18']
    #allocation33 [shape = 's32[2]{0}', space=sflag, size = 0x8, scoped, tag = 'scoped memory for chess_transformer_forward.2']
    #allocation34 [shape = 'u8[1024]{0}', space=vmem, size = 0x400, scoped, tag = 'input window, operand 19']
    #allocation35 [shape = 'u8[8192]{0}', space=vmem, size = 0x2000, scoped, tag = 'output window, operand 0']
    #allocation36 [shape = 'u8[1024]{0}', space=vmem, size = 0x400, scoped, tag = 'output window, operand 1']
    #allocation37 [shape = 's32[2]{0}', space=sflag, size = 0x8, scoped, tag = 'scoped memory for chess_transformer_forward.2']
    %29 = vsyncpa [#allocation6], 0
    %s30 = scalar_lea.sflag [#allocation6], 1
    %31 = vsyncpa %s30, 0
    %32 = vsyncpa [#allocation9], 0
    %33 = vsyncpa [#allocation12], 0
    %34 = vsyncpa [#allocation15], 0
    %35 = vsyncpa [#allocation18], 0
    %s36 = scalar_lea.sflag [#allocation18], 1
    %37 = vsyncpa %s36, 0
    %38 = vsyncpa [#allocation21], 0
    %s39 = scalar_lea.sflag [#allocation21], 1
    %40 = vsyncpa %s39, 0
    %41 = vsyncpa [#allocation24], 0
    %s42 = scalar_lea.sflag [#allocation24], 1
    %43 = vsyncpa %s42, 0
    %44 = vsyncpa [#allocation27], 0
    %s45 = scalar_lea.sflag [#allocation27], 1
    %46 = vsyncpa %s45, 0
    %47 = vsyncpa [#allocation30], 0
    %s48 = scalar_lea.sflag [#allocation30], 1
    %49 = vsyncpa %s48, 0
    %50 = vsyncpa [#allocation33], 0
    %s51 = scalar_lea.sflag [#allocation33], 1
    %52 = vsyncpa %s51, 0
    %53 = vsyncpa [#allocation7], 0
    %s54 = scalar_lea.sflag [#allocation7], 1
    %55 = vsyncpa %s54, 0
    %56 = vsyncpa [#allocation37], 0
    %s57 = scalar_lea.sflag [#allocation37], 1
    %58 = vsyncpa %s57, 0
    loop: start=0, step=1, limit=6
    $region2: #{chess_transformer_forward.2} parent=1 // loop_pre_header
      _
    $region3: #{chess_transformer_forward.2} parent=1 // loop_header
      %s60 = sphi 0, %s64
      %p61 = scmp.ge.s32.totalorder %s60, 6
      %s67 = sphi 0, %s79
      %s68 = sphi 0, %s75
      %s69 = sphi 0, %s67
      %s70 = sphi 0, %s68
      %s71 = sphi 0, %s69
      %s72 = sphi 0, %s70
      %s82 = sphi 0, %s84
      %s85 = sphi 0, %s82
      %s86 = sphi 0, %s85
      %s102 = sphi 0, %s86
      %s106 = sphi 0, %s106
      %s108 = sphi 0, %s106
      %s109 = sphi 0, %s108
      %s123 = sphi 0, %s109
      %s127 = sphi 0, %s127
      %s129 = sphi 0, %s127
      %s130 = sphi 0, %s129
      %s144 = sphi 0, %s130
      %s148 = sphi 0, %s148
      %s150 = sphi 0, %s148
      %s151 = sphi 0, %s150
      %s165 = sphi 0, %s151
      %s169 = sphi 0, %s169
      %s171 = sphi 0, %s169
      %s172 = sphi 0, %s171
      %s186 = sphi 0, %s172
      %s190 = sphi 0, %s190
      %s192 = sphi 0, %s190
      %s193 = sphi 0, %s192
      %s207 = sphi 0, %s193
      %s211 = sphi 0, %s211
      %s213 = sphi 0, %s211
      %s214 = sphi 0, %s213
      %s228 = sphi 0, %s214
      %s232 = sphi 0, %s232
      %s234 = sphi 0, %s232
      %s235 = sphi 0, %s234
      %s249 = sphi 0, %s235
      %s255 = sphi 0, %s257
      %s258 = sphi 0, %s255
      %s259 = sphi 0, %s258
      %s275 = sphi 0, %s259
      %s281 = sphi 0, %s283
      %s284 = sphi 0, %s281
      %s285 = sphi 0, %s284
      %s301 = sphi 0, %s285
      %s307 = sphi 0, %s309
      %s310 = sphi 0, %s307
      %s311 = sphi 0, %s310
      %s327 = sphi 0, %s311
      %s333 = sphi 0, %s335
      %s336 = sphi 0, %s333
      %s337 = sphi 0, %s336
      %s353 = sphi 0, %s337
      %s359 = sphi 0, %s361
      %s362 = sphi 0, %s359
      %s363 = sphi 0, %s362
      %s379 = sphi 0, %s363
      %s385 = sphi 0, %s387
      %s388 = sphi 0, %s385
      %s389 = sphi 0, %s388
      %s405 = sphi 0, %s389
      %s411 = sphi 0, %s413
      %s414 = sphi 0, %s411
      %s415 = sphi 0, %s414
      %s431 = sphi 0, %s415
      %s437 = sphi 0, %s439
      %s440 = sphi 0, %s437
      %s441 = sphi 0, %s440
      %s457 = sphi 0, %s441
      %s463 = sphi 0, %s465
      %s466 = sphi 0, %s463
      %s467 = sphi 0, %s466
      %s483 = sphi 0, %s467
      %s489 = sphi 0, %s491
      %s492 = sphi 0, %s489
      %s493 = sphi 0, %s492
      %s509 = sphi 0, %s493
      %s515 = sphi 0, %s517
      %s518 = sphi 0, %s515
      %s519 = sphi 0, %s518
      %s535 = sphi 0, %s519
      %s541 = sphi 0, %s543
      %s544 = sphi 0, %s541
      %s545 = sphi 0, %s544
      %s561 = sphi 0, %s545
      %s567 = sphi 0, %s569
      %s570 = sphi 0, %s567
      %s571 = sphi 0, %s570
      %s587 = sphi 0, %s571
      %s593 = sphi 0, %s595
      %s596 = sphi 0, %s593
      %s597 = sphi 0, %s596
      %s613 = sphi 0, %s597
    $region4: #{chess_transformer_forward.2} parent=1 // loop_header_branch
      %63 = sbr.rel (%p61) target = $region8
    $region5: #{chess_transformer_forward.2} parent=1 // loop_body
      %s65 = ssub.s32 %s60, 1
      %s66 = ssub.s32 %s60, 2
      %s73 = sadd.s32 1, %s68
      %p74 = scmp.ge.s32.totalorder %s73, 2
      %s75 = scalar_select %p74, 0, %s73
      %s76 = sadd.s32 1, %s67
      %s77 = scalar_select %p74, %s76, %s67
      %p78 = scmp.ge.s32.totalorder %s77, 2
      %s79 = scalar_select %p78, 0, %s77
      %s80 = ssub.s32 %s67, %s79
      %p81 = scmp.eq.s32.totalorder %s80, 0
      %s83 = sadd.s32 %s82, 1
      %s84 = scalar_select %p81, %s82, %s83
      %p87 = pneg %p81
      %p88 = scmp.eq.s32.totalorder %s60, 3
      %p89 = por %p87, %p88
      %p90 = scmp.ne.s32.totalorder %s82, %s85
      %p91 = scmp.eq.s32.totalorder %s60, 0
      %p92 = por %p90, %p91
      %p93 = scmp.ne.s32.totalorder %s82, %s85
      %p94 = scmp.eq.s32.totalorder %s65, 3
      %p95 = por %p93, %p94
      %p96 = scmp.ne.s32.totalorder %s85, %s86
      %p97 = scmp.eq.s32.totalorder %s65, 0
      %p98 = por %p96, %p97
      %p99 = scmp.ne.s32.totalorder %s85, %s86
      %p100 = scmp.eq.s32.totalorder %s66, 3
      %p101 = por %p99, %p100
      %p103 = scmp.ne.s32.totalorder %s86, %s102
      %p104 = scmp.eq.s32.totalorder %s66, 0
      %p105 = por %p103, %p104
      %s107 = sadd.s32 %s106, 1
      %p110 = scmp.eq.s32.totalorder %s60, 3
      %p111 = scmp.ne.s32.totalorder %s106, %s108
      %p112 = scmp.eq.s32.totalorder %s60, 0
      %p113 = por %p111, %p112
      %p114 = scmp.ne.s32.totalorder %s106, %s108
      %p115 = scmp.eq.s32.totalorder %s65, 3
      %p116 = por %p114, %p115
      %p117 = scmp.ne.s32.totalorder %s108, %s109
      %p118 = scmp.eq.s32.totalorder %s65, 0
      %p119 = por %p117, %p118
      %p120 = scmp.ne.s32.totalorder %s108, %s109
      %p121 = scmp.eq.s32.totalorder %s66, 3
      %p122 = por %p120, %p121
      %p124 = scmp.ne.s32.totalorder %s109, %s123
      %p125 = scmp.eq.s32.totalorder %s66, 0
      %p126 = por %p124, %p125
      %s128 = sadd.s32 %s127, 1
      %p131 = scmp.eq.s32.totalorder %s60, 3
      %p132 = scmp.ne.s32.totalorder %s127, %s129
      %p133 = scmp.eq.s32.totalorder %s60, 0
      %p134 = por %p132, %p133
      %p135 = scmp.ne.s32.totalorder %s127, %s129
      %p136 = scmp.eq.s32.totalorder %s65, 3
      %p137 = por %p135, %p136
      %p138 = scmp.ne.s32.totalorder %s129, %s130
      %p139 = scmp.eq.s32.totalorder %s65, 0
      %p140 = por %p138, %p139
      %p141 = scmp.ne.s32.totalorder %s129, %s130
      %p142 = scmp.eq.s32.totalorder %s66, 3
      %p143 = por %p141, %p142
      %p145 = scmp.ne.s32.totalorder %s130, %s144
      %p146 = scmp.eq.s32.totalorder %s66, 0
      %p147 = por %p145, %p146
      %s149 = sadd.s32 %s148, 1
      %p152 = scmp.eq.s32.totalorder %s60, 3
      %p153 = scmp.ne.s32.totalorder %s148, %s150
      %p154 = scmp.eq.s32.totalorder %s60, 0
      %p155 = por %p153, %p154
      %p156 = scmp.ne.s32.totalorder %s148, %s150
      %p157 = scmp.eq.s32.totalorder %s65, 3
      %p158 = por %p156, %p157
      %p159 = scmp.ne.s32.totalorder %s150, %s151
      %p160 = scmp.eq.s32.totalorder %s65, 0
      %p161 = por %p159, %p160
      %p162 = scmp.ne.s32.totalorder %s150, %s151
      %p163 = scmp.eq.s32.totalorder %s66, 3
      %p164 = por %p162, %p163
      %p166 = scmp.ne.s32.totalorder %s151, %s165
      %p167 = scmp.eq.s32.totalorder %s66, 0
      %p168 = por %p166, %p167
      %s170 = sadd.s32 %s169, 1
      %p173 = scmp.eq.s32.totalorder %s60, 3
      %p174 = scmp.ne.s32.totalorder %s169, %s171
      %p175 = scmp.eq.s32.totalorder %s60, 0
      %p176 = por %p174, %p175
      %p177 = scmp.ne.s32.totalorder %s169, %s171
      %p178 = scmp.eq.s32.totalorder %s65, 3
      %p179 = por %p177, %p178
      %p180 = scmp.ne.s32.totalorder %s171, %s172
      %p181 = scmp.eq.s32.totalorder %s65, 0
      %p182 = por %p180, %p181
      %p183 = scmp.ne.s32.totalorder %s171, %s172
      %p184 = scmp.eq.s32.totalorder %s66, 3
      %p185 = por %p183, %p184
      %p187 = scmp.ne.s32.totalorder %s172, %s186
      %p188 = scmp.eq.s32.totalorder %s66, 0
      %p189 = por %p187, %p188
      %s191 = sadd.s32 %s190, 1
      %p194 = scmp.eq.s32.totalorder %s60, 3
      %p195 = scmp.ne.s32.totalorder %s190, %s192
      %p196 = scmp.eq.s32.totalorder %s60, 0
      %p197 = por %p195, %p196
      %p198 = scmp.ne.s32.totalorder %s190, %s192
      %p199 = scmp.eq.s32.totalorder %s65, 3
      %p200 = por %p198, %p199
      %p201 = scmp.ne.s32.totalorder %s192, %s193
      %p202 = scmp.eq.s32.totalorder %s65, 0
      %p203 = por %p201, %p202
      %p204 = scmp.ne.s32.totalorder %s192, %s193
      %p205 = scmp.eq.s32.totalorder %s66, 3
      %p206 = por %p204, %p205
      %p208 = scmp.ne.s32.totalorder %s193, %s207
      %p209 = scmp.eq.s32.totalorder %s66, 0
      %p210 = por %p208, %p209
      %s212 = sadd.s32 %s211, 1
      %p215 = scmp.eq.s32.totalorder %s60, 3
      %p216 = scmp.ne.s32.totalorder %s211, %s213
      %p217 = scmp.eq.s32.totalorder %s60, 0
      %p218 = por %p216, %p217
      %p219 = scmp.ne.s32.totalorder %s211, %s213
      %p220 = scmp.eq.s32.totalorder %s65, 3
      %p221 = por %p219, %p220
      %p222 = scmp.ne.s32.totalorder %s213, %s214
      %p223 = scmp.eq.s32.totalorder %s65, 0
      %p224 = por %p222, %p223
      %p225 = scmp.ne.s32.totalorder %s213, %s214
      %p226 = scmp.eq.s32.totalorder %s66, 3
      %p227 = por %p225, %p226
      %p229 = scmp.ne.s32.totalorder %s214, %s228
      %p230 = scmp.eq.s32.totalorder %s66, 0
      %p231 = por %p229, %p230
      %s233 = sadd.s32 %s232, 1
      %p236 = scmp.eq.s32.totalorder %s60, 3
      %p237 = scmp.ne.s32.totalorder %s232, %s234
      %p238 = scmp.eq.s32.totalorder %s60, 0
      %p239 = por %p237, %p238
      %p240 = scmp.ne.s32.totalorder %s232, %s234
      %p241 = scmp.eq.s32.totalorder %s65, 3
      %p242 = por %p240, %p241
      %p243 = scmp.ne.s32.totalorder %s234, %s235
      %p244 = scmp.eq.s32.totalorder %s65, 0
      %p245 = por %p243, %p244
      %p246 = scmp.ne.s32.totalorder %s234, %s235
      %p247 = scmp.eq.s32.totalorder %s66, 3
      %p248 = por %p246, %p247
      %p250 = scmp.ne.s32.totalorder %s235, %s249
      %p251 = scmp.eq.s32.totalorder %s66, 0
      %p252 = por %p250, %p251
      %s253 = ssub.s32 %s68, %s75
      %p254 = scmp.eq.s32.totalorder %s253, 0
      %s256 = sadd.s32 %s255, 1
      %s257 = scalar_select %p254, %s255, %s256
      %p260 = pneg %p254
      %p261 = scmp.eq.s32.totalorder %s60, 3
      %p262 = por %p260, %p261
      %p263 = scmp.ne.s32.totalorder %s255, %s258
      %p264 = scmp.eq.s32.totalorder %s60, 0
      %p265 = por %p263, %p264
      %p266 = scmp.ne.s32.totalorder %s255, %s258
      %p267 = scmp.eq.s32.totalorder %s65, 3
      %p268 = por %p266, %p267
      %p269 = scmp.ne.s32.totalorder %s258, %s259
      %p270 = scmp.eq.s32.totalorder %s65, 0
      %p271 = por %p269, %p270
      %p272 = scmp.ne.s32.totalorder %s258, %s259
      %p273 = scmp.eq.s32.totalorder %s66, 3
      %p274 = por %p272, %p273
      %p276 = scmp.ne.s32.totalorder %s259, %s275
      %p277 = scmp.eq.s32.totalorder %s66, 0
      %p278 = por %p276, %p277
      %s279 = ssub.s32 %s68, %s75
      %p280 = scmp.eq.s32.totalorder %s279, 0
      %s282 = sadd.s32 %s281, 1
      %s283 = scalar_select %p280, %s281, %s282
      %p286 = pneg %p280
      %p287 = scmp.eq.s32.totalorder %s60, 3
      %p288 = por %p286, %p287
      %p289 = scmp.ne.s32.totalorder %s281, %s284
      %p290 = scmp.eq.s32.totalorder %s60, 0
      %p291 = por %p289, %p290
      %p292 = scmp.ne.s32.totalorder %s281, %s284
      %p293 = scmp.eq.s32.totalorder %s65, 3
      %p294 = por %p292, %p293
      %p295 = scmp.ne.s32.totalorder %s284, %s285
      %p296 = scmp.eq.s32.totalorder %s65, 0
      %p297 = por %p295, %p296
      %p298 = scmp.ne.s32.totalorder %s284, %s285
      %p299 = scmp.eq.s32.totalorder %s66, 3
      %p300 = por %p298, %p299
      %p302 = scmp.ne.s32.totalorder %s285, %s301
      %p303 = scmp.eq.s32.totalorder %s66, 0
      %p304 = por %p302, %p303
      %s305 = ssub.s32 %s68, %s75
      %p306 = scmp.eq.s32.totalorder %s305, 0
      %s308 = sadd.s32 %s307, 1
      %s309 = scalar_select %p306, %s307, %s308
      %p312 = pneg %p306
      %p313 = scmp.eq.s32.totalorder %s60, 3
      %p314 = por %p312, %p313
      %p315 = scmp.ne.s32.totalorder %s307, %s310
      %p316 = scmp.eq.s32.totalorder %s60, 0
      %p317 = por %p315, %p316
      %p318 = scmp.ne.s32.totalorder %s307, %s310
      %p319 = scmp.eq.s32.totalorder %s65, 3
      %p320 = por %p318, %p319
      %p321 = scmp.ne.s32.totalorder %s310, %s311
      %p322 = scmp.eq.s32.totalorder %s65, 0
      %p323 = por %p321, %p322
      %p324 = scmp.ne.s32.totalorder %s310, %s311
      %p325 = scmp.eq.s32.totalorder %s66, 3
      %p326 = por %p324, %p325
      %p328 = scmp.ne.s32.totalorder %s311, %s327
      %p329 = scmp.eq.s32.totalorder %s66, 0
      %p330 = por %p328, %p329
      %s331 = ssub.s32 %s68, %s75
      %p332 = scmp.eq.s32.totalorder %s331, 0
      %s334 = sadd.s32 %s333, 1
      %s335 = scalar_select %p332, %s333, %s334
      %p338 = pneg %p332
      %p339 = scmp.eq.s32.totalorder %s60, 3
      %p340 = por %p338, %p339
      %p341 = scmp.ne.s32.totalorder %s333, %s336
      %p342 = scmp.eq.s32.totalorder %s60, 0
      %p343 = por %p341, %p342
      %p344 = scmp.ne.s32.totalorder %s333, %s336
      %p345 = scmp.eq.s32.totalorder %s65, 3
      %p346 = por %p344, %p345
      %p347 = scmp.ne.s32.totalorder %s336, %s337
      %p348 = scmp.eq.s32.totalorder %s65, 0
      %p349 = por %p347, %p348
      %p350 = scmp.ne.s32.totalorder %s336, %s337
      %p351 = scmp.eq.s32.totalorder %s66, 3
      %p352 = por %p350, %p351
      %p354 = scmp.ne.s32.totalorder %s337, %s353
      %p355 = scmp.eq.s32.totalorder %s66, 0
      %p356 = por %p354, %p355
      %s357 = ssub.s32 %s68, %s75
      %p358 = scmp.eq.s32.totalorder %s357, 0
      %s360 = sadd.s32 %s359, 1
      %s361 = scalar_select %p358, %s359, %s360
      %p364 = pneg %p358
      %p365 = scmp.eq.s32.totalorder %s60, 3
      %p366 = por %p364, %p365
      %p367 = scmp.ne.s32.totalorder %s359, %s362
      %p368 = scmp.eq.s32.totalorder %s60, 0
      %p369 = por %p367, %p368
      %p370 = scmp.ne.s32.totalorder %s359, %s362
      %p371 = scmp.eq.s32.totalorder %s65, 3
      %p372 = por %p370, %p371
      %p373 = scmp.ne.s32.totalorder %s362, %s363
      %p374 = scmp.eq.s32.totalorder %s65, 0
      %p375 = por %p373, %p374
      %p376 = scmp.ne.s32.totalorder %s362, %s363
      %p377 = scmp.eq.s32.totalorder %s66, 3
      %p378 = por %p376, %p377
      %p380 = scmp.ne.s32.totalorder %s363, %s379
      %p381 = scmp.eq.s32.totalorder %s66, 0
      %p382 = por %p380, %p381
      %s383 = ssub.s32 %s68, %s75
      %p384 = scmp.eq.s32.totalorder %s383, 0
      %s386 = sadd.s32 %s385, 1
      %s387 = scalar_select %p384, %s385, %s386
      %p390 = pneg %p384
      %p391 = scmp.eq.s32.totalorder %s60, 3
      %p392 = por %p390, %p391
      %p393 = scmp.ne.s32.totalorder %s385, %s388
      %p394 = scmp.eq.s32.totalorder %s60, 0
      %p395 = por %p393, %p394
      %p396 = scmp.ne.s32.totalorder %s385, %s388
      %p397 = scmp.eq.s32.totalorder %s65, 3
      %p398 = por %p396, %p397
      %p399 = scmp.ne.s32.totalorder %s388, %s389
      %p400 = scmp.eq.s32.totalorder %s65, 0
      %p401 = por %p399, %p400
      %p402 = scmp.ne.s32.totalorder %s388, %s389
      %p403 = scmp.eq.s32.totalorder %s66, 3
      %p404 = por %p402, %p403
      %p406 = scmp.ne.s32.totalorder %s389, %s405
      %p407 = scmp.eq.s32.totalorder %s66, 0
      %p408 = por %p406, %p407
      %s409 = ssub.s32 %s68, %s75
      %p410 = scmp.eq.s32.totalorder %s409, 0
      %s412 = sadd.s32 %s411, 1
      %s413 = scalar_select %p410, %s411, %s412
      %p416 = pneg %p410
      %p417 = scmp.eq.s32.totalorder %s60, 3
      %p418 = por %p416, %p417
      %p419 = scmp.ne.s32.totalorder %s411, %s414
      %p420 = scmp.eq.s32.totalorder %s60, 0
      %p421 = por %p419, %p420
      %p422 = scmp.ne.s32.totalorder %s411, %s414
      %p423 = scmp.eq.s32.totalorder %s65, 3
      %p424 = por %p422, %p423
      %p425 = scmp.ne.s32.totalorder %s414, %s415
      %p426 = scmp.eq.s32.totalorder %s65, 0
      %p427 = por %p425, %p426
      %p428 = scmp.ne.s32.totalorder %s414, %s415
      %p429 = scmp.eq.s32.totalorder %s66, 3
      %p430 = por %p428, %p429
      %p432 = scmp.ne.s32.totalorder %s415, %s431
      %p433 = scmp.eq.s32.totalorder %s66, 0
      %p434 = por %p432, %p433
      %s435 = ssub.s32 %s68, %s75
      %p436 = scmp.eq.s32.totalorder %s435, 0
      %s438 = sadd.s32 %s437, 1
      %s439 = scalar_select %p436, %s437, %s438
      %p442 = pneg %p436
      %p443 = scmp.eq.s32.totalorder %s60, 3
      %p444 = por %p442, %p443
      %p445 = scmp.ne.s32.totalorder %s437, %s440
      %p446 = scmp.eq.s32.totalorder %s60, 0
      %p447 = por %p445, %p446
      %p448 = scmp.ne.s32.totalorder %s437, %s440
      %p449 = scmp.eq.s32.totalorder %s65, 3
      %p450 = por %p448, %p449
      %p451 = scmp.ne.s32.totalorder %s440, %s441
      %p452 = scmp.eq.s32.totalorder %s65, 0
      %p453 = por %p451, %p452
      %p454 = scmp.ne.s32.totalorder %s440, %s441
      %p455 = scmp.eq.s32.totalorder %s66, 3
      %p456 = por %p454, %p455
      %p458 = scmp.ne.s32.totalorder %s441, %s457
      %p459 = scmp.eq.s32.totalorder %s66, 0
      %p460 = por %p458, %p459
      %s461 = ssub.s32 %s68, %s75
      %p462 = scmp.eq.s32.totalorder %s461, 0
      %s464 = sadd.s32 %s463, 1
      %s465 = scalar_select %p462, %s463, %s464
      %p468 = pneg %p462
      %p469 = scmp.eq.s32.totalorder %s60, 3
      %p470 = por %p468, %p469
      %p471 = scmp.ne.s32.totalorder %s463, %s466
      %p472 = scmp.eq.s32.totalorder %s60, 0
      %p473 = por %p471, %p472
      %p474 = scmp.ne.s32.totalorder %s463, %s466
      %p475 = scmp.eq.s32.totalorder %s65, 3
      %p476 = por %p474, %p475
      %p477 = scmp.ne.s32.totalorder %s466, %s467
      %p478 = scmp.eq.s32.totalorder %s65, 0
      %p479 = por %p477, %p478
      %p480 = scmp.ne.s32.totalorder %s466, %s467
      %p481 = scmp.eq.s32.totalorder %s66, 3
      %p482 = por %p480, %p481
      %p484 = scmp.ne.s32.totalorder %s467, %s483
      %p485 = scmp.eq.s32.totalorder %s66, 0
      %p486 = por %p484, %p485
      %s487 = ssub.s32 %s68, %s75
      %p488 = scmp.eq.s32.totalorder %s487, 0
      %s490 = sadd.s32 %s489, 1
      %s491 = scalar_select %p488, %s489, %s490
      %p494 = pneg %p488
      %p495 = scmp.eq.s32.totalorder %s60, 3
      %p496 = por %p494, %p495
      %p497 = scmp.ne.s32.totalorder %s489, %s492
      %p498 = scmp.eq.s32.totalorder %s60, 0
      %p499 = por %p497, %p498
      %p500 = scmp.ne.s32.totalorder %s489, %s492
      %p501 = scmp.eq.s32.totalorder %s65, 3
      %p502 = por %p500, %p501
      %p503 = scmp.ne.s32.totalorder %s492, %s493
      %p504 = scmp.eq.s32.totalorder %s65, 0
      %p505 = por %p503, %p504
      %p506 = scmp.ne.s32.totalorder %s492, %s493
      %p507 = scmp.eq.s32.totalorder %s66, 3
      %p508 = por %p506, %p507
      %p510 = scmp.ne.s32.totalorder %s493, %s509
      %p511 = scmp.eq.s32.totalorder %s66, 0
      %p512 = por %p510, %p511
      %s513 = ssub.s32 %s68, %s75
      %p514 = scmp.eq.s32.totalorder %s513, 0
      %s516 = sadd.s32 %s515, 1
      %s517 = scalar_select %p514, %s515, %s516
      %p520 = pneg %p514
      %p521 = scmp.eq.s32.totalorder %s60, 3
      %p522 = por %p520, %p521
      %p523 = scmp.ne.s32.totalorder %s515, %s518
      %p524 = scmp.eq.s32.totalorder %s60, 0
      %p525 = por %p523, %p524
      %p526 = scmp.ne.s32.totalorder %s515, %s518
      %p527 = scmp.eq.s32.totalorder %s65, 3
      %p528 = por %p526, %p527
      %p529 = scmp.ne.s32.totalorder %s518, %s519
      %p530 = scmp.eq.s32.totalorder %s65, 0
      %p531 = por %p529, %p530
      %p532 = scmp.ne.s32.totalorder %s518, %s519
      %p533 = scmp.eq.s32.totalorder %s66, 3
      %p534 = por %p532, %p533
      %p536 = scmp.ne.s32.totalorder %s519, %s535
      %p537 = scmp.eq.s32.totalorder %s66, 0
      %p538 = por %p536, %p537
      %s539 = ssub.s32 %s68, %s75
      %p540 = scmp.eq.s32.totalorder %s539, 0
      %s542 = sadd.s32 %s541, 1
      %s543 = scalar_select %p540, %s541, %s542
      %p546 = pneg %p540
      %p547 = scmp.eq.s32.totalorder %s60, 3
      %p548 = por %p546, %p547
      %p549 = scmp.ne.s32.totalorder %s541, %s544
      %p550 = scmp.eq.s32.totalorder %s60, 0
      %p551 = por %p549, %p550
      %p552 = scmp.ne.s32.totalorder %s541, %s544
      %p553 = scmp.eq.s32.totalorder %s65, 3
      %p554 = por %p552, %p553
      %p555 = scmp.ne.s32.totalorder %s544, %s545
      %p556 = scmp.eq.s32.totalorder %s65, 0
      %p557 = por %p555, %p556
      %p558 = scmp.ne.s32.totalorder %s544, %s545
      %p559 = scmp.eq.s32.totalorder %s66, 3
      %p560 = por %p558, %p559
      %p562 = scmp.ne.s32.totalorder %s545, %s561
      %p563 = scmp.eq.s32.totalorder %s66, 0
      %p564 = por %p562, %p563
      %s565 = ssub.s32 %s67, %s79
      %p566 = scmp.eq.s32.totalorder %s565, 0
      %s568 = sadd.s32 %s567, 1
      %s569 = scalar_select %p566, %s567, %s568
      %p572 = pneg %p566
      %p573 = scmp.eq.s32.totalorder %s60, 3
      %p574 = por %p572, %p573
      %p575 = scmp.ne.s32.totalorder %s567, %s570
      %p576 = scmp.eq.s32.totalorder %s60, 0
      %p577 = por %p575, %p576
      %p578 = scmp.ne.s32.totalorder %s567, %s570
      %p579 = scmp.eq.s32.totalorder %s65, 3
      %p580 = por %p578, %p579
      %p581 = scmp.ne.s32.totalorder %s570, %s571
      %p582 = scmp.eq.s32.totalorder %s65, 0
      %p583 = por %p581, %p582
      %p584 = scmp.ne.s32.totalorder %s570, %s571
      %p585 = scmp.eq.s32.totalorder %s66, 3
      %p586 = por %p584, %p585
      %p588 = scmp.ne.s32.totalorder %s571, %s587
      %p589 = scmp.eq.s32.totalorder %s66, 0
      %p590 = por %p588, %p589
      %s591 = ssub.s32 %s67, %s79
      %p592 = scmp.eq.s32.totalorder %s591, 0
      %s594 = sadd.s32 %s593, 1
      %s595 = scalar_select %p592, %s593, %s594
      %p598 = pneg %p592
      %p599 = scmp.eq.s32.totalorder %s60, 3
      %p600 = por %p598, %p599
      %p601 = scmp.ne.s32.totalorder %s593, %s596
      %p602 = scmp.eq.s32.totalorder %s60, 0
      %p603 = por %p601, %p602
      %p604 = scmp.ne.s32.totalorder %s593, %s596
      %p605 = scmp.eq.s32.totalorder %s65, 3
      %p606 = por %p604, %p605
      %p607 = scmp.ne.s32.totalorder %s596, %s597
      %p608 = scmp.eq.s32.totalorder %s65, 0
      %p609 = por %p607, %p608
      %p610 = scmp.ne.s32.totalorder %s596, %s597
      %p611 = scmp.eq.s32.totalorder %s66, 3
      %p612 = por %p610, %p611
      %p614 = scmp.ne.s32.totalorder %s597, %s613
      %p615 = scmp.eq.s32.totalorder %s66, 0
      %p616 = por %p614, %p615
      %p617 = scmp.le.s32.totalorder 1, %s60
      %p618 = scmp.lt.s32.totalorder %s60, 5
      %p619 = pnand %p617, %p618
      %p620 = pneg %p619
      // Predicated region
      $region9: #{chess_transformer_forward.2} parent=5 // pred_check
        _
      $region10: #{chess_transformer_forward.2} parent=5 // pred_check_branch
        %622 = sbr.rel (%p619) target = $region12
      $region11: #{chess_transformer_forward.2} parent=5 // pred_region
        %s623 = ssub.s32 %s60, 1
        // Predicated region
        $region13: #{chess_transformer_forward.2} parent=11 // pred_check
          %p624 = pneg %p119
        $region14: #{chess_transformer_forward.2} parent=11 // pred_check_branch
          %626 = sbr.rel (%p624) target = $region16
        $region15: #{chess_transformer_forward.2} parent=11 // pred_region
          %s628 = ssub.s32 128, 128
          %629 = vsyncadd [#allocation9], %s628
          %s630 = sshll.u32 [#allocation8], 4
          %s631 = int_to_ptr.vmem [resolvable:$true] %s630
          %636 = dma.hbm_to_vmem [thread:$0]  %s1, 128, %s631, [#allocation9], 64, 64, 4
        $region16: #{chess_transformer_forward.2} parent=11 // pred_fallthru
          _
        // Predicated region
        $region17: #{chess_transformer_forward.2} parent=11 // pred_check
          %p637 = pneg %p140
        $region18: #{chess_transformer_forward.2} parent=11 // pred_check_branch
          %639 = sbr.rel (%p637) target = $region20
        $region19: #{chess_transformer_forward.2} parent=11 // pred_region
          %s641 = ssub.s32 16, 16
          %642 = vsyncadd [#allocation9], %s641
          %s644 = sshll.u32 [#allocation10], 4
          %s645 = int_to_ptr.vmem [resolvable:$true] %s644
          %647 = dma.hbm_to_vmem [thread:$0]  %s2, 16, %s645, [#allocation9]
        $region20: #{chess_transformer_forward.2} parent=11 // pred_fallthru
          _
        // Predicated region
        $region21: #{chess_transformer_forward.2} parent=11 // pred_check
          %p648 = pneg %p161
        $region22: #{chess_transformer_forward.2} parent=11 // pred_check_branch
          %650 = sbr.rel (%p648) target = $region24
        $region23: #{chess_transformer_forward.2} parent=11 // pred_region
          %s652 = ssub.s32 128, 128
          %653 = vsyncadd [#allocation12], %s652
          %s655 = sshll.u32 [#allocation11], 4
          %s656 = int_to_ptr.vmem [resolvable:$true] %s655
          %658 = dma.hbm_to_vmem [thread:$0]  %s3, 128, %s656, [#allocation12]
        $region24: #{chess_transformer_forward.2} parent=11 // pred_fallthru
          _
        // Predicated region
        $region25: #{chess_transformer_forward.2} parent=11 // pred_check
          %p659 = pneg %p182
        $region26: #{chess_transformer_forward.2} parent=11 // pred_check_branch
          %661 = sbr.rel (%p659) target = $region28
        $region27: #{chess_transformer_forward.2} parent=11 // pred_region
          %s663 = ssub.s32 128, 128
          %664 = vsyncadd [#allocation12], %s663
          %s666 = sshll.u32 [#allocation13], 4
          %s667 = int_to_ptr.vmem [resolvable:$true] %s666
          %669 = dma.hbm_to_vmem [thread:$0]  %s4, 128, %s667, [#allocation12]
        $region28: #{chess_transformer_forward.2} parent=11 // pred_fallthru
          _
        // Predicated region
        $region29: #{chess_transformer_forward.2} parent=11 // pred_check
          %p670 = pneg %p203
        $region30: #{chess_transformer_forward.2} parent=11 // pred_check_branch
          %672 = sbr.rel (%p670) target = $region32
        $region31: #{chess_transformer_forward.2} parent=11 // pred_region
          %s674 = ssub.s32 16, 16
          %675 = vsyncadd [#allocation15], %s674
          %s677 = sshll.u32 [#allocation14], 4
          %s678 = int_to_ptr.vmem [resolvable:$true] %s677
          %680 = dma.hbm_to_vmem [thread:$0]  %s5, 16, %s678, [#allocation15]
        $region32: #{chess_transformer_forward.2} parent=11 // pred_fallthru
          _
        // Predicated region
        $region33: #{chess_transformer_forward.2} parent=11 // pred_check
          %p681 = pneg %p224
        $region34: #{chess_transformer_forward.2} parent=11 // pred_check_branch
          %683 = sbr.rel (%p681) target = $region36
        $region35: #{chess_transformer_forward.2} parent=11 // pred_region
          %s685 = ssub.s32 512, 512
          %686 = vsyncadd [#allocation15], %s685
          %s687 = sshll.u32 [#allocation16], 4
          %s688 = int_to_ptr.vmem [resolvable:$true] %s687
          %693 = dma.hbm_to_vmem [thread:$0]  %s6, 512, %s688, [#allocation15], 128, 128, 8
        $region36: #{chess_transformer_forward.2} parent=11 // pred_fallthru
          _
        // Predicated region
        $region37: #{chess_transformer_forward.2} parent=11 // pred_check
          %p694 = pneg %p245
        $region38: #{chess_transformer_forward.2} parent=11 // pred_check_branch
          %696 = sbr.rel (%p694) target = $region40
        $region39: #{chess_transformer_forward.2} parent=11 // pred_region
          _
        $region40: #{chess_transformer_forward.2} parent=11 // pred_fallthru
          _
      $region12: #{chess_transformer_forward.2} parent=5 // pred_fallthru
        _
      %p697 = scmp.lt.s32.totalorder %s60, 4
      // Predicated region
      $region41: #{chess_transformer_forward.2} parent=5 // pred_check
        %p698 = pneg %p697
      $region42: #{chess_transformer_forward.2} parent=5 // pred_check_branch
        %700 = sbr.rel (%p698) target = $region44
      $region43: #{chess_transformer_forward.2} parent=5 // pred_region
        // Predicated region
        $region45: #{chess_transformer_forward.2} parent=43 // pred_check
          %p701 = pneg %p92
        $region46: #{chess_transformer_forward.2} parent=43 // pred_check_branch
          %703 = sbr.rel (%p701) target = $region48
        $region47: #{chess_transformer_forward.2} parent=43 // pred_region
          %s704 = sand.u32 %s82, 1
          %s705 = scalar_lea.sflag [#allocation6], %s704
          %s706 = sand.u32 %s82, 1
          %s707 = smul.addr %s706, 8
          %s708 = scalar_lea.vmem [#allocation5], %s707
          %s710 = ssub.s32 128, 128
          %711 = vsyncadd %s705, %s710
          %s712 = smul.addr %s67, 128
          %s713 = scalar_lea.hbm %s0, %s712
          %s715 = sshll.u32 %s708, 4
          %s716 = int_to_ptr.vmem [resolvable:$true] %s715
          %718 = dma.hbm_to_vmem [thread:$0]  %s713, 128, %s716, %s705
        $region48: #{chess_transformer_forward.2} parent=43 // pred_fallthru
          _
        // Predicated region
        $region49: #{chess_transformer_forward.2} parent=43 // pred_check
          %p719 = pneg %p265
        $region50: #{chess_transformer_forward.2} parent=43 // pred_check_branch
          %721 = sbr.rel (%p719) target = $region52
        $region51: #{chess_transformer_forward.2} parent=43 // pred_region
          %s722 = sand.u32 %s60, 1
          %s723 = scalar_lea.sflag [#allocation18], %s722
          %s724 = sand.u32 %s255, 1
          %s725 = smul.addr %s724, 16
          %s726 = scalar_lea.vmem [#allocation17], %s725
          %s728 = ssub.s32 256, 256
          %729 = vsyncadd %s723, %s728
          %s730 = smul.addr %s68, 4
          %s731 = smul.addr %s730, 64
          %s732 = scalar_lea.hbm %s8, %s731
          %s733 = sshll.u32 %s726, 4
          %s734 = int_to_ptr.vmem [resolvable:$true] %s733
          %739 = dma.hbm_to_vmem [thread:$0]  %s732, 256, %s734, %s723, 64, 64, 4
        $region52: #{chess_transformer_forward.2} parent=43 // pred_fallthru
          _
        // Predicated region
        $region53: #{chess_transformer_forward.2} parent=43 // pred_check
          %p740 = pneg %p291
        $region54: #{chess_transformer_forward.2} parent=43 // pred_check_branch
          %742 = sbr.rel (%p740) target = $region56
        $region55: #{chess_transformer_forward.2} parent=43 // pred_region
          %s743 = sand.u32 %s60, 1
          %s744 = scalar_lea.sflag [#allocation18], %s743
          %s745 = sand.u32 %s281, 1
          %s746 = scalar_lea.vmem [#allocation19], %s745
          %s748 = ssub.s32 16, 16
          %749 = vsyncadd %s744, %s748
          %s750 = smul.addr %s68, 16
          %s751 = scalar_lea.hbm %s9, %s750
          %s753 = sshll.u32 %s746, 4
          %s754 = int_to_ptr.vmem [resolvable:$true] %s753
          %756 = dma.hbm_to_vmem [thread:$0]  %s751, 16, %s754, %s744
        $region56: #{chess_transformer_forward.2} parent=43 // pred_fallthru
          _
        // Predicated region
        $region57: #{chess_transformer_forward.2} parent=43 // pred_check
          %p757 = pneg %p317
        $region58: #{chess_transformer_forward.2} parent=43 // pred_check_branch
          %759 = sbr.rel (%p757) target = $region60
        $region59: #{chess_transformer_forward.2} parent=43 // pred_region
          %s760 = sand.u32 %s60, 1
          %s761 = scalar_lea.sflag [#allocation21], %s760
          %s762 = sand.u32 %s307, 1
          %s763 = smul.addr %s762, 16
          %s764 = scalar_lea.vmem [#allocation20], %s763
          %s766 = ssub.s32 256, 256
          %767 = vsyncadd %s761, %s766
          %s768 = smul.addr %s68, 4
          %s769 = smul.addr %s768, 64
          %s770 = scalar_lea.hbm %s10, %s769
          %s771 = sshll.u32 %s764, 4
          %s772 = int_to_ptr.vmem [resolvable:$true] %s771
          %777 = dma.hbm_to_vmem [thread:$0]  %s770, 256, %s772, %s761, 64, 64, 4
        $region60: #{chess_transformer_forward.2} parent=43 // pred_fallthru
          _
        // Predicated region
        $region61: #{chess_transformer_forward.2} parent=43 // pred_check
          %p778 = pneg %p343
        $region62: #{chess_transformer_forward.2} parent=43 // pred_check_branch
          %780 = sbr.rel (%p778) target = $region64
        $region63: #{chess_transformer_forward.2} parent=43 // pred_region
          %s781 = sand.u32 %s60, 1
          %s782 = scalar_lea.sflag [#allocation21], %s781
          %s783 = sand.u32 %s333, 1
          %s784 = scalar_lea.vmem [#allocation22], %s783
          %s786 = ssub.s32 16, 16
          %787 = vsyncadd %s782, %s786
          %s788 = smul.addr %s68, 16
          %s789 = scalar_lea.hbm %s11, %s788
          %s791 = sshll.u32 %s784, 4
          %s792 = int_to_ptr.vmem [resolvable:$true] %s791
          %794 = dma.hbm_to_vmem [thread:$0]  %s789, 16, %s792, %s782
        $region64: #{chess_transformer_forward.2} parent=43 // pred_fallthru
          _
        // Predicated region
        $region65: #{chess_transformer_forward.2} parent=43 // pred_check
          %p795 = pneg %p369
        $region66: #{chess_transformer_forward.2} parent=43 // pred_check_branch
          %797 = sbr.rel (%p795) target = $region68
        $region67: #{chess_transformer_forward.2} parent=43 // pred_region
          %s798 = sand.u32 %s60, 1
          %s799 = scalar_lea.sflag [#allocation24], %s798
          %s800 = sand.u32 %s359, 1
          %s801 = scalar_lea.vmem [#allocation23], %s800
          %s803 = ssub.s32 16, 16
          %804 = vsyncadd %s799, %s803
          %s805 = smul.addr %s68, 16
          %s806 = scalar_lea.hbm %s12, %s805
          %s808 = sshll.u32 %s801, 4
          %s809 = int_to_ptr.vmem [resolvable:$true] %s808
          %811 = dma.hbm_to_vmem [thread:$0]  %s806, 16, %s809, %s799
        $region68: #{chess_transformer_forward.2} parent=43 // pred_fallthru
          _
        // Predicated region
        $region69: #{chess_transformer_forward.2} parent=43 // pred_check
          %p812 = pneg %p395
        $region70: #{chess_transformer_forward.2} parent=43 // pred_check_branch
          %814 = sbr.rel (%p812) target = $region72
        $region71: #{chess_transformer_forward.2} parent=43 // pred_region
          %s815 = sand.u32 %s60, 1
          %s816 = scalar_lea.sflag [#allocation24], %s815
          %s817 = sand.u32 %s385, 1
          %s818 = scalar_lea.vmem [#allocation25], %s817
          %s820 = ssub.s32 16, 16
          %821 = vsyncadd %s816, %s820
          %s822 = smul.addr %s68, 16
          %s823 = scalar_lea.hbm %s13, %s822
          %s825 = sshll.u32 %s818, 4
          %s826 = int_to_ptr.vmem [resolvable:$true] %s825
          %828 = dma.hbm_to_vmem [thread:$0]  %s823, 16, %s826, %s816
        $region72: #{chess_transformer_forward.2} parent=43 // pred_fallthru
          _
        // Predicated region
        $region73: #{chess_transformer_forward.2} parent=43 // pred_check
          %p829 = pneg %p421
        $region74: #{chess_transformer_forward.2} parent=43 // pred_check_branch
          %831 = sbr.rel (%p829) target = $region76
        $region75: #{chess_transformer_forward.2} parent=43 // pred_region
          %s832 = sand.u32 %s60, 1
          %s833 = scalar_lea.sflag [#allocation27], %s832
          %s834 = sand.u32 %s411, 1
          %s835 = smul.addr %s834, 16
          %s836 = scalar_lea.vmem [#allocation26], %s835
          %s838 = ssub.s32 256, 256
          %839 = vsyncadd %s833, %s838
          %s840 = smul.addr %s68, 4
          %s841 = smul.addr %s840, 64
          %s842 = scalar_lea.hbm %s14, %s841
          %s843 = sshll.u32 %s836, 4
          %s844 = int_to_ptr.vmem [resolvable:$true] %s843
          %849 = dma.hbm_to_vmem [thread:$0]  %s842, 256, %s844, %s833, 64, 64, 4
        $region76: #{chess_transformer_forward.2} parent=43 // pred_fallthru
          _
        // Predicated region
        $region77: #{chess_transformer_forward.2} parent=43 // pred_check
          %p850 = pneg %p447
        $region78: #{chess_transformer_forward.2} parent=43 // pred_check_branch
          %852 = sbr.rel (%p850) target = $region80
        $region79: #{chess_transformer_forward.2} parent=43 // pred_region
          %s853 = sand.u32 %s60, 1
          %s854 = scalar_lea.sflag [#allocation27], %s853
          %s855 = sand.u32 %s437, 1
          %s856 = scalar_lea.vmem [#allocation28], %s855
          %s858 = ssub.s32 16, 16
          %859 = vsyncadd %s854, %s858
          %s860 = smul.addr %s68, 16
          %s861 = scalar_lea.hbm %s15, %s860
          %s863 = sshll.u32 %s856, 4
          %s864 = int_to_ptr.vmem [resolvable:$true] %s863
          %866 = dma.hbm_to_vmem [thread:$0]  %s861, 16, %s864, %s854
        $region80: #{chess_transformer_forward.2} parent=43 // pred_fallthru
          _
        // Predicated region
        $region81: #{chess_transformer_forward.2} parent=43 // pred_check
          %p867 = pneg %p473
        $region82: #{chess_transformer_forward.2} parent=43 // pred_check_branch
          %869 = sbr.rel (%p867) target = $region84
        $region83: #{chess_transformer_forward.2} parent=43 // pred_region
          %s870 = sand.u32 %s60, 1
          %s871 = scalar_lea.sflag [#allocation30], %s870
          %s872 = sand.u32 %s463, 1
          %s873 = smul.addr %s872, 32
          %s874 = scalar_lea.vmem [#allocation29], %s873
          %s876 = ssub.s32 512, 512
          %877 = vsyncadd %s871, %s876
          %s878 = smul.addr %s68, 8
          %s879 = smul.addr %s878, 64
          %s880 = scalar_lea.hbm %s16, %s879
          %s881 = sshll.u32 %s874, 4
          %s882 = int_to_ptr.vmem [resolvable:$true] %s881
          %887 = dma.hbm_to_vmem [thread:$0]  %s880, 512, %s882, %s871, 64, 64, 4
        $region84: #{chess_transformer_forward.2} parent=43 // pred_fallthru
          _
        // Predicated region
        $region85: #{chess_transformer_forward.2} parent=43 // pred_check
          %p888 = pneg %p499
        $region86: #{chess_transformer_forward.2} parent=43 // pred_check_branch
          %890 = sbr.rel (%p888) target = $region88
        $region87: #{chess_transformer_forward.2} parent=43 // pred_region
          %s891 = sand.u32 %s60, 1
          %s892 = scalar_lea.sflag [#allocation30], %s891
          %s893 = sand.u32 %s489, 1
          %s894 = scalar_lea.vmem [#allocation31], %s893
          %s896 = ssub.s32 16, 16
          %897 = vsyncadd %s892, %s896
          %s898 = smul.addr %s68, 16
          %s899 = scalar_lea.hbm %s17, %s898
          %s901 = sshll.u32 %s894, 4
          %s902 = int_to_ptr.vmem [resolvable:$true] %s901
          %904 = dma.hbm_to_vmem [thread:$0]  %s899, 16, %s902, %s892
        $region88: #{chess_transformer_forward.2} parent=43 // pred_fallthru
          _
        // Predicated region
        $region89: #{chess_transformer_forward.2} parent=43 // pred_check
          %p905 = pneg %p525
        $region90: #{chess_transformer_forward.2} parent=43 // pred_check_branch
          %907 = sbr.rel (%p905) target = $region92
        $region91: #{chess_transformer_forward.2} parent=43 // pred_region
          %s908 = sand.u32 %s60, 1
          %s909 = scalar_lea.sflag [#allocation33], %s908
          %s910 = sand.u32 %s515, 1
          %s911 = scalar_lea.vmem [#allocation32], %s910
          %s913 = ssub.s32 16, 16
          %914 = vsyncadd %s909, %s913
          %s915 = smul.addr %s68, 16
          %s916 = scalar_lea.hbm %s18, %s915
          %s918 = sshll.u32 %s911, 4
          %s919 = int_to_ptr.vmem [resolvable:$true] %s918
          %921 = dma.hbm_to_vmem [thread:$0]  %s916, 16, %s919, %s909
        $region92: #{chess_transformer_forward.2} parent=43 // pred_fallthru
          _
        // Predicated region
        $region93: #{chess_transformer_forward.2} parent=43 // pred_check
          %p922 = pneg %p551
        $region94: #{chess_transformer_forward.2} parent=43 // pred_check_branch
          %924 = sbr.rel (%p922) target = $region96
        $region95: #{chess_transformer_forward.2} parent=43 // pred_region
          %s925 = sand.u32 %s60, 1
          %s926 = scalar_lea.sflag [#allocation33], %s925
          %s927 = sand.u32 %s541, 1
          %s928 = scalar_lea.vmem [#allocation34], %s927
          %s930 = ssub.s32 16, 16
          %931 = vsyncadd %s926, %s930
          %s932 = smul.addr %s68, 16
          %s933 = scalar_lea.hbm %s19, %s932
          %s935 = sshll.u32 %s928, 4
          %s936 = int_to_ptr.vmem [resolvable:$true] %s935
          %938 = dma.hbm_to_vmem [thread:$0]  %s933, 16, %s936, %s926
        $region96: #{chess_transformer_forward.2} parent=43 // pred_fallthru
          _
      $region44: #{chess_transformer_forward.2} parent=5 // pred_fallthru
        _
      %p939 = scmp.le.s32.totalorder 1, %s60
      %p940 = scmp.lt.s32.totalorder %s60, 5
      %p941 = pnand %p939, %p940
      %p942 = pneg %p941
      // Predicated region
      $region97: #{chess_transformer_forward.2} parent=5 // pred_check
        _
      $region98: #{chess_transformer_forward.2} parent=5 // pred_check_branch
        %944 = sbr.rel (%p941) target = $region100
      $region99: #{chess_transformer_forward.2} parent=5 // pred_region
        %s945 = ssub.s32 %s60, 1
        %s946 = sand.u32 %s85, 1
        %s947 = scalar_lea.sflag [#allocation6], %s946
        %s948 = sand.u32 %s85, 1
        %s949 = smul.addr %s948, 8
        %s950 = scalar_lea.vmem [#allocation5], %s949
        // Predicated region
        $region101: #{chess_transformer_forward.2} parent=99 // pred_check
          %p951 = pneg %p98
        $region102: #{chess_transformer_forward.2} parent=99 // pred_check_branch
          %953 = sbr.rel (%p951) target = $region104
        $region103: #{chess_transformer_forward.2} parent=99 // pred_region
          %954 = dma.done %s947, 128
        $region104: #{chess_transformer_forward.2} parent=99 // pred_fallthru
          _
        // Predicated region
        $region105: #{chess_transformer_forward.2} parent=99 // pred_check
          %p955 = pneg %p119
        $region106: #{chess_transformer_forward.2} parent=99 // pred_check_branch
          %957 = sbr.rel (%p955) target = $region108
        $region107: #{chess_transformer_forward.2} parent=99 // pred_region
          %958 = dma.done [#allocation9], 128
        $region108: #{chess_transformer_forward.2} parent=99 // pred_fallthru
          _
        // Predicated region
        $region109: #{chess_transformer_forward.2} parent=99 // pred_check
          %p959 = pneg %p140
        $region110: #{chess_transformer_forward.2} parent=99 // pred_check_branch
          %961 = sbr.rel (%p959) target = $region112
        $region111: #{chess_transformer_forward.2} parent=99 // pred_region
          %962 = dma.done [#allocation9], 16
        $region112: #{chess_transformer_forward.2} parent=99 // pred_fallthru
          _
        // Predicated region
        $region113: #{chess_transformer_forward.2} parent=99 // pred_check
          %p963 = pneg %p161
        $region114: #{chess_transformer_forward.2} parent=99 // pred_check_branch
          %965 = sbr.rel (%p963) target = $region116
        $region115: #{chess_transformer_forward.2} parent=99 // pred_region
          %966 = dma.done [#allocation12], 128
        $region116: #{chess_transformer_forward.2} parent=99 // pred_fallthru
          _
        // Predicated region
        $region117: #{chess_transformer_forward.2} parent=99 // pred_check
          %p967 = pneg %p182
        $region118: #{chess_transformer_forward.2} parent=99 // pred_check_branch
          %969 = sbr.rel (%p967) target = $region120
        $region119: #{chess_transformer_forward.2} parent=99 // pred_region
          %970 = dma.done [#allocation12], 128
        $region120: #{chess_transformer_forward.2} parent=99 // pred_fallthru
          _
        // Predicated region
        $region121: #{chess_transformer_forward.2} parent=99 // pred_check
          %p971 = pneg %p203
        $region122: #{chess_transformer_forward.2} parent=99 // pred_check_branch
          %973 = sbr.rel (%p971) target = $region124
        $region123: #{chess_transformer_forward.2} parent=99 // pred_region
          %974 = dma.done [#allocation15], 16
        $region124: #{chess_transformer_forward.2} parent=99 // pred_fallthru
          _
        // Predicated region
        $region125: #{chess_transformer_forward.2} parent=99 // pred_check
          %p975 = pneg %p224
        $region126: #{chess_transformer_forward.2} parent=99 // pred_check_branch
          %977 = sbr.rel (%p975) target = $region128
        $region127: #{chess_transformer_forward.2} parent=99 // pred_region
          %978 = dma.done [#allocation15], 512
        $region128: #{chess_transformer_forward.2} parent=99 // pred_fallthru
          _
        %s979 = sand.u32 %s65, 1
        %s980 = scalar_lea.sflag [#allocation18], %s979
        %s981 = sand.u32 %s258, 1
        %s982 = smul.addr %s981, 16
        %s983 = scalar_lea.vmem [#allocation17], %s982
        // Predicated region
        $region129: #{chess_transformer_forward.2} parent=99 // pred_check
          %p984 = pneg %p271
        $region130: #{chess_transformer_forward.2} parent=99 // pred_check_branch
          %986 = sbr.rel (%p984) target = $region132
        $region131: #{chess_transformer_forward.2} parent=99 // pred_region
          %987 = dma.done %s980, 256
        $region132: #{chess_transformer_forward.2} parent=99 // pred_fallthru
          _
        %s988 = sand.u32 %s65, 1
        %s989 = scalar_lea.sflag [#allocation18], %s988
        %s990 = sand.u32 %s284, 1
        %s991 = scalar_lea.vmem [#allocation19], %s990
        // Predicated region
        $region133: #{chess_transformer_forward.2} parent=99 // pred_check
          %p992 = pneg %p297
        $region134: #{chess_transformer_forward.2} parent=99 // pred_check_branch
          %994 = sbr.rel (%p992) target = $region136
        $region135: #{chess_transformer_forward.2} parent=99 // pred_region
          %995 = dma.done %s989, 16
        $region136: #{chess_transformer_forward.2} parent=99 // pred_fallthru
          _
        %s996 = sand.u32 %s65, 1
        %s997 = scalar_lea.sflag [#allocation21], %s996
        %s998 = sand.u32 %s310, 1
        %s999 = smul.addr %s998, 16
        %s1000 = scalar_lea.vmem [#allocation20], %s999
        // Predicated region
        $region137: #{chess_transformer_forward.2} parent=99 // pred_check
          %p1001 = pneg %p323
        $region138: #{chess_transformer_forward.2} parent=99 // pred_check_branch
          %1003 = sbr.rel (%p1001) target = $region140
        $region139: #{chess_transformer_forward.2} parent=99 // pred_region
          %1004 = dma.done %s997, 256
        $region140: #{chess_transformer_forward.2} parent=99 // pred_fallthru
          _
        %s1005 = sand.u32 %s65, 1
        %s1006 = scalar_lea.sflag [#allocation21], %s1005
        %s1007 = sand.u32 %s336, 1
        %s1008 = scalar_lea.vmem [#allocation22], %s1007
        // Predicated region
        $region141: #{chess_transformer_forward.2} parent=99 // pred_check
          %p1009 = pneg %p349
        $region142: #{chess_transformer_forward.2} parent=99 // pred_check_branch
          %1011 = sbr.rel (%p1009) target = $region144
        $region143: #{chess_transformer_forward.2} parent=99 // pred_region
          %1012 = dma.done %s1006, 16
        $region144: #{chess_transformer_forward.2} parent=99 // pred_fallthru
          _
        %s1013 = sand.u32 %s65, 1
        %s1014 = scalar_lea.sflag [#allocation24], %s1013
        %s1015 = sand.u32 %s362, 1
        %s1016 = scalar_lea.vmem [#allocation23], %s1015
        // Predicated region
        $region145: #{chess_transformer_forward.2} parent=99 // pred_check
          %p1017 = pneg %p375
        $region146: #{chess_transformer_forward.2} parent=99 // pred_check_branch
          %1019 = sbr.rel (%p1017) target = $region148
        $region147: #{chess_transformer_forward.2} parent=99 // pred_region
          %1020 = dma.done %s1014, 16
        $region148: #{chess_transformer_forward.2} parent=99 // pred_fallthru
          _
        %s1021 = sand.u32 %s65, 1
        %s1022 = scalar_lea.sflag [#allocation24], %s1021
        %s1023 = sand.u32 %s388, 1
        %s1024 = scalar_lea.vmem [#allocation25], %s1023
        // Predicated region
        $region149: #{chess_transformer_forward.2} parent=99 // pred_check
          %p1025 = pneg %p401
        $region150: #{chess_transformer_forward.2} parent=99 // pred_check_branch
          %1027 = sbr.rel (%p1025) target = $region152
        $region151: #{chess_transformer_forward.2} parent=99 // pred_region
          %1028 = dma.done %s1022, 16
        $region152: #{chess_transformer_forward.2} parent=99 // pred_fallthru
          _
        %s1029 = sand.u32 %s65, 1
        %s1030 = scalar_lea.sflag [#allocation27], %s1029
        %s1031 = sand.u32 %s414, 1
        %s1032 = smul.addr %s1031, 16
        %s1033 = scalar_lea.vmem [#allocation26], %s1032
        // Predicated region
        $region153: #{chess_transformer_forward.2} parent=99 // pred_check
          %p1034 = pneg %p427
        $region154: #{chess_transformer_forward.2} parent=99 // pred_check_branch
          %1036 = sbr.rel (%p1034) target = $region156
        $region155: #{chess_transformer_forward.2} parent=99 // pred_region
          %1037 = dma.done %s1030, 256
        $region156: #{chess_transformer_forward.2} parent=99 // pred_fallthru
          _
        %s1038 = sand.u32 %s65, 1
        %s1039 = scalar_lea.sflag [#allocation27], %s1038
        %s1040 = sand.u32 %s440, 1
        %s1041 = scalar_lea.vmem [#allocation28], %s1040
        // Predicated region
        $region157: #{chess_transformer_forward.2} parent=99 // pred_check
          %p1042 = pneg %p453
        $region158: #{chess_transformer_forward.2} parent=99 // pred_check_branch
          %1044 = sbr.rel (%p1042) target = $region160
        $region159: #{chess_transformer_forward.2} parent=99 // pred_region
          %1045 = dma.done %s1039, 16
        $region160: #{chess_transformer_forward.2} parent=99 // pred_fallthru
          _
        %s1046 = sand.u32 %s65, 1
        %s1047 = scalar_lea.sflag [#allocation30], %s1046
        %s1048 = sand.u32 %s466, 1
        %s1049 = smul.addr %s1048, 32
        %s1050 = scalar_lea.vmem [#allocation29], %s1049
        // Predicated region
        $region161: #{chess_transformer_forward.2} parent=99 // pred_check
          %p1051 = pneg %p479
        $region162: #{chess_transformer_forward.2} parent=99 // pred_check_branch
          %1053 = sbr.rel (%p1051) target = $region164
        $region163: #{chess_transformer_forward.2} parent=99 // pred_region
          %1054 = dma.done %s1047, 512
        $region164: #{chess_transformer_forward.2} parent=99 // pred_fallthru
          _
        %s1055 = sand.u32 %s65, 1
        %s1056 = scalar_lea.sflag [#allocation30], %s1055
        %s1057 = sand.u32 %s492, 1
        %s1058 = scalar_lea.vmem [#allocation31], %s1057
        // Predicated region
        $region165: #{chess_transformer_forward.2} parent=99 // pred_check
          %p1059 = pneg %p505
        $region166: #{chess_transformer_forward.2} parent=99 // pred_check_branch
          %1061 = sbr.rel (%p1059) target = $region168
        $region167: #{chess_transformer_forward.2} parent=99 // pred_region
          %1062 = dma.done %s1056, 16
        $region168: #{chess_transformer_forward.2} parent=99 // pred_fallthru
          _
        %s1063 = sand.u32 %s65, 1
        %s1064 = scalar_lea.sflag [#allocation33], %s1063
        %s1065 = sand.u32 %s518, 1
        %s1066 = scalar_lea.vmem [#allocation32], %s1065
        // Predicated region
        $region169: #{chess_transformer_forward.2} parent=99 // pred_check
          %p1067 = pneg %p531
        $region170: #{chess_transformer_forward.2} parent=99 // pred_check_branch
          %1069 = sbr.rel (%p1067) target = $region172
        $region171: #{chess_transformer_forward.2} parent=99 // pred_region
          %1070 = dma.done %s1064, 16
        $region172: #{chess_transformer_forward.2} parent=99 // pred_fallthru
          _
        %s1071 = sand.u32 %s65, 1
        %s1072 = scalar_lea.sflag [#allocation33], %s1071
        %s1073 = sand.u32 %s544, 1
        %s1074 = scalar_lea.vmem [#allocation34], %s1073
        // Predicated region
        $region173: #{chess_transformer_forward.2} parent=99 // pred_check
          %p1075 = pneg %p557
        $region174: #{chess_transformer_forward.2} parent=99 // pred_check_branch
          %1077 = sbr.rel (%p1075) target = $region176
        $region175: #{chess_transformer_forward.2} parent=99 // pred_region
          %1078 = dma.done %s1072, 16
        $region176: #{chess_transformer_forward.2} parent=99 // pred_fallthru
          _
        %s1079 = sand.u32 %s85, 1
        %s1080 = scalar_lea.sflag [#allocation6], %s1079
        %s1081 = sand.u32 %s85, 1
        %s1082 = smul.addr %s1081, 8
        %s1083 = scalar_lea.vmem [#allocation5], %s1082
        %p1084 = pneg %p98
        %p1085 = pneg %p95
        %p1086 = pneg %p119
        %p1087 = pneg %p116
        %p1088 = pneg %p140
        %p1089 = pneg %p137
        %p1090 = pneg %p161
        %p1091 = pneg %p158
        %p1092 = pneg %p182
        %p1093 = pneg %p179
        %p1094 = pneg %p203
        %p1095 = pneg %p200
        %p1096 = pneg %p224
        %p1097 = pneg %p221
        %p1098 = pneg %p245
        %p1099 = pneg %p242
        %s1100 = sand.u32 %s65, 1
        %s1101 = scalar_lea.sflag [#allocation18], %s1100
        %s1102 = sand.u32 %s258, 1
        %s1103 = smul.addr %s1102, 16
        %s1104 = scalar_lea.vmem [#allocation17], %s1103
        %p1105 = pneg %p271
        %p1106 = pneg %p268
        %s1107 = sand.u32 %s65, 1
        %s1108 = scalar_lea.sflag [#allocation18], %s1107
        %s1109 = sand.u32 %s284, 1
        %s1110 = scalar_lea.vmem [#allocation19], %s1109
        %p1111 = pneg %p297
        %p1112 = pneg %p294
        %s1113 = sand.u32 %s65, 1
        %s1114 = scalar_lea.sflag [#allocation21], %s1113
        %s1115 = sand.u32 %s310, 1
        %s1116 = smul.addr %s1115, 16
        %s1117 = scalar_lea.vmem [#allocation20], %s1116
        %p1118 = pneg %p323
        %p1119 = pneg %p320
        %s1120 = sand.u32 %s65, 1
        %s1121 = scalar_lea.sflag [#allocation21], %s1120
        %s1122 = sand.u32 %s336, 1
        %s1123 = scalar_lea.vmem [#allocation22], %s1122
        %p1124 = pneg %p349
        %p1125 = pneg %p346
        %s1126 = sand.u32 %s65, 1
        %s1127 = scalar_lea.sflag [#allocation24], %s1126
        %s1128 = sand.u32 %s362, 1
        %s1129 = scalar_lea.vmem [#allocation23], %s1128
        %p1130 = pneg %p375
        %p1131 = pneg %p372
        %s1132 = sand.u32 %s65, 1
        %s1133 = scalar_lea.sflag [#allocation24], %s1132
        %s1134 = sand.u32 %s388, 1
        %s1135 = scalar_lea.vmem [#allocation25], %s1134
        %p1136 = pneg %p401
        %p1137 = pneg %p398
        %s1138 = sand.u32 %s65, 1
        %s1139 = scalar_lea.sflag [#allocation27], %s1138
        %s1140 = sand.u32 %s414, 1
        %s1141 = smul.addr %s1140, 16
        %s1142 = scalar_lea.vmem [#allocation26], %s1141
        %p1143 = pneg %p427
        %p1144 = pneg %p424
        %s1145 = sand.u32 %s65, 1
        %s1146 = scalar_lea.sflag [#allocation27], %s1145
        %s1147 = sand.u32 %s440, 1
        %s1148 = scalar_lea.vmem [#allocation28], %s1147
        %p1149 = pneg %p453
        %p1150 = pneg %p450
        %s1151 = sand.u32 %s65, 1
        %s1152 = scalar_lea.sflag [#allocation30], %s1151
        %s1153 = sand.u32 %s466, 1
        %s1154 = smul.addr %s1153, 32
        %s1155 = scalar_lea.vmem [#allocation29], %s1154
        %p1156 = pneg %p479
        %p1157 = pneg %p476
        %s1158 = sand.u32 %s65, 1
        %s1159 = scalar_lea.sflag [#allocation30], %s1158
        %s1160 = sand.u32 %s492, 1
        %s1161 = scalar_lea.vmem [#allocation31], %s1160
        %p1162 = pneg %p505
        %p1163 = pneg %p502
        %s1164 = sand.u32 %s65, 1
        %s1165 = scalar_lea.sflag [#allocation33], %s1164
        %s1166 = sand.u32 %s518, 1
        %s1167 = scalar_lea.vmem [#allocation32], %s1166
        %p1168 = pneg %p531
        %p1169 = pneg %p528
        %s1170 = sand.u32 %s65, 1
        %s1171 = scalar_lea.sflag [#allocation33], %s1170
        %s1172 = sand.u32 %s544, 1
        %s1173 = scalar_lea.vmem [#allocation34], %s1172
        %p1174 = pneg %p557
        %p1175 = pneg %p554
        %p1176 = pneg %p583
        %p1177 = pneg %p580
        %s1178 = sand.u32 %s570, 1
        %s1179 = scalar_lea.sflag [#allocation7], %s1178
        %s1180 = sand.u32 %s570, 1
        %s1181 = smul.addr %s1180, 8
        %s1182 = scalar_lea.vmem [#allocation35], %s1181
        %p1183 = pneg %p609
        %p1184 = pneg %p606
        %s1185 = sand.u32 %s596, 1
        %s1186 = scalar_lea.sflag [#allocation37], %s1185
        %s1187 = sand.u32 %s596, 1
        %s1188 = scalar_lea.vmem [#allocation36], %s1187
        %p1190 = scmp.eq.s32.totalorder %s70, 0
        // Predicated region
        $region177: #{chess_transformer_forward.2} parent=99 // pred_check
          %p1191 = pneg %p1190
        $region178: #{chess_transformer_forward.2} parent=99 // pred_check_branch
          %1193 = sbr.rel (%p1191) target = $region180
        $region179: #{chess_transformer_forward.2} parent=99 // pred_region
          %v1194 = vld [vmem:[%s950] sm:$0xff]
          %v1195 = vpack.c.bf16 %v1194, %v1194
          %v1196 = vld [vmem:[#allocation8] sm:$0xf]
          %v1197 = vld [vmem:[#allocation8 + $0x4] sm:$0xf]
          %v1198 = vld [vmem:[#allocation10] sm:$0x1]
          %v1200 = vlaneseq
          %v1201 = vshrl.u32 %v1200, 7
          %v1202 = vsub.s32 0, %v1201
          %v1203 = vrot.slane %v1198, %v1202
          %v1207 = vunpack.c.l.b16 %v1196
          %v1208 = vunpack.c.l.b16 %v1197
          %v1209 = vpack.c.b16 %v1208, %v1207
          %vm1211 = vcmask 130048
          %v1213 = vsel %vm1211, %v1195, 0
          %1215 = vmatprep.subr.bf16.mxu0 0
          %1216 = vmatpush1.bf16.msra.mxu0 %v1209
          %1217 = vmatprep.subr.bf16.mxu0 0
          %1218 = vmatpush1.bf16.msra.mxu0 0
          %1219 = vmatprep.subr.bf16.mxu0 0
          %1220 = vmatpush1.bf16.msra.mxu0 0
          %1221 = vmatprep.subr.bf16.mxu0 0
          %1222 = vmatpush1.bf16.msra.mxu0 0
          %1223 = vmatprep.subr.bf16.mxu0 0
          %1224 = vmatpush1.bf16.msra.mxu0 0
          %1225 = vmatprep.subr.bf16.mxu0 0
          %1226 = vmatpush1.bf16.msra.mxu0 0
          %1227 = vmatprep.subr.bf16.mxu0 0
          %1228 = vmatpush1.bf16.msra.mxu0 0
          %1229 = vmatprep.subr.bf16.mxu0 0
          %1230 = vmatpush1.bf16.msra.mxu0 0
          %1231 = vmatprep.subr.bf16.mxu0 0
          %1232 = vmatpush1.bf16.msra.mxu0 0
          %1233 = vmatprep.subr.bf16.mxu0 0
          %1234 = vmatpush1.bf16.msra.mxu0 0
          %1235 = vmatprep.subr.bf16.mxu0 0
          %1236 = vmatpush1.bf16.msra.mxu0 0
          %1237 = vmatprep.subr.bf16.mxu0 0
          %1238 = vmatpush1.bf16.msra.mxu0 0
          %1239 = vmatprep.subr.bf16.mxu0 0
          %1240 = vmatpush1.bf16.msra.mxu0 0
          %1241 = vmatprep.subr.bf16.mxu0 0
          %1242 = vmatpush1.bf16.msra.mxu0 0
          %1243 = vmatprep.subr.bf16.mxu0 0
          %1244 = vmatpush1.bf16.msra.mxu0 0
          %1245 = vmatprep.subr.bf16.mxu0 0
          %1246 = vmatpush1.bf16.msra.mxu0 0
          %1247 = vmatprep.mubr.bf16.mxu0 0
          %1248 = vmatmul.mubr.bf16.gmra.mrb[0].mxu0 %v1213
          %v1249 = vpop.f32.mrb[0].mxu0
          %v1250 = vadd.f32 %v1203, %v1249
          %v1251 = vpop.f32.mrb[0].mxu0
          %v1252 = vpop.f32.mrb[0].mxu0
          %v1253 = vpop.f32.mrb[0].mxu0
          %1254 = vdwg.mxu0
          %v1255 = vld [vmem:[#allocation11] sm:$0xff]
          %v1256 = vadd.f32 %v1250, %v1255
          %v1257 = vld [vmem:[#allocation13] sm:$0xff]
          %v1258 = vmul.f32 %v1256, %v1257
          %vm1259 = vcmask 261120
          %1260 = vst.msk [vmem:[#allocation2] sm:$0xff] %vm1259, %v1258
        $region180: #{chess_transformer_forward.2} parent=99 // pred_fallthru
          _
        %v1261 = vld [vmem:[#allocation2] sm:$0xff]
        %v1262 = vpack.c.bf16 %v1261, %v1261
        %v1263 = vld [vmem:[%s983] sm:$0xf]
        %v1264 = vld [vmem:[%s983 + $0x4] sm:$0xf]
        %v1265 = vld [vmem:[%s983 + $0x8] sm:$0xf]
        %v1266 = vld [vmem:[%s983 + $0xc] sm:$0xf]
        %v1267 = vld [vmem:[%s991] sm:$0x1]
        %v1269 = vlaneseq
        %v1270 = vshrl.u32 %v1269, 7
        %v1271 = vsub.s32 0, %v1270
        %v1272 = vrot.slane %v1267, %v1271
        %v1278 = vunpack.c.l.b16 %v1263
        %v1279 = vunpack.c.l.b16 %v1264
        %v1280 = vunpack.c.l.b16 %v1265
        %v1281 = vunpack.c.l.b16 %v1266
        %v1282 = vpack.c.b16 %v1279, %v1278
        %v1283 = vpack.c.b16 %v1281, %v1280
        %vm1286 = vcmask 261120
        %v1288 = vsel %vm1286, %v1262, 0
        %1290 = vmatprep.subr.bf16.mxu0 0
        %1291 = vmatpush1.bf16.msra.mxu0 %v1282
        %1292 = vmatprep.subr.bf16.mxu0 0
        %1293 = vmatpush1.bf16.msra.mxu0 %v1283
        %1294 = vmatprep.subr.bf16.mxu0 0
        %1295 = vmatpush1.bf16.msra.mxu0 0
        %1296 = vmatprep.subr.bf16.mxu0 0
        %1297 = vmatpush1.bf16.msra.mxu0 0
        %1298 = vmatprep.subr.bf16.mxu0 0
        %1299 = vmatpush1.bf16.msra.mxu0 0
        %1300 = vmatprep.subr.bf16.mxu0 0
        %1301 = vmatpush1.bf16.msra.mxu0 0
        %1302 = vmatprep.subr.bf16.mxu0 0
        %1303 = vmatpush1.bf16.msra.mxu0 0
        %1304 = vmatprep.subr.bf16.mxu0 0
        %1305 = vmatpush1.bf16.msra.mxu0 0
        %1306 = vmatprep.subr.bf16.mxu0 0
        %1307 = vmatpush1.bf16.msra.mxu0 0
        %1308 = vmatprep.subr.bf16.mxu0 0
        %1309 = vmatpush1.bf16.msra.mxu0 0
        %1310 = vmatprep.subr.bf16.mxu0 0
        %1311 = vmatpush1.bf16.msra.mxu0 0
        %1312 = vmatprep.subr.bf16.mxu0 0
        %1313 = vmatpush1.bf16.msra.mxu0 0
        %1314 = vmatprep.subr.bf16.mxu0 0
        %1315 = vmatpush1.bf16.msra.mxu0 0
        %1316 = vmatprep.subr.bf16.mxu0 0
        %1317 = vmatpush1.bf16.msra.mxu0 0
        %1318 = vmatprep.subr.bf16.mxu0 0
        %1319 = vmatpush1.bf16.msra.mxu0 0
        %1320 = vmatprep.subr.bf16.mxu0 0
        %1321 = vmatpush1.bf16.msra.mxu0 0
        %1322 = vmatprep.mubr.bf16.mxu0 0
        %1323 = vmatmul.mubr.bf16.gmra.mrb[0].mxu0 %v1288
        %v1324 = vpop.f32.mrb[0].mxu0
        %v1325 = vadd.f32 %v1272, %v1324
        %v1326 = vpop.f32.mrb[0].mxu0
        %v1327 = vpop.f32.mrb[0].mxu0
        %v1328 = vpop.f32.mrb[0].mxu0
        %1329 = vdwg.mxu0
        %v1330 = vpack.c.bf16 %v1325, %v1325
        %1332 = vrot.lane.b32.xlu0 %v1330, 96
        %v1333 = vpop.permute.xlu0 %1332
        %vm1334 = vcmask 64512
        %v1336 = vsel %vm1334, %v1330, 0
        %v1339 = vsel %vm1334, %v1333, 0
        %1341 = vmatprep.subr.bf16.mxu0 0
        %1342 = vmatpush1.bf16.xpose.msra.mxu0 %v1339
        %1343 = vmatprep.subr.bf16.mxu0 0
        %1344 = vmatpush1.bf16.xpose.msra.mxu0 0
        %1345 = vmatprep.subr.bf16.mxu0 0
        %1346 = vmatpush1.bf16.xpose.msra.mxu0 0
        %1347 = vmatprep.subr.bf16.mxu0 0
        %1348 = vmatpush1.bf16.xpose.msra.mxu0 0
        %1349 = vmatprep.subr.bf16.mxu0 0
        %1350 = vmatpush1.bf16.xpose.msra.mxu0 0
        %1351 = vmatprep.subr.bf16.mxu0 0
        %1352 = vmatpush1.bf16.xpose.msra.mxu0 0
        %1353 = vmatprep.subr.bf16.mxu0 0
        %1354 = vmatpush1.bf16.xpose.msra.mxu0 0
        %1355 = vmatprep.subr.bf16.mxu0 0
        %1356 = vmatpush1.bf16.xpose.msra.mxu0 0
        %1357 = vmatprep.subr.bf16.mxu0 0
        %1358 = vmatpush1.bf16.xpose.msra.mxu0 0
        %1359 = vmatprep.subr.bf16.mxu0 0
        %1360 = vmatpush1.bf16.xpose.msra.mxu0 0
        %1361 = vmatprep.subr.bf16.mxu0 0
        %1362 = vmatpush1.bf16.xpose.msra.mxu0 0
        %1363 = vmatprep.subr.bf16.mxu0 0
        %1364 = vmatpush1.bf16.xpose.msra.mxu0 0
        %1365 = vmatprep.subr.bf16.mxu0 0
        %1366 = vmatpush1.bf16.xpose.msra.mxu0 0
        %1367 = vmatprep.subr.bf16.mxu0 0
        %1368 = vmatpush1.bf16.xpose.msra.mxu0 0
        %1369 = vmatprep.subr.bf16.mxu0 0
        %1370 = vmatpush1.bf16.xpose.msra.mxu0 0
        %1371 = vmatprep.subr.bf16.mxu0 0
        %1372 = vmatpush1.bf16.xpose.msra.mxu0 0
        %1373 = vmatprep.mubr.bf16.mxu0 0
        %1374 = vmatmul.mubr.bf16.gmra.mrb[0].mxu0 %v1336
        %v1375 = vpop.f32.mrb[0].mxu0
        %v1376 = vadd.f32 0.0, %v1375
        %v1377 = vpop.f32.mrb[0].mxu0
        %v1378 = vpop.f32.mrb[0].mxu0
        %v1379 = vpop.f32.mrb[0].mxu0
        %1380 = vdwg.mxu0
        %v1381 = vsel %vm1334, %v1376, -inf
        %1382 = vmax.xlane.f32.xlu0 %v1381
        %v1383 = vpop.xlane.xlu0 %1382
        %v1384 = vsub.f32 %v1376, %v1383
        %v1385 = vmul.f32 %v1384, 1.442695
        %v1386 = vpow.pop %v1385
        %v1387 = vsel %vm1334, %v1386, 0.0
        %1388 = vadd.xlane.f32.xlu0 %v1387
        %v1389 = vpop.xlane.xlu0 %1388
        %v1390 = vrcp.pop %v1389
        %v1391 = vmul.f32 %v1386, %v1390
        %v1392 = vpack.c.bf16 %v1391, %v1391
        %1393 = vrot.lane.b32.xlu0 %v1330, 64
        %v1394 = vpop.permute.xlu0 %1393
        %v1396 = vsel %vm1334, %v1392, 0
        %vm1398 = vcmask 1043456
        %v1400 = vsel %vm1398, %v1394, 0
        %1402 = vmatprep.subr.bf16.mxu0 0
        %1403 = vmatpush1.bf16.msra.mxu0 %v1400
        %1404 = vmatprep.subr.bf16.mxu0 0
        %1405 = vmatpush1.bf16.msra.mxu0 0
        %1406 = vmatprep.subr.bf16.mxu0 0
        %1407 = vmatpush1.bf16.msra.mxu0 0
        %1408 = vmatprep.subr.bf16.mxu0 0
        %1409 = vmatpush1.bf16.msra.mxu0 0
        %1410 = vmatprep.subr.bf16.mxu0 0
        %1411 = vmatpush1.bf16.msra.mxu0 0
        %1412 = vmatprep.subr.bf16.mxu0 0
        %1413 = vmatpush1.bf16.msra.mxu0 0
        %1414 = vmatprep.subr.bf16.mxu0 0
        %1415 = vmatpush1.bf16.msra.mxu0 0
        %1416 = vmatprep.subr.bf16.mxu0 0
        %1417 = vmatpush1.bf16.msra.mxu0 0
        %1418 = vmatprep.subr.bf16.mxu0 0
        %1419 = vmatpush1.bf16.msra.mxu0 0
        %1420 = vmatprep.subr.bf16.mxu0 0
        %1421 = vmatpush1.bf16.msra.mxu0 0
        %1422 = vmatprep.subr.bf16.mxu0 0
        %1423 = vmatpush1.bf16.msra.mxu0 0
        %1424 = vmatprep.subr.bf16.mxu0 0
        %1425 = vmatpush1.bf16.msra.mxu0 0
        %1426 = vmatprep.subr.bf16.mxu0 0
        %1427 = vmatpush1.bf16.msra.mxu0 0
        %1428 = vmatprep.subr.bf16.mxu0 0
        %1429 = vmatpush1.bf16.msra.mxu0 0
        %1430 = vmatprep.subr.bf16.mxu0 0
        %1431 = vmatpush1.bf16.msra.mxu0 0
        %1432 = vmatprep.subr.bf16.mxu0 0
        %1433 = vmatpush1.bf16.msra.mxu0 0
        %1434 = vmatprep.mubr.bf16.mxu0 0
        %1435 = vmatmul.mubr.bf16.gmra.mrb[0].mxu0 %v1396
        %v1436 = vpop.f32.mrb[0].mxu0
        %v1437 = vadd.f32 0.0, %v1436
        %v1438 = vpop.f32.mrb[0].mxu0
        %v1439 = vpop.f32.mrb[0].mxu0
        %v1440 = vpop.f32.mrb[0].mxu0
        %1441 = vdwg.mxu0
        %1442 = vst.msk [vmem:[#allocation3] sm:$0xff] %vm1334, %v1437
        %1443 = vrot.lane.b32.xlu0 %v1330, 120
        %v1444 = vpop.permute.xlu0 %1443
        %1445 = vrot.lane.b32.xlu0 %v1330, 88
        %v1446 = vpop.permute.xlu0 %1445
        %v1448 = vsel %vm1334, %v1444, 0
        %v1451 = vsel %vm1334, %v1446, 0
        %1453 = vmatprep.subr.bf16.mxu0 0
        %1454 = vmatpush1.bf16.xpose.msra.mxu0 %v1451
        %1455 = vmatprep.subr.bf16.mxu0 0
        %1456 = vmatpush1.bf16.xpose.msra.mxu0 0
        %1457 = vmatprep.subr.bf16.mxu0 0
        %1458 = vmatpush1.bf16.xpose.msra.mxu0 0
        %1459 = vmatprep.subr.bf16.mxu0 0
        %1460 = vmatpush1.bf16.xpose.msra.mxu0 0
        %1461 = vmatprep.subr.bf16.mxu0 0
        %1462 = vmatpush1.bf16.xpose.msra.mxu0 0
        %1463 = vmatprep.subr.bf16.mxu0 0
        %1464 = vmatpush1.bf16.xpose.msra.mxu0 0
        %1465 = vmatprep.subr.bf16.mxu0 0
        %1466 = vmatpush1.bf16.xpose.msra.mxu0 0
        %1467 = vmatprep.subr.bf16.mxu0 0
        %1468 = vmatpush1.bf16.xpose.msra.mxu0 0
        %1469 = vmatprep.subr.bf16.mxu0 0
        %1470 = vmatpush1.bf16.xpose.msra.mxu0 0
        %1471 = vmatprep.subr.bf16.mxu0 0
        %1472 = vmatpush1.bf16.xpose.msra.mxu0 0
        %1473 = vmatprep.subr.bf16.mxu0 0
        %1474 = vmatpush1.bf16.xpose.msra.mxu0 0
        %1475 = vmatprep.subr.bf16.mxu0 0
        %1476 = vmatpush1.bf16.xpose.msra.mxu0 0
        %1477 = vmatprep.subr.bf16.mxu0 0
        %1478 = vmatpush1.bf16.xpose.msra.mxu0 0
        %1479 = vmatprep.subr.bf16.mxu0 0
        %1480 = vmatpush1.bf16.xpose.msra.mxu0 0
        %1481 = vmatprep.subr.bf16.mxu0 0
        %1482 = vmatpush1.bf16.xpose.msra.mxu0 0
        %1483 = vmatprep.subr.bf16.mxu0 0
        %1484 = vmatpush1.bf16.xpose.msra.mxu0 0
        %1485 = vmatprep.mubr.bf16.mxu0 0
        %1486 = vmatmul.mubr.bf16.gmra.mrb[0].mxu0 %v1448
        %v1487 = vpop.f32.mrb[0].mxu0
        %v1488 = vadd.f32 0.0, %v1487
        %v1489 = vpop.f32.mrb[0].mxu0
        %v1490 = vpop.f32.mrb[0].mxu0
        %v1491 = vpop.f32.mrb[0].mxu0
        %1492 = vdwg.mxu0
        %v1493 = vsel %vm1334, %v1488, -inf
        %1494 = vmax.xlane.f32.xlu0 %v1493
        %v1495 = vpop.xlane.xlu0 %1494
        %v1496 = vsub.f32 %v1488, %v1495
        %v1497 = vmul.f32 %v1496, 1.442695
        %v1498 = vpow.pop %v1497
        %v1499 = vsel %vm1334, %v1498, 0.0
        %1500 = vadd.xlane.f32.xlu0 %v1499
        %v1501 = vpop.xlane.xlu0 %1500
        %v1502 = vrcp.pop %v1501
        %v1503 = vmul.f32 %v1498, %v1502
        %v1504 = vpack.c.bf16 %v1503, %v1503
        %1505 = vrot.lane.b32.xlu0 %v1330, 56
        %v1506 = vpop.permute.xlu0 %1505
        %v1508 = vsel %vm1334, %v1504, 0
        %v1511 = vsel %vm1398, %v1506, 0
        %1513 = vmatprep.subr.bf16.mxu0 0
        %1514 = vmatpush1.bf16.msra.mxu0 %v1511
        %1515 = vmatprep.subr.bf16.mxu0 0
        %1516 = vmatpush1.bf16.msra.mxu0 0
        %1517 = vmatprep.subr.bf16.mxu0 0
        %1518 = vmatpush1.bf16.msra.mxu0 0
        %1519 = vmatprep.subr.bf16.mxu0 0
        %1520 = vmatpush1.bf16.msra.mxu0 0
        %1521 = vmatprep.subr.bf16.mxu0 0
        %1522 = vmatpush1.bf16.msra.mxu0 0
        %1523 = vmatprep.subr.bf16.mxu0 0
        %1524 = vmatpush1.bf16.msra.mxu0 0
        %1525 = vmatprep.subr.bf16.mxu0 0
        %1526 = vmatpush1.bf16.msra.mxu0 0
        %1527 = vmatprep.subr.bf16.mxu0 0
        %1528 = vmatpush1.bf16.msra.mxu0 0
        %1529 = vmatprep.subr.bf16.mxu0 0
        %1530 = vmatpush1.bf16.msra.mxu0 0
        %1531 = vmatprep.subr.bf16.mxu0 0
        %1532 = vmatpush1.bf16.msra.mxu0 0
        %1533 = vmatprep.subr.bf16.mxu0 0
        %1534 = vmatpush1.bf16.msra.mxu0 0
        %1535 = vmatprep.subr.bf16.mxu0 0
        %1536 = vmatpush1.bf16.msra.mxu0 0
        %1537 = vmatprep.subr.bf16.mxu0 0
        %1538 = vmatpush1.bf16.msra.mxu0 0
        %1539 = vmatprep.subr.bf16.mxu0 0
        %1540 = vmatpush1.bf16.msra.mxu0 0
        %1541 = vmatprep.subr.bf16.mxu0 0
        %1542 = vmatpush1.bf16.msra.mxu0 0
        %1543 = vmatprep.subr.bf16.mxu0 0
        %1544 = vmatpush1.bf16.msra.mxu0 0
        %1545 = vmatprep.mubr.bf16.mxu0 0
        %1546 = vmatmul.mubr.bf16.gmra.mrb[0].mxu0 %v1508
        %v1547 = vpop.f32.mrb[0].mxu0
        %v1548 = vadd.f32 0.0, %v1547
        %v1549 = vpop.f32.mrb[0].mxu0
        %v1550 = vpop.f32.mrb[0].mxu0
        %v1551 = vpop.f32.mrb[0].mxu0
        %1552 = vdwg.mxu0
        %1554 = vrot.lane.b32.xlu0 %v1548, 8
        %v1555 = vpop.permute.xlu0 %1554
        %vm1557 = vcmask 130112
        %1558 = vst.msk [vmem:[#allocation3] sm:$0xff] %vm1557, %v1555
        %1559 = vrot.lane.b32.xlu0 %v1330, 112
        %v1560 = vpop.permute.xlu0 %1559
        %1561 = vrot.lane.b32.xlu0 %v1330, 80
        %v1562 = vpop.permute.xlu0 %1561
        %v1564 = vsel %vm1334, %v1560, 0
        %v1567 = vsel %vm1334, %v1562, 0
        %1569 = vmatprep.subr.bf16.mxu0 0
        %1570 = vmatpush1.bf16.xpose.msra.mxu0 %v1567
        %1571 = vmatprep.subr.bf16.mxu0 0
        %1572 = vmatpush1.bf16.xpose.msra.mxu0 0
        %1573 = vmatprep.subr.bf16.mxu0 0
        %1574 = vmatpush1.bf16.xpose.msra.mxu0 0
        %1575 = vmatprep.subr.bf16.mxu0 0
        %1576 = vmatpush1.bf16.xpose.msra.mxu0 0
        %1577 = vmatprep.subr.bf16.mxu0 0
        %1578 = vmatpush1.bf16.xpose.msra.mxu0 0
        %1579 = vmatprep.subr.bf16.mxu0 0
        %1580 = vmatpush1.bf16.xpose.msra.mxu0 0
        %1581 = vmatprep.subr.bf16.mxu0 0
        %1582 = vmatpush1.bf16.xpose.msra.mxu0 0
        %1583 = vmatprep.subr.bf16.mxu0 0
        %1584 = vmatpush1.bf16.xpose.msra.mxu0 0
        %1585 = vmatprep.subr.bf16.mxu0 0
        %1586 = vmatpush1.bf16.xpose.msra.mxu0 0
        %1587 = vmatprep.subr.bf16.mxu0 0
        %1588 = vmatpush1.bf16.xpose.msra.mxu0 0
        %1589 = vmatprep.subr.bf16.mxu0 0
        %1590 = vmatpush1.bf16.xpose.msra.mxu0 0
        %1591 = vmatprep.subr.bf16.mxu0 0
        %1592 = vmatpush1.bf16.xpose.msra.mxu0 0
        %1593 = vmatprep.subr.bf16.mxu0 0
        %1594 = vmatpush1.bf16.xpose.msra.mxu0 0
        %1595 = vmatprep.subr.bf16.mxu0 0
        %1596 = vmatpush1.bf16.xpose.msra.mxu0 0
        %1597 = vmatprep.subr.bf16.mxu0 0
        %1598 = vmatpush1.bf16.xpose.msra.mxu0 0
        %1599 = vmatprep.subr.bf16.mxu0 0
        %1600 = vmatpush1.bf16.xpose.msra.mxu0 0
        %1601 = vmatprep.mubr.bf16.mxu0 0
        %1602 = vmatmul.mubr.bf16.gmra.mrb[0].mxu0 %v1564
        %v1603 = vpop.f32.mrb[0].mxu0
        %v1604 = vadd.f32 0.0, %v1603
        %v1605 = vpop.f32.mrb[0].mxu0
        %v1606 = vpop.f32.mrb[0].mxu0
        %v1607 = vpop.f32.mrb[0].mxu0
        %1608 = vdwg.mxu0
        %v1609 = vsel %vm1334, %v1604, -inf
        %1610 = vmax.xlane.f32.xlu0 %v1609
        %v1611 = vpop.xlane.xlu0 %1610
        %v1612 = vsub.f32 %v1604, %v1611
        %v1613 = vmul.f32 %v1612, 1.442695
        %v1614 = vpow.pop %v1613
        %v1615 = vsel %vm1334, %v1614, 0.0
        %1616 = vadd.xlane.f32.xlu0 %v1615
        %v1617 = vpop.xlane.xlu0 %1616
        %v1618 = vrcp.pop %v1617
        %v1619 = vmul.f32 %v1614, %v1618
        %v1620 = vpack.c.bf16 %v1619, %v1619
        %1621 = vrot.lane.b32.xlu0 %v1330, 48
        %v1622 = vpop.permute.xlu0 %1621
        %v1624 = vsel %vm1334, %v1620, 0
        %v1627 = vsel %vm1398, %v1622, 0
        %1629 = vmatprep.subr.bf16.mxu0 0
        %1630 = vmatpush1.bf16.msra.mxu0 %v1627
        %1631 = vmatprep.subr.bf16.mxu0 0
        %1632 = vmatpush1.bf16.msra.mxu0 0
        %1633 = vmatprep.subr.bf16.mxu0 0
        %1634 = vmatpush1.bf16.msra.mxu0 0
        %1635 = vmatprep.subr.bf16.mxu0 0
        %1636 = vmatpush1.bf16.msra.mxu0 0
        %1637 = vmatprep.subr.bf16.mxu0 0
        %1638 = vmatpush1.bf16.msra.mxu0 0
        %1639 = vmatprep.subr.bf16.mxu0 0
        %1640 = vmatpush1.bf16.msra.mxu0 0
        %1641 = vmatprep.subr.bf16.mxu0 0
        %1642 = vmatpush1.bf16.msra.mxu0 0
        %1643 = vmatprep.subr.bf16.mxu0 0
        %1644 = vmatpush1.bf16.msra.mxu0 0
        %1645 = vmatprep.subr.bf16.mxu0 0
        %1646 = vmatpush1.bf16.msra.mxu0 0
        %1647 = vmatprep.subr.bf16.mxu0 0
        %1648 = vmatpush1.bf16.msra.mxu0 0
        %1649 = vmatprep.subr.bf16.mxu0 0
        %1650 = vmatpush1.bf16.msra.mxu0 0
        %1651 = vmatprep.subr.bf16.mxu0 0
        %1652 = vmatpush1.bf16.msra.mxu0 0
        %1653 = vmatprep.subr.bf16.mxu0 0
        %1654 = vmatpush1.bf16.msra.mxu0 0
        %1655 = vmatprep.subr.bf16.mxu0 0
        %1656 = vmatpush1.bf16.msra.mxu0 0
        %1657 = vmatprep.subr.bf16.mxu0 0
        %1658 = vmatpush1.bf16.msra.mxu0 0
        %1659 = vmatprep.subr.bf16.mxu0 0
        %1660 = vmatpush1.bf16.msra.mxu0 0
        %1661 = vmatprep.mubr.bf16.mxu0 0
        %1662 = vmatmul.mubr.bf16.gmra.mrb[0].mxu0 %v1624
        %v1663 = vpop.f32.mrb[0].mxu0
        %v1664 = vadd.f32 0.0, %v1663
        %v1665 = vpop.f32.mrb[0].mxu0
        %v1666 = vpop.f32.mrb[0].mxu0
        %v1667 = vpop.f32.mrb[0].mxu0
        %1668 = vdwg.mxu0
        %1670 = vrot.lane.b32.xlu0 %v1664, 16
        %v1671 = vpop.permute.xlu0 %1670
        %vm1673 = vcmask 195712
        %1674 = vst.msk [vmem:[#allocation3] sm:$0xff] %vm1673, %v1671
        %1675 = vrot.lane.b32.xlu0 %v1330, 104
        %v1676 = vpop.permute.xlu0 %1675
        %1677 = vrot.lane.b32.xlu0 %v1330, 72
        %v1678 = vpop.permute.xlu0 %1677
        %v1680 = vsel %vm1334, %v1676, 0
        %v1683 = vsel %vm1334, %v1678, 0
        %1685 = vmatprep.subr.bf16.mxu0 0
        %1686 = vmatpush1.bf16.xpose.msra.mxu0 %v1683
        %1687 = vmatprep.subr.bf16.mxu0 0
        %1688 = vmatpush1.bf16.xpose.msra.mxu0 0
        %1689 = vmatprep.subr.bf16.mxu0 0
        %1690 = vmatpush1.bf16.xpose.msra.mxu0 0
        %1691 = vmatprep.subr.bf16.mxu0 0
        %1692 = vmatpush1.bf16.xpose.msra.mxu0 0
        %1693 = vmatprep.subr.bf16.mxu0 0
        %1694 = vmatpush1.bf16.xpose.msra.mxu0 0
        %1695 = vmatprep.subr.bf16.mxu0 0
        %1696 = vmatpush1.bf16.xpose.msra.mxu0 0
        %1697 = vmatprep.subr.bf16.mxu0 0
        %1698 = vmatpush1.bf16.xpose.msra.mxu0 0
        %1699 = vmatprep.subr.bf16.mxu0 0
        %1700 = vmatpush1.bf16.xpose.msra.mxu0 0
        %1701 = vmatprep.subr.bf16.mxu0 0
        %1702 = vmatpush1.bf16.xpose.msra.mxu0 0
        %1703 = vmatprep.subr.bf16.mxu0 0
        %1704 = vmatpush1.bf16.xpose.msra.mxu0 0
        %1705 = vmatprep.subr.bf16.mxu0 0
        %1706 = vmatpush1.bf16.xpose.msra.mxu0 0
        %1707 = vmatprep.subr.bf16.mxu0 0
        %1708 = vmatpush1.bf16.xpose.msra.mxu0 0
        %1709 = vmatprep.subr.bf16.mxu0 0
        %1710 = vmatpush1.bf16.xpose.msra.mxu0 0
        %1711 = vmatprep.subr.bf16.mxu0 0
        %1712 = vmatpush1.bf16.xpose.msra.mxu0 0
        %1713 = vmatprep.subr.bf16.mxu0 0
        %1714 = vmatpush1.bf16.xpose.msra.mxu0 0
        %1715 = vmatprep.subr.bf16.mxu0 0
        %1716 = vmatpush1.bf16.xpose.msra.mxu0 0
        %1717 = vmatprep.mubr.bf16.mxu0 0
        %1718 = vmatmul.mubr.bf16.gmra.mrb[0].mxu0 %v1680
        %v1719 = vpop.f32.mrb[0].mxu0
        %v1720 = vadd.f32 0.0, %v1719
        %v1721 = vpop.f32.mrb[0].mxu0
        %v1722 = vpop.f32.mrb[0].mxu0
        %v1723 = vpop.f32.mrb[0].mxu0
        %1724 = vdwg.mxu0
        %v1725 = vsel %vm1334, %v1720, -inf
        %1726 = vmax.xlane.f32.xlu0 %v1725
        %v1727 = vpop.xlane.xlu0 %1726
        %v1728 = vsub.f32 %v1720, %v1727
        %v1729 = vmul.f32 %v1728, 1.442695
        %v1730 = vpow.pop %v1729
        %v1731 = vsel %vm1334, %v1730, 0.0
        %1732 = vadd.xlane.f32.xlu0 %v1731
        %v1733 = vpop.xlane.xlu0 %1732
        %v1734 = vrcp.pop %v1733
        %v1735 = vmul.f32 %v1730, %v1734
        %v1736 = vpack.c.bf16 %v1735, %v1735
        %1737 = vrot.lane.b32.xlu0 %v1330, 40
        %v1738 = vpop.permute.xlu0 %1737
        %v1740 = vsel %vm1334, %v1736, 0
        %v1743 = vsel %vm1398, %v1738, 0
        %1745 = vmatprep.subr.bf16.mxu0 0
        %1746 = vmatpush1.bf16.msra.mxu0 %v1743
        %1747 = vmatprep.subr.bf16.mxu0 0
        %1748 = vmatpush1.bf16.msra.mxu0 0
        %1749 = vmatprep.subr.bf16.mxu0 0
        %1750 = vmatpush1.bf16.msra.mxu0 0
        %1751 = vmatprep.subr.bf16.mxu0 0
        %1752 = vmatpush1.bf16.msra.mxu0 0
        %1753 = vmatprep.subr.bf16.mxu0 0
        %1754 = vmatpush1.bf16.msra.mxu0 0
        %1755 = vmatprep.subr.bf16.mxu0 0
        %1756 = vmatpush1.bf16.msra.mxu0 0
        %1757 = vmatprep.subr.bf16.mxu0 0
        %1758 = vmatpush1.bf16.msra.mxu0 0
        %1759 = vmatprep.subr.bf16.mxu0 0
        %1760 = vmatpush1.bf16.msra.mxu0 0
        %1761 = vmatprep.subr.bf16.mxu0 0
        %1762 = vmatpush1.bf16.msra.mxu0 0
        %1763 = vmatprep.subr.bf16.mxu0 0
        %1764 = vmatpush1.bf16.msra.mxu0 0
        %1765 = vmatprep.subr.bf16.mxu0 0
        %1766 = vmatpush1.bf16.msra.mxu0 0
        %1767 = vmatprep.subr.bf16.mxu0 0
        %1768 = vmatpush1.bf16.msra.mxu0 0
        %1769 = vmatprep.subr.bf16.mxu0 0
        %1770 = vmatpush1.bf16.msra.mxu0 0
        %1771 = vmatprep.subr.bf16.mxu0 0
        %1772 = vmatpush1.bf16.msra.mxu0 0
        %1773 = vmatprep.subr.bf16.mxu0 0
        %1774 = vmatpush1.bf16.msra.mxu0 0
        %1775 = vmatprep.subr.bf16.mxu0 0
        %1776 = vmatpush1.bf16.msra.mxu0 0
        %1777 = vmatprep.mubr.bf16.mxu0 0
        %1778 = vmatmul.mubr.bf16.gmra.mrb[0].mxu0 %v1740
        %v1779 = vpop.f32.mrb[0].mxu0
        %v1780 = vadd.f32 0.0, %v1779
        %v1781 = vpop.f32.mrb[0].mxu0
        %v1782 = vpop.f32.mrb[0].mxu0
        %v1783 = vpop.f32.mrb[0].mxu0
        %1784 = vdwg.mxu0
        %1786 = vrot.lane.b32.xlu0 %v1780, 24
        %v1787 = vpop.permute.xlu0 %1786
        %vm1789 = vcmask 261312
        %1790 = vst.msk [vmem:[#allocation3] sm:$0xff] %vm1789, %v1787
        %v1791 = vld [vmem:[#allocation3] sm:$0xff]
        %v1792 = vpack.c.bf16 %v1791, %v1791
        %v1793 = vld [vmem:[%s1000] sm:$0xf]
        %v1794 = vld [vmem:[%s1000 + $0x4] sm:$0xf]
        %v1795 = vld [vmem:[%s1000 + $0x8] sm:$0xf]
        %v1796 = vld [vmem:[%s1000 + $0xc] sm:$0xf]
        %v1797 = vld [vmem:[%s1008] sm:$0x1]
        %v1799 = vlaneseq
        %v1800 = vshrl.u32 %v1799, 7
        %v1801 = vsub.s32 0, %v1800
        %v1802 = vrot.slane %v1797, %v1801
        %v1808 = vunpack.c.l.b16 %v1793
        %v1809 = vunpack.c.l.b16 %v1794
        %v1810 = vunpack.c.l.b16 %v1795
        %v1811 = vunpack.c.l.b16 %v1796
        %v1812 = vpack.c.b16 %v1809, %v1808
        %v1813 = vpack.c.b16 %v1811, %v1810
        %v1817 = vsel %vm1286, %v1792, 0
        %1819 = vmatprep.subr.bf16.mxu0 0
        %1820 = vmatpush1.bf16.msra.mxu0 %v1812
        %1821 = vmatprep.subr.bf16.mxu0 0
        %1822 = vmatpush1.bf16.msra.mxu0 %v1813
        %1823 = vmatprep.subr.bf16.mxu0 0
        %1824 = vmatpush1.bf16.msra.mxu0 0
        %1825 = vmatprep.subr.bf16.mxu0 0
        %1826 = vmatpush1.bf16.msra.mxu0 0
        %1827 = vmatprep.subr.bf16.mxu0 0
        %1828 = vmatpush1.bf16.msra.mxu0 0
        %1829 = vmatprep.subr.bf16.mxu0 0
        %1830 = vmatpush1.bf16.msra.mxu0 0
        %1831 = vmatprep.subr.bf16.mxu0 0
        %1832 = vmatpush1.bf16.msra.mxu0 0
        %1833 = vmatprep.subr.bf16.mxu0 0
        %1834 = vmatpush1.bf16.msra.mxu0 0
        %1835 = vmatprep.subr.bf16.mxu0 0
        %1836 = vmatpush1.bf16.msra.mxu0 0
        %1837 = vmatprep.subr.bf16.mxu0 0
        %1838 = vmatpush1.bf16.msra.mxu0 0
        %1839 = vmatprep.subr.bf16.mxu0 0
        %1840 = vmatpush1.bf16.msra.mxu0 0
        %1841 = vmatprep.subr.bf16.mxu0 0
        %1842 = vmatpush1.bf16.msra.mxu0 0
        %1843 = vmatprep.subr.bf16.mxu0 0
        %1844 = vmatpush1.bf16.msra.mxu0 0
        %1845 = vmatprep.subr.bf16.mxu0 0
        %1846 = vmatpush1.bf16.msra.mxu0 0
        %1847 = vmatprep.subr.bf16.mxu0 0
        %1848 = vmatpush1.bf16.msra.mxu0 0
        %1849 = vmatprep.subr.bf16.mxu0 0
        %1850 = vmatpush1.bf16.msra.mxu0 0
        %1851 = vmatprep.mubr.bf16.mxu0 0
        %1852 = vmatmul.mubr.bf16.gmra.mrb[0].mxu0 %v1817
        %v1853 = vpop.f32.mrb[0].mxu0
        %v1854 = vadd.f32 %v1802, %v1853
        %v1855 = vpop.f32.mrb[0].mxu0
        %v1856 = vpop.f32.mrb[0].mxu0
        %v1857 = vpop.f32.mrb[0].mxu0
        %1858 = vdwg.mxu0
        %v1859 = vadd.f32 %v1261, %v1854
        %v1860 = vld [vmem:[%s1016] sm:$0x1]
        %v1861 = vld [vmem:[%s1024] sm:$0x1]
        %v1862 = vsel %vm1286, %v1859, 0.0
        %1863 = vadd.xlane.f32.xlu0 %v1862
        %v1864 = vpop.xlane.xlu0 %1863
        %v1865 = vrcp.pop 32.0
        %v1866 = vmul.f32 %v1864, %v1865
        %v1867 = vsub.f32 %v1859, %v1866
        %v1868 = vmul.f32 %v1867, %v1867
        %v1869 = vsel %vm1286, %v1868, 0.0
        %1870 = vadd.xlane.f32.xlu0 %v1869
        %v1871 = vpop.xlane.xlu0 %1870
        %v1872 = vmul.f32 %v1871, %v1865
        %v1873 = vadd.f32 %v1872, 1e-05
        %v1874 = vrsqrt.pop %v1873
        %v1875 = vmul.f32 %v1867, %v1874
        %v1877 = vlaneseq
        %v1878 = vshrl.u32 %v1877, 7
        %v1879 = vsub.s32 0, %v1878
        %v1880 = vrot.slane %v1860, %v1879
        %v1882 = vmul.f32 %v1875, %v1880
        %v1884 = vlaneseq
        %v1885 = vshrl.u32 %v1884, 7
        %v1886 = vsub.s32 0, %v1885
        %v1887 = vrot.slane %v1861, %v1886
        %v1889 = vadd.f32 %v1882, %v1887
        %v1890 = vpack.c.bf16 %v1889, %v1889
        %v1891 = vld [vmem:[%s1033] sm:$0xf]
        %v1892 = vld [vmem:[%s1033 + $0x4] sm:$0xf]
        %v1893 = vld [vmem:[%s1033 + $0x8] sm:$0xf]
        %v1894 = vld [vmem:[%s1033 + $0xc] sm:$0xf]
        %v1895 = vld [vmem:[%s1041] sm:$0x1]
        %v1897 = vlaneseq
        %v1898 = vshrl.u32 %v1897, 7
        %v1899 = vsub.s32 0, %v1898
        %v1900 = vrot.slane %v1895, %v1899
        %v1906 = vunpack.c.l.b16 %v1891
        %v1907 = vunpack.c.l.b16 %v1892
        %v1908 = vunpack.c.l.b16 %v1893
        %v1909 = vunpack.c.l.b16 %v1894
        %v1910 = vpack.c.b16 %v1907, %v1906
        %v1911 = vpack.c.b16 %v1909, %v1908
        %v1915 = vsel %vm1286, %v1890, 0
        %1917 = vmatprep.subr.bf16.mxu0 0
        %1918 = vmatpush1.bf16.msra.mxu0 %v1910
        %1919 = vmatprep.subr.bf16.mxu0 0
        %1920 = vmatpush1.bf16.msra.mxu0 %v1911
        %1921 = vmatprep.subr.bf16.mxu0 0
        %1922 = vmatpush1.bf16.msra.mxu0 0
        %1923 = vmatprep.subr.bf16.mxu0 0
        %1924 = vmatpush1.bf16.msra.mxu0 0
        %1925 = vmatprep.subr.bf16.mxu0 0
        %1926 = vmatpush1.bf16.msra.mxu0 0
        %1927 = vmatprep.subr.bf16.mxu0 0
        %1928 = vmatpush1.bf16.msra.mxu0 0
        %1929 = vmatprep.subr.bf16.mxu0 0
        %1930 = vmatpush1.bf16.msra.mxu0 0
        %1931 = vmatprep.subr.bf16.mxu0 0
        %1932 = vmatpush1.bf16.msra.mxu0 0
        %1933 = vmatprep.subr.bf16.mxu0 0
        %1934 = vmatpush1.bf16.msra.mxu0 0
        %1935 = vmatprep.subr.bf16.mxu0 0
        %1936 = vmatpush1.bf16.msra.mxu0 0
        %1937 = vmatprep.subr.bf16.mxu0 0
        %1938 = vmatpush1.bf16.msra.mxu0 0
        %1939 = vmatprep.subr.bf16.mxu0 0
        %1940 = vmatpush1.bf16.msra.mxu0 0
        %1941 = vmatprep.subr.bf16.mxu0 0
        %1942 = vmatpush1.bf16.msra.mxu0 0
        %1943 = vmatprep.subr.bf16.mxu0 0
        %1944 = vmatpush1.bf16.msra.mxu0 0
        %1945 = vmatprep.subr.bf16.mxu0 0
        %1946 = vmatpush1.bf16.msra.mxu0 0
        %1947 = vmatprep.subr.bf16.mxu0 0
        %1948 = vmatpush1.bf16.msra.mxu0 0
        %1949 = vmatprep.mubr.bf16.mxu0 0
        %1950 = vmatmul.mubr.bf16.gmra.mrb[0].mxu0 %v1915
        %v1951 = vpop.f32.mrb[0].mxu0
        %v1952 = vadd.f32 %v1900, %v1951
        %v1953 = vpop.f32.mrb[0].mxu0
        %v1954 = vpop.f32.mrb[0].mxu0
        %v1955 = vpop.f32.mrb[0].mxu0
        %1956 = vdwg.mxu0
        %v1957 = vmax.f32 %v1952, 0.0
        %v1958 = vpack.c.bf16 %v1957, %v1957
        %v1959 = vld [vmem:[%s1050] sm:$0xf]
        %v1960 = vld [vmem:[%s1050 + $0x4] sm:$0xf]
        %v1961 = vld [vmem:[%s1050 + $0x8] sm:$0xf]
        %v1962 = vld [vmem:[%s1050 + $0xc] sm:$0xf]
        %v1963 = vld [vmem:[%s1050 + $0x10] sm:$0xf]
        %v1964 = vld [vmem:[%s1050 + $0x14] sm:$0xf]
        %v1965 = vld [vmem:[%s1050 + $0x18] sm:$0xf]
        %v1966 = vld [vmem:[%s1050 + $0x1c] sm:$0xf]
        %v1967 = vld [vmem:[%s1058] sm:$0x1]
        %v1969 = vlaneseq
        %v1970 = vshrl.u32 %v1969, 7
        %v1971 = vsub.s32 0, %v1970
        %v1972 = vrot.slane %v1967, %v1971
        %v1982 = vunpack.c.l.b16 %v1959
        %v1983 = vunpack.c.l.b16 %v1960
        %v1984 = vunpack.c.l.b16 %v1961
        %v1985 = vunpack.c.l.b16 %v1962
        %v1986 = vunpack.c.l.b16 %v1963
        %v1987 = vunpack.c.l.b16 %v1964
        %v1988 = vunpack.c.l.b16 %v1965
        %v1989 = vunpack.c.l.b16 %v1966
        %v1990 = vpack.c.b16 %v1983, %v1982
        %v1991 = vpack.c.b16 %v1985, %v1984
        %v1992 = vpack.c.b16 %v1987, %v1986
        %v1993 = vpack.c.b16 %v1989, %v1988
        %vm1998 = vcmask 523264
        %v2000 = vsel %vm1998, %v1958, 0
        %2002 = vmatprep.subr.bf16.mxu0 0
        %2003 = vmatpush1.bf16.msra.mxu0 %v1990
        %2004 = vmatprep.subr.bf16.mxu0 0
        %2005 = vmatpush1.bf16.msra.mxu0 %v1991
        %2006 = vmatprep.subr.bf16.mxu0 0
        %2007 = vmatpush1.bf16.msra.mxu0 %v1992
        %2008 = vmatprep.subr.bf16.mxu0 0
        %2009 = vmatpush1.bf16.msra.mxu0 %v1993
        %2010 = vmatprep.subr.bf16.mxu0 0
        %2011 = vmatpush1.bf16.msra.mxu0 0
        %2012 = vmatprep.subr.bf16.mxu0 0
        %2013 = vmatpush1.bf16.msra.mxu0 0
        %2014 = vmatprep.subr.bf16.mxu0 0
        %2015 = vmatpush1.bf16.msra.mxu0 0
        %2016 = vmatprep.subr.bf16.mxu0 0
        %2017 = vmatpush1.bf16.msra.mxu0 0
        %2018 = vmatprep.subr.bf16.mxu0 0
        %2019 = vmatpush1.bf16.msra.mxu0 0
        %2020 = vmatprep.subr.bf16.mxu0 0
        %2021 = vmatpush1.bf16.msra.mxu0 0
        %2022 = vmatprep.subr.bf16.mxu0 0
        %2023 = vmatpush1.bf16.msra.mxu0 0
        %2024 = vmatprep.subr.bf16.mxu0 0
        %2025 = vmatpush1.bf16.msra.mxu0 0
        %2026 = vmatprep.subr.bf16.mxu0 0
        %2027 = vmatpush1.bf16.msra.mxu0 0
        %2028 = vmatprep.subr.bf16.mxu0 0
        %2029 = vmatpush1.bf16.msra.mxu0 0
        %2030 = vmatprep.subr.bf16.mxu0 0
        %2031 = vmatpush1.bf16.msra.mxu0 0
        %2032 = vmatprep.subr.bf16.mxu0 0
        %2033 = vmatpush1.bf16.msra.mxu0 0
        %2034 = vmatprep.mubr.bf16.mxu0 0
        %2035 = vmatmul.mubr.bf16.gmra.mrb[0].mxu0 %v2000
        %v2036 = vpop.f32.mrb[0].mxu0
        %v2037 = vadd.f32 %v1972, %v2036
        %v2038 = vpop.f32.mrb[0].mxu0
        %v2039 = vpop.f32.mrb[0].mxu0
        %v2040 = vpop.f32.mrb[0].mxu0
        %2041 = vdwg.mxu0
        %v2042 = vadd.f32 %v1889, %v2037
        %v2043 = vld [vmem:[%s1066] sm:$0x1]
        %v2044 = vld [vmem:[%s1074] sm:$0x1]
        %v2045 = vsel %vm1286, %v2042, 0.0
        %2046 = vadd.xlane.f32.xlu0 %v2045
        %v2047 = vpop.xlane.xlu0 %2046
        %v2048 = vmul.f32 %v2047, %v1865
        %v2049 = vsub.f32 %v2042, %v2048
        %v2050 = vmul.f32 %v2049, %v2049
        %v2051 = vsel %vm1286, %v2050, 0.0
        %2052 = vadd.xlane.f32.xlu0 %v2051
        %v2053 = vpop.xlane.xlu0 %2052
        %v2054 = vmul.f32 %v2053, %v1865
        %v2055 = vadd.f32 %v2054, 1e-05
        %v2056 = vrsqrt.pop %v2055
        %v2057 = vmul.f32 %v2049, %v2056
        %v2059 = vlaneseq
        %v2060 = vshrl.u32 %v2059, 7
        %v2061 = vsub.s32 0, %v2060
        %v2062 = vrot.slane %v2043, %v2061
        %v2064 = vmul.f32 %v2057, %v2062
        %v2066 = vlaneseq
        %v2067 = vshrl.u32 %v2066, 7
        %v2068 = vsub.s32 0, %v2067
        %v2069 = vrot.slane %v2044, %v2068
        %v2071 = vadd.f32 %v2064, %v2069
        %2072 = vst.msk [vmem:[#allocation2] sm:$0xff] %vm1286, %v2071
        %p2073 = scmp.eq.s32.totalorder %s70, 1
        // Predicated region
        $region181: #{chess_transformer_forward.2} parent=99 // pred_check
          %p2074 = pneg %p2073
        $region182: #{chess_transformer_forward.2} parent=99 // pred_check_branch
          %2076 = sbr.rel (%p2074) target = $region184
        $region183: #{chess_transformer_forward.2} parent=99 // pred_region
          %2077 = vst.msk [vmem:[%s1182] sm:$0xff] %vm1286, %v2071
          %v2078 = vld [vmem:[#allocation14] sm:$0x1]
          %v2080 = vsel %vm1334, %v2078, 0
          %2082 = vmatprep.subr.mxu0 0.0
          %2083 = vmatpush1.msra.mxu0 %v2071
          %2084 = vmatprep.subr.mxu0 0.0
          %2085 = vmatpush1.msra.mxu0 0.0
          %2086 = vmatprep.subr.mxu0 0.0
          %2087 = vmatpush1.msra.mxu0 0.0
          %2088 = vmatprep.subr.mxu0 0.0
          %2089 = vmatpush1.msra.mxu0 0.0
          %2090 = vmatprep.subr.mxu0 0.0
          %2091 = vmatpush1.msra.mxu0 0.0
          %2092 = vmatprep.subr.mxu0 0.0
          %2093 = vmatpush1.msra.mxu0 0.0
          %2094 = vmatprep.subr.mxu0 0.0
          %2095 = vmatpush1.msra.mxu0 0.0
          %2096 = vmatprep.subr.mxu0 0.0
          %2097 = vmatpush1.msra.mxu0 0.0
          %2098 = vmatprep.subr.mxu0 0.0
          %2099 = vmatpush1.msra.mxu0 0.0
          %2100 = vmatprep.subr.mxu0 0.0
          %2101 = vmatpush1.msra.mxu0 0.0
          %2102 = vmatprep.subr.mxu0 0.0
          %2103 = vmatpush1.msra.mxu0 0.0
          %2104 = vmatprep.subr.mxu0 0.0
          %2105 = vmatpush1.msra.mxu0 0.0
          %2106 = vmatprep.subr.mxu0 0.0
          %2107 = vmatpush1.msra.mxu0 0.0
          %2108 = vmatprep.subr.mxu0 0.0
          %2109 = vmatpush1.msra.mxu0 0.0
          %2110 = vmatprep.subr.mxu0 0.0
          %2111 = vmatpush1.msra.mxu0 0.0
          %2112 = vmatprep.subr.mxu0 0.0
          %2113 = vmatpush1.msra.mxu0 0.0
          %2114 = vmatprep.subr.mxu0 0.0
          %2115 = vmatpush1.msra.mxu0 0.0
          %2116 = vmatprep.subr.mxu0 0.0
          %2117 = vmatpush1.msra.mxu0 0.0
          %2118 = vmatprep.subr.mxu0 0.0
          %2119 = vmatpush1.msra.mxu0 0.0
          %2120 = vmatprep.subr.mxu0 0.0
          %2121 = vmatpush1.msra.mxu0 0.0
          %2122 = vmatprep.subr.mxu0 0.0
          %2123 = vmatpush1.msra.mxu0 0.0
          %2124 = vmatprep.subr.mxu0 0.0
          %2125 = vmatpush1.msra.mxu0 0.0
          %2126 = vmatprep.subr.mxu0 0.0
          %2127 = vmatpush1.msra.mxu0 0.0
          %2128 = vmatprep.subr.mxu0 0.0
          %2129 = vmatpush1.msra.mxu0 0.0
          %2130 = vmatprep.subr.mxu0 0.0
          %2131 = vmatpush1.msra.mxu0 0.0
          %2132 = vmatprep.subr.mxu0 0.0
          %2133 = vmatpush1.msra.mxu0 0.0
          %2134 = vmatprep.subr.mxu0 0.0
          %2135 = vmatpush1.msra.mxu0 0.0
          %2136 = vmatprep.subr.mxu0 0.0
          %2137 = vmatpush1.msra.mxu0 0.0
          %2138 = vmatprep.subr.mxu0 0.0
          %2139 = vmatpush1.msra.mxu0 0.0
          %2140 = vmatprep.subr.mxu0 0.0
          %2141 = vmatpush1.msra.mxu0 0.0
          %2142 = vmatprep.subr.mxu0 0.0
          %2143 = vmatpush1.msra.mxu0 0.0
          %2144 = vmatprep.subr.mxu0 0.0
          %2145 = vmatpush1.msra.mxu0 0.0
          %2146 = vmatprep.mubr.f32.mxu0 0.0
          %2147 = vmatmul.mubr.f32.gmra.mrb[0].mxu0 %v2080
          %v2148 = vpop.f32.mrb[0].mxu0
          %v2149 = vadd.f32 0.0, %v2148
          %v2150 = vpop.f32.mrb[0].mxu0
          %2151 = vdwg.mxu0
          %v2152 = vld [vmem:[#allocation16] sm:$0xff]
          %v2153 = vld [vmem:[#allocation16 + $0x8] sm:$0xff]
          %v2154 = vld [vmem:[#allocation16 + $0x10] sm:$0xff]
          %v2155 = vld [vmem:[#allocation16 + $0x18] sm:$0xff]
          %v2156 = vld [vmem:[#allocation4] sm:$0x1]
          %v2158 = vsel %vm1286, %v2149, 0
          %2160 = vmatprep.subr.mxu0 0.0
          %2161 = vmatpush1.msra.mxu0 %v2152
          %2162 = vmatprep.subr.mxu0 0.0
          %2163 = vmatpush1.msra.mxu0 %v2153
          %2164 = vmatprep.subr.mxu0 0.0
          %2165 = vmatpush1.msra.mxu0 %v2154
          %2166 = vmatprep.subr.mxu0 0.0
          %2167 = vmatpush1.msra.mxu0 %v2155
          %2168 = vmatprep.subr.mxu0 0.0
          %2169 = vmatpush1.msra.mxu0 0.0
          %2170 = vmatprep.subr.mxu0 0.0
          %2171 = vmatpush1.msra.mxu0 0.0
          %2172 = vmatprep.subr.mxu0 0.0
          %2173 = vmatpush1.msra.mxu0 0.0
          %2174 = vmatprep.subr.mxu0 0.0
          %2175 = vmatpush1.msra.mxu0 0.0
          %2176 = vmatprep.subr.mxu0 0.0
          %2177 = vmatpush1.msra.mxu0 0.0
          %2178 = vmatprep.subr.mxu0 0.0
          %2179 = vmatpush1.msra.mxu0 0.0
          %2180 = vmatprep.subr.mxu0 0.0
          %2181 = vmatpush1.msra.mxu0 0.0
          %2182 = vmatprep.subr.mxu0 0.0
          %2183 = vmatpush1.msra.mxu0 0.0
          %2184 = vmatprep.subr.mxu0 0.0
          %2185 = vmatpush1.msra.mxu0 0.0
          %2186 = vmatprep.subr.mxu0 0.0
          %2187 = vmatpush1.msra.mxu0 0.0
          %2188 = vmatprep.subr.mxu0 0.0
          %2189 = vmatpush1.msra.mxu0 0.0
          %2190 = vmatprep.subr.mxu0 0.0
          %2191 = vmatpush1.msra.mxu0 0.0
          %2192 = vmatprep.subr.mxu0 0.0
          %2193 = vmatpush1.msra.mxu0 0.0
          %2194 = vmatprep.subr.mxu0 0.0
          %2195 = vmatpush1.msra.mxu0 0.0
          %2196 = vmatprep.subr.mxu0 0.0
          %2197 = vmatpush1.msra.mxu0 0.0
          %2198 = vmatprep.subr.mxu0 0.0
          %2199 = vmatpush1.msra.mxu0 0.0
          %2200 = vmatprep.subr.mxu0 0.0
          %2201 = vmatpush1.msra.mxu0 0.0
          %2202 = vmatprep.subr.mxu0 0.0
          %2203 = vmatpush1.msra.mxu0 0.0
          %2204 = vmatprep.subr.mxu0 0.0
          %2205 = vmatpush1.msra.mxu0 0.0
          %2206 = vmatprep.subr.mxu0 0.0
          %2207 = vmatpush1.msra.mxu0 0.0
          %2208 = vmatprep.subr.mxu0 0.0
          %2209 = vmatpush1.msra.mxu0 0.0
          %2210 = vmatprep.subr.mxu0 0.0
          %2211 = vmatpush1.msra.mxu0 0.0
          %2212 = vmatprep.subr.mxu0 0.0
          %2213 = vmatpush1.msra.mxu0 0.0
          %2214 = vmatprep.subr.mxu0 0.0
          %2215 = vmatpush1.msra.mxu0 0.0
          %2216 = vmatprep.subr.mxu0 0.0
          %2217 = vmatpush1.msra.mxu0 0.0
          %2218 = vmatprep.subr.mxu0 0.0
          %2219 = vmatpush1.msra.mxu0 0.0
          %2220 = vmatprep.subr.mxu0 0.0
          %2221 = vmatpush1.msra.mxu0 0.0
          %2222 = vmatprep.subr.mxu0 0.0
          %2223 = vmatpush1.msra.mxu0 0.0
          %2224 = vmatprep.mubr.f32.mxu0 0.0
          %2225 = vmatmul.mubr.f32.gmra.mrb[0].mxu0 %v2158
          %v2226 = vpop.f32.mrb[0].mxu0
          %v2227 = vadd.f32 %v2156, %v2226
          %v2228 = vpop.f32.mrb[0].mxu0
          %2229 = vdwg.mxu0
          %vm2230 = vcmask 0
          %2231 = vst.msk [vmem:[%s1188] sm:$0x1] %vm2230, %v2227
        $region184: #{chess_transformer_forward.2} parent=99 // pred_fallthru
          _
        %s2232 = sand.u32 %s570, 1
        %s2233 = scalar_lea.sflag [#allocation7], %s2232
        %s2234 = sand.u32 %s570, 1
        %s2235 = smul.addr %s2234, 8
        %s2236 = scalar_lea.vmem [#allocation35], %s2235
        %s2237 = sand.u32 %s596, 1
        %s2238 = scalar_lea.sflag [#allocation37], %s2237
        %s2239 = sand.u32 %s596, 1
        %s2240 = scalar_lea.vmem [#allocation36], %s2239
        // Predicated region
        $region185: #{chess_transformer_forward.2} parent=99 // pred_check
          %p2241 = pneg %p580
        $region186: #{chess_transformer_forward.2} parent=99 // pred_check_branch
          %2243 = sbr.rel (%p2241) target = $region188
        $region187: #{chess_transformer_forward.2} parent=99 // pred_region
          %s2245 = ssub.s32 128, 128
          %2246 = vsyncadd %s2233, %s2245
          %s2247 = smul.addr %s69, 128
          %s2248 = scalar_lea.hbm %s20, %s2247
          %s2250 = sshll.u32 %s2236, 4
          %s2251 = int_to_ptr.vmem [resolvable:$true] %s2250
          %2253 = dma.vmem_to_hbm [thread:$0]  %s2251, 128, %s2248, %s2233
        $region188: #{chess_transformer_forward.2} parent=99 // pred_fallthru
          _
        // Predicated region
        $region189: #{chess_transformer_forward.2} parent=99 // pred_check
          %p2254 = pneg %p606
        $region190: #{chess_transformer_forward.2} parent=99 // pred_check_branch
          %2256 = sbr.rel (%p2254) target = $region192
        $region191: #{chess_transformer_forward.2} parent=99 // pred_region
          %s2258 = ssub.s32 16, 16
          %2259 = vsyncadd %s2238, %s2258
          %s2260 = smul.addr %s69, 16
          %s2261 = scalar_lea.hbm %s21, %s2260
          %s2263 = sshll.u32 %s2240, 4
          %s2264 = int_to_ptr.vmem [resolvable:$true] %s2263
          %2266 = dma.vmem_to_hbm [thread:$0]  %s2264, 16, %s2261, %s2238
        $region192: #{chess_transformer_forward.2} parent=99 // pred_fallthru
          _
      $region100: #{chess_transformer_forward.2} parent=5 // pred_fallthru
        _
      %p2267 = scmp.le.s32.totalorder 2, %s60
      // Predicated region
      $region193: #{chess_transformer_forward.2} parent=5 // pred_check
        %p2268 = pneg %p2267
      $region194: #{chess_transformer_forward.2} parent=5 // pred_check_branch
        %2270 = sbr.rel (%p2268) target = $region196
      $region195: #{chess_transformer_forward.2} parent=5 // pred_region
        %s2271 = ssub.s32 %s60, 2
        // Predicated region
        $region197: #{chess_transformer_forward.2} parent=195 // pred_check
          %p2272 = pneg %p586
        $region198: #{chess_transformer_forward.2} parent=195 // pred_check_branch
          %2274 = sbr.rel (%p2272) target = $region200
        $region199: #{chess_transformer_forward.2} parent=195 // pred_region
          %s2275 = sand.u32 %s571, 1
          %s2276 = scalar_lea.sflag [#allocation7], %s2275
          %s2277 = sand.u32 %s571, 1
          %s2278 = smul.addr %s2277, 8
          %s2279 = scalar_lea.vmem [#allocation35], %s2278
          %2280 = dma.done %s2276, 128
        $region200: #{chess_transformer_forward.2} parent=195 // pred_fallthru
          _
        // Predicated region
        $region201: #{chess_transformer_forward.2} parent=195 // pred_check
          %p2281 = pneg %p612
        $region202: #{chess_transformer_forward.2} parent=195 // pred_check_branch
          %2283 = sbr.rel (%p2281) target = $region204
        $region203: #{chess_transformer_forward.2} parent=195 // pred_region
          %s2284 = sand.u32 %s597, 1
          %s2285 = scalar_lea.sflag [#allocation37], %s2284
          %s2286 = sand.u32 %s597, 1
          %s2287 = scalar_lea.vmem [#allocation36], %s2286
          %2288 = dma.done %s2285, 16
        $region204: #{chess_transformer_forward.2} parent=195 // pred_fallthru
          _
      $region196: #{chess_transformer_forward.2} parent=5 // pred_fallthru
        _
    $region6: #{chess_transformer_forward.2} parent=1 // loop_footer
      %s64 = sadd.s32 1, %s60
    $region7: #{chess_transformer_forward.2} parent=1 // loop_footer_branch
      %59 = sbr.rel target = $region3
    $region8: #{chess_transformer_forward.2} parent=1 // loop_exit
      _
    %2289 = vsyncpa [#allocation6], 1
    %s2290 = scalar_lea.sflag [#allocation6], 1
    %2291 = vsyncpa %s2290, 1
    %2292 = vsyncpa [#allocation9], 1
    %2293 = vsyncpa [#allocation12], 1
    %2294 = vsyncpa [#allocation15], 1
    %2295 = vsyncpa [#allocation18], 1
    %s2296 = scalar_lea.sflag [#allocation18], 1
    %2297 = vsyncpa %s2296, 1
    %2298 = vsyncpa [#allocation21], 1
    %s2299 = scalar_lea.sflag [#allocation21], 1
    %2300 = vsyncpa %s2299, 1
    %2301 = vsyncpa [#allocation24], 1
    %s2302 = scalar_lea.sflag [#allocation24], 1
    %2303 = vsyncpa %s2302, 1
    %2304 = vsyncpa [#allocation27], 1
    %s2305 = scalar_lea.sflag [#allocation27], 1
    %2306 = vsyncpa %s2305, 1
    %2307 = vsyncpa [#allocation30], 1
    %s2308 = scalar_lea.sflag [#allocation30], 1
    %2309 = vsyncpa %s2308, 1
    %2310 = vsyncpa [#allocation33], 1
    %s2311 = scalar_lea.sflag [#allocation33], 1
    %2312 = vsyncpa %s2311, 1
    %2313 = vsyncpa [#allocation7], 1
    %s2314 = scalar_lea.sflag [#allocation7], 1
    %2315 = vsyncpa %s2314, 1
    %2316 = vsyncpa [#allocation37], 1
    %s2317 = scalar_lea.sflag [#allocation37], 1
    %2318 = vsyncpa %s2317, 1

</llo_original>
